<compile_context>
chip_gen: v6e
topology: v6e:2x2x1
jax: 0.10.0
libtpu: 0.0.40
codegen_flags: <defaults>
</compile_context>

<pallas_src>
import jax
import jax.numpy as jnp
from jax.experimental import pallas as pl
from jax.experimental.pallas import tpu as pltpu

ENCODING_DIM = 128
# encoder: 1000 -> 512 -> 256 -> 128 ; decoder: 128 -> 256 -> 512 -> 1000
LAYER_DIMS = [1000, 512, 256, ENCODING_DIM, 256, 512, 1000]
# PReLU follows layers 0,1 (encoder) and 3,4 (decoder); layers 2 and 5 are bare.
PRELU_AFTER = [True, True, False, True, True, False]

LANE = 128


def _round_up(x, m):
    return (x + m - 1) // m * m


PAD_IN = _round_up(LAYER_DIMS[0], LANE)    # 1024 (lane-dense input width)
PAD_OUT = _round_up(LAYER_DIMS[-1], LANE)  # 1024 (lane-dense output width)


def autoencoder_kernel(x_ref,
                       w1, b1, a1,
                       w2, b2, a2,
                       w3, b3,
                       w4, b4, a4,
                       w5, b5, a5,
                       w6, b6,
                       o_ref):
    cdt = w1.dtype  # matmul input dtype (bf16 or f32)

    def lin(h, w_ref, b_ref):
        # MXU matmul in the compute dtype, f32 accumulation, f32 bias add.
        return jnp.dot(h.astype(cdt), w_ref[...],
                       preferred_element_type=jnp.float32) + b_ref[...]

    def prelu(h, a_ref):
        a = a_ref[0, 0]  # scalar read from SMEM
        return jnp.where(h > 0, h, a * h)

    h = x_ref[...]
    # encoder
    h = prelu(lin(h, w1, b1), a1)
    h = prelu(lin(h, w2, b2), a2)
    h = lin(h, w3, b3)            # encoded (no activation)
    # decoder
    h = prelu(lin(h, w4, b4), a4)
    h = prelu(lin(h, w5, b5), a5)
    h = lin(h, w6, b6)            # decoded (no activation)
    o_ref[...] = h.astype(o_ref.dtype)


def init_params(key):
    """Deterministic init mimicking PyTorch defaults (uniform +-1/sqrt(fan_in)).

    Weights are stored (in_features, out_features) so the kernel computes
    y = x @ W + b (== PyTorch x @ W_t.T + b with W_t = W.T).
    """
    params = []
    for li in range(6):
        d_in, d_out = LAYER_DIMS[li], LAYER_DIMS[li + 1]
        key, kw, kb = jax.random.split(key, 3)
        bound = 1.0 / (d_in ** 0.5)
        w = jax.random.uniform(kw, (d_in, d_out), jnp.float32, -bound, bound)
        b = jax.random.uniform(kb, (1, d_out), jnp.float32, -bound, bound)
        params.append(w)
        params.append(b)
        if PRELU_AFTER[li]:
            params.append(jnp.full((1, 1), 0.25, jnp.float32))  # nn.PReLU() default
    return params


def autoencoder_forward(x, params, *, bm=256, compute_dtype=jnp.bfloat16):
    B, F = x.shape
    assert F == LAYER_DIMS[0]

    # --- batch tiling: tall MXU tiles; pad batch; keep >=2 grid tiles for
    #     v7x megacore ('parallel') when the batch allows it.
    bm = _round_up(bm, 8)
    b8 = _round_up(B, 8)
    bm_eff = min(bm, b8)
    if b8 // bm_eff < 2 and b8 >= 16:
        bm_eff = _round_up((b8 + 1) // 2, 8)
    B_pad = _round_up(B, bm_eff)

    # --- pad features to lane-dense width and cast to compute dtype.
    xp = jnp.pad(x.astype(compute_dtype), ((0, B_pad - B), (0, PAD_IN - F)))

    kernel_args = [xp]
    in_specs = [pl.BlockSpec((bm_eff, PAD_IN), lambda i: (i, 0))]

    def add_vmem(p):
        kernel_args.append(p)
        shape = p.shape
        in_specs.append(pl.BlockSpec(shape, lambda i: (0,) * len(shape)))

    idx = 0
    for li in range(6):
        w, b = params[idx], params[idx + 1]
        idx += 2
        d_in, d_out = w.shape
        wi = PAD_IN if li == 0 else d_in       # pad K of first layer (x is zero-padded)
        wo = PAD_OUT if li == 5 else d_out     # pad N of last layer (sliced off outside)
        add_vmem(jnp.pad(w, ((0, wi - d_in), (0, wo - d_out))).astype(compute_dtype))
        add_vmem(jnp.pad(b, ((0, 0), (0, wo - d_out))).astype(jnp.float32))
        if PRELU_AFTER[li]:
            # Scalar PReLU alpha -> SMEM (no VMEM vector load / broadcast).
            kernel_args.append(params[idx].astype(jnp.float32))
            idx += 1
            in_specs.append(pl.BlockSpec(memory_space=pltpu.MemorySpace.SMEM))

    out = pl.pallas_call(
        autoencoder_kernel,
        out_shape=jax.ShapeDtypeStruct((B_pad, PAD_OUT), jnp.float32),
        grid_spec=pltpu.PrefetchScalarGridSpec(
            num_scalar_prefetch=0,
            grid=(B_pad // bm_eff,),
            in_specs=in_specs,
            out_specs=pl.BlockSpec((bm_eff, PAD_OUT), lambda i: (i, 0)),
        ),
        compiler_params=pltpu.CompilerParams(
            dimension_semantics=("parallel",),
            vmem_limit_bytes=48 << 20,
        ),
    )(*kernel_args)

    return out[:B, :LAYER_DIMS[-1]].astype(x.dtype)


def reference_forward(x, params):
    """Pure-JAX reference matching PyTorch semantics (f32)."""
    h = x.astype(jnp.float32)
    idx = 0
    for li in range(6):
        w, b = params[idx], params[idx + 1]
        idx += 2
        h = jnp.dot(h, w, preferred_element_type=jnp.float32) + b
        if PRELU_AFTER[li]:
            a = params[idx][0, 0]
            idx += 1
            h = jnp.where(h > 0, h, a * h)
    return h.astype(x.dtype)


if __name__ == "__main__":
    key = jax.random.PRNGKey(0)
    kx, kp = jax.random.split(key)
    B = 16
    x = jax.random.normal(kx, (B, 1000), jnp.float32)
    params = init_params(kp)

    ref = reference_forward(x, params)

    # f32 compute path: tight check against the pure-JAX reference.
    out_f32 = jax.block_until_ready(
        autoencoder_forward(x, params, compute_dtype=jnp.float32))
    assert out_f32.shape == (B, 1000), out_f32.shape
    assert jnp.allclose(out_f32, ref, atol=1e-3, rtol=1e-3), float(
        jnp.max(jnp.abs(out_f32 - ref)))

    # Default bf16 weights/activations (f32 accumulation): MXU-native path.
    out_bf16 = jax.block_until_ready(autoencoder_forward(x, params))
    assert out_bf16.shape == (B, 1000), out_bf16.shape
    assert jnp.allclose(out_bf16, ref, atol=5e-2, rtol=5e-2), float(
        jnp.max(jnp.abs(out_bf16 - ref)))

    print("KERNEL_OK")
</pallas_src>

<mosaic_0001>
module attributes {stable_mosaic.version = 11 : i64} {
  func.func @autoencoder_kernel(%arg0: i32, %arg1: memref<8x1024xf32, #tpu.memory_space<vmem>>, %arg2: memref<1024x512xf32, #tpu.memory_space<vmem>>, %arg3: memref<1x512xf32, #tpu.memory_space<vmem>>, %arg4: memref<1x1xf32, #tpu.memory_space<smem>>, %arg5: memref<512x256xf32, #tpu.memory_space<vmem>>, %arg6: memref<1x256xf32, #tpu.memory_space<vmem>>, %arg7: memref<1x1xf32, #tpu.memory_space<smem>>, %arg8: memref<256x128xf32, #tpu.memory_space<vmem>>, %arg9: memref<1x128xf32, #tpu.memory_space<vmem>>, %arg10: memref<128x256xf32, #tpu.memory_space<vmem>>, %arg11: memref<1x256xf32, #tpu.memory_space<vmem>>, %arg12: memref<1x1xf32, #tpu.memory_space<smem>>, %arg13: memref<256x512xf32, #tpu.memory_space<vmem>>, %arg14: memref<1x512xf32, #tpu.memory_space<vmem>>, %arg15: memref<1x1xf32, #tpu.memory_space<smem>>, %arg16: memref<512x1024xf32, #tpu.memory_space<vmem>>, %arg17: memref<1x1024xf32, #tpu.memory_space<vmem>>, %arg18: memref<8x1024xf32, #tpu.memory_space<vmem>>) attributes {dimension_semantics = [#tpu.dimension_semantics<parallel>], iteration_bounds = array<i64: 2>, scalar_prefetch = 0 : i64, scratch_operands = 0 : i64, tpu.core_type = #tpu.core_type<tc>, window_params = [{transform_indices = @transform_0, window_bounds = array<i64: 8, 1024>}, {pipeline_mode = #tpu.pipeline_mode<synchronous>, transform_indices = @transform_1, window_bounds = array<i64: 1024, 512>}, {pipeline_mode = #tpu.pipeline_mode<synchronous>, transform_indices = @transform_2, window_bounds = array<i64: 1, 512>}, {transform_indices = @transform_3, window_bounds = array<i64: 1, 1>}, {pipeline_mode = #tpu.pipeline_mode<synchronous>, transform_indices = @transform_4, window_bounds = array<i64: 512, 256>}, {pipeline_mode = #tpu.pipeline_mode<synchronous>, transform_indices = @transform_5, window_bounds = array<i64: 1, 256>}, {transform_indices = @transform_6, window_bounds = array<i64: 1, 1>}, {pipeline_mode = #tpu.pipeline_mode<synchronous>, transform_indices = @transform_7, window_bounds = array<i64: 256, 128>}, {pipeline_mode = #tpu.pipeline_mode<synchronous>, transform_indices = @transform_8, window_bounds = array<i64: 1, 128>}, {pipeline_mode = #tpu.pipeline_mode<synchronous>, transform_indices = @transform_9, window_bounds = array<i64: 128, 256>}, {pipeline_mode = #tpu.pipeline_mode<synchronous>, transform_indices = @transform_10, window_bounds = array<i64: 1, 256>}, {transform_indices = @transform_11, window_bounds = array<i64: 1, 1>}, {pipeline_mode = #tpu.pipeline_mode<synchronous>, transform_indices = @transform_12, window_bounds = array<i64: 256, 512>}, {pipeline_mode = #tpu.pipeline_mode<synchronous>, transform_indices = @transform_13, window_bounds = array<i64: 1, 512>}, {transform_indices = @transform_14, window_bounds = array<i64: 1, 1>}, {pipeline_mode = #tpu.pipeline_mode<synchronous>, transform_indices = @transform_15, window_bounds = array<i64: 512, 1024>}, {pipeline_mode = #tpu.pipeline_mode<synchronous>, transform_indices = @transform_16, window_bounds = array<i64: 1, 1024>}, {transform_indices = @transform_17, window_bounds = array<i64: 8, 1024>}]} {
    %c0 = arith.constant 0 : index
    %c0_0 = arith.constant 0 : index
    %0 = vector.load %arg1[%c0, %c0_0] : memref<8x1024xf32, #tpu.memory_space<vmem>>, vector<8x1024xf32>
    %c0_1 = arith.constant 0 : index
    %c0_2 = arith.constant 0 : index
    %1 = vector.load %arg2[%c0_1, %c0_2] : memref<1024x512xf32, #tpu.memory_space<vmem>>, vector<1024x512xf32>
    %cst = arith.constant dense<0.000000e+00> : vector<8x512xf32>
    %2 = tpu.matmul %0, %1, %cst {dimension_numbers = #tpu.dot_dimension_numbers<[1], [0], [0], [1], [0, 0, 1, 1], [], []>} : vector<8x1024xf32>, vector<1024x512xf32>, vector<8x512xf32> -> vector<8x512xf32>
    %c0_3 = arith.constant 0 : index
    %c0_4 = arith.constant 0 : index
    %3 = vector.load %arg3[%c0_3, %c0_4] : memref<1x512xf32, #tpu.memory_space<vmem>>, vector<1x512xf32>
    %4 = vector.broadcast %3 : vector<1x512xf32> to vector<8x512xf32>
    %5 = arith.addf %2, %4 : vector<8x512xf32>
    %c0_5 = arith.constant 0 : index
    %c0_6 = arith.constant 0 : index
    %6 = memref.load %arg4[%c0_5, %c0_6] : memref<1x1xf32, #tpu.memory_space<smem>>
    %cst_7 = arith.constant 0.000000e+00 : f32
    %7 = vector.broadcast %cst_7 : f32 to vector<8x512xf32>
    %8 = arith.cmpf ogt, %5, %7 : vector<8x512xf32>
    %9 = vector.broadcast %6 : f32 to vector<8x512xf32>
    %10 = arith.mulf %9, %5 : vector<8x512xf32>
    %11 = arith.select %8, %5, %10 : vector<8x512xi1>, vector<8x512xf32>
    %c0_8 = arith.constant 0 : index
    %c0_9 = arith.constant 0 : index
    %12 = vector.load %arg5[%c0_8, %c0_9] : memref<512x256xf32, #tpu.memory_space<vmem>>, vector<512x256xf32>
    %cst_10 = arith.constant dense<0.000000e+00> : vector<8x256xf32>
    %13 = tpu.matmul %11, %12, %cst_10 {dimension_numbers = #tpu.dot_dimension_numbers<[1], [0], [0], [1], [0, 0, 1, 1], [], []>} : vector<8x512xf32>, vector<512x256xf32>, vector<8x256xf32> -> vector<8x256xf32>
    %c0_11 = arith.constant 0 : index
    %c0_12 = arith.constant 0 : index
    %14 = vector.load %arg6[%c0_11, %c0_12] : memref<1x256xf32, #tpu.memory_space<vmem>>, vector<1x256xf32>
    %15 = vector.broadcast %14 : vector<1x256xf32> to vector<8x256xf32>
    %16 = arith.addf %13, %15 : vector<8x256xf32>
    %c0_13 = arith.constant 0 : index
    %c0_14 = arith.constant 0 : index
    %17 = memref.load %arg7[%c0_13, %c0_14] : memref<1x1xf32, #tpu.memory_space<smem>>
    %cst_15 = arith.constant 0.000000e+00 : f32
    %18 = vector.broadcast %cst_15 : f32 to vector<8x256xf32>
    %19 = arith.cmpf ogt, %16, %18 : vector<8x256xf32>
    %20 = vector.broadcast %17 : f32 to vector<8x256xf32>
    %21 = arith.mulf %20, %16 : vector<8x256xf32>
    %22 = arith.select %19, %16, %21 : vector<8x256xi1>, vector<8x256xf32>
    %c0_16 = arith.constant 0 : index
    %c0_17 = arith.constant 0 : index
    %23 = vector.load %arg8[%c0_16, %c0_17] : memref<256x128xf32, #tpu.memory_space<vmem>>, vector<256x128xf32>
    %cst_18 = arith.constant dense<0.000000e+00> : vector<8x128xf32>
    %24 = tpu.matmul %22, %23, %cst_18 {dimension_numbers = #tpu.dot_dimension_numbers<[1], [0], [0], [1], [0, 0, 1, 1], [], []>} : vector<8x256xf32>, vector<256x128xf32>, vector<8x128xf32> -> vector<8x128xf32>
    %c0_19 = arith.constant 0 : index
    %c0_20 = arith.constant 0 : index
    %25 = vector.load %arg9[%c0_19, %c0_20] : memref<1x128xf32, #tpu.memory_space<vmem>>, vector<1x128xf32>
    %26 = vector.broadcast %25 : vector<1x128xf32> to vector<8x128xf32>
    %27 = arith.addf %24, %26 : vector<8x128xf32>
    %c0_21 = arith.constant 0 : index
    %c0_22 = arith.constant 0 : index
    %28 = vector.load %arg10[%c0_21, %c0_22] : memref<128x256xf32, #tpu.memory_space<vmem>>, vector<128x256xf32>
    %cst_23 = arith.constant dense<0.000000e+00> : vector<8x256xf32>
    %29 = tpu.matmul %27, %28, %cst_23 {dimension_numbers = #tpu.dot_dimension_numbers<[1], [0], [0], [1], [0, 0, 1, 1], [], []>} : vector<8x128xf32>, vector<128x256xf32>, vector<8x256xf32> -> vector<8x256xf32>
    %c0_24 = arith.constant 0 : index
    %c0_25 = arith.constant 0 : index
    %30 = vector.load %arg11[%c0_24, %c0_25] : memref<1x256xf32, #tpu.memory_space<vmem>>, vector<1x256xf32>
    %31 = vector.broadcast %30 : vector<1x256xf32> to vector<8x256xf32>
    %32 = arith.addf %29, %31 : vector<8x256xf32>
    %c0_26 = arith.constant 0 : index
    %c0_27 = arith.constant 0 : index
    %33 = memref.load %arg12[%c0_26, %c0_27] : memref<1x1xf32, #tpu.memory_space<smem>>
    %cst_28 = arith.constant 0.000000e+00 : f32
    %34 = vector.broadcast %cst_28 : f32 to vector<8x256xf32>
    %35 = arith.cmpf ogt, %32, %34 : vector<8x256xf32>
    %36 = vector.broadcast %33 : f32 to vector<8x256xf32>
    %37 = arith.mulf %36, %32 : vector<8x256xf32>
    %38 = arith.select %35, %32, %37 : vector<8x256xi1>, vector<8x256xf32>
    %c0_29 = arith.constant 0 : index
    %c0_30 = arith.constant 0 : index
    %39 = vector.load %arg13[%c0_29, %c0_30] : memref<256x512xf32, #tpu.memory_space<vmem>>, vector<256x512xf32>
    %cst_31 = arith.constant dense<0.000000e+00> : vector<8x512xf32>
    %40 = tpu.matmul %38, %39, %cst_31 {dimension_numbers = #tpu.dot_dimension_numbers<[1], [0], [0], [1], [0, 0, 1, 1], [], []>} : vector<8x256xf32>, vector<256x512xf32>, vector<8x512xf32> -> vector<8x512xf32>
    %c0_32 = arith.constant 0 : index
    %c0_33 = arith.constant 0 : index
    %41 = vector.load %arg14[%c0_32, %c0_33] : memref<1x512xf32, #tpu.memory_space<vmem>>, vector<1x512xf32>
    %42 = vector.broadcast %41 : vector<1x512xf32> to vector<8x512xf32>
    %43 = arith.addf %40, %42 : vector<8x512xf32>
    %c0_34 = arith.constant 0 : index
    %c0_35 = arith.constant 0 : index
    %44 = memref.load %arg15[%c0_34, %c0_35] : memref<1x1xf32, #tpu.memory_space<smem>>
    %cst_36 = arith.constant 0.000000e+00 : f32
    %45 = vector.broadcast %cst_36 : f32 to vector<8x512xf32>
    %46 = arith.cmpf ogt, %43, %45 : vector<8x512xf32>
    %47 = vector.broadcast %44 : f32 to vector<8x512xf32>
    %48 = arith.mulf %47, %43 : vector<8x512xf32>
    %49 = arith.select %46, %43, %48 : vector<8x512xi1>, vector<8x512xf32>
    %c0_37 = arith.constant 0 : index
    %c0_38 = arith.constant 0 : index
    %50 = vector.load %arg16[%c0_37, %c0_38] : memref<512x1024xf32, #tpu.memory_space<vmem>>, vector<512x1024xf32>
    %cst_39 = arith.constant dense<0.000000e+00> : vector<8x1024xf32>
    %51 = tpu.matmul %49, %50, %cst_39 {dimension_numbers = #tpu.dot_dimension_numbers<[1], [0], [0], [1], [0, 0, 1, 1], [], []>} : vector<8x512xf32>, vector<512x1024xf32>, vector<8x1024xf32> -> vector<8x1024xf32>
    %c0_40 = arith.constant 0 : index
    %c0_41 = arith.constant 0 : index
    %52 = vector.load %arg17[%c0_40, %c0_41] : memref<1x1024xf32, #tpu.memory_space<vmem>>, vector<1x1024xf32>
    %53 = vector.broadcast %52 : vector<1x1024xf32> to vector<8x1024xf32>
    %54 = arith.addf %51, %53 : vector<8x1024xf32>
    %c0_42 = arith.constant 0 : index
    %c0_43 = arith.constant 0 : index
    %55 = vector.load %arg18[%c0_42, %c0_43] : memref<8x1024xf32, #tpu.memory_space<vmem>>, vector<8x1024xf32>
    tpu.vector_store %arg18[%c0_42, %c0_43], %54 {strides = array<i32>} : memref<8x1024xf32, #tpu.memory_space<vmem>>, vector<8x1024xf32>,
    return
  }
  func.func @transform_0(%arg0: i32) -> (i32, i32) {
    %c0_i32 = arith.constant 0 : i32
    %c0_i32_0 = arith.constant 0 : i32
    return %arg0, %c0_i32 : i32, i32
  }
  func.func @transform_1(%arg0: i32) -> (i32, i32) {
    %c0_i32 = arith.constant 0 : i32
    %c0_i32_0 = arith.constant 0 : i32
    %c0_i32_1 = arith.constant 0 : i32
    return %c0_i32, %c0_i32_0 : i32, i32
  }
  func.func @transform_2(%arg0: i32) -> (i32, i32) {
    %c0_i32 = arith.constant 0 : i32
    %c0_i32_0 = arith.constant 0 : i32
    %c0_i32_1 = arith.constant 0 : i32
    return %c0_i32, %c0_i32_0 : i32, i32
  }
  func.func @transform_3(%arg0: i32) -> (i32, i32) {
    %c0_i32 = arith.constant 0 : i32
    %c0_i32_0 = arith.constant 0 : i32
    %c0_i32_1 = arith.constant 0 : i32
    return %c0_i32, %c0_i32_0 : i32, i32
  }
  func.func @transform_4(%arg0: i32) -> (i32, i32) {
    %c0_i32 = arith.constant 0 : i32
    %c0_i32_0 = arith.constant 0 : i32
    %c0_i32_1 = arith.constant 0 : i32
    return %c0_i32, %c0_i32_0 : i32, i32
  }
  func.func @transform_5(%arg0: i32) -> (i32, i32) {
    %c0_i32 = arith.constant 0 : i32
    %c0_i32_0 = arith.constant 0 : i32
    %c0_i32_1 = arith.constant 0 : i32
    return %c0_i32, %c0_i32_0 : i32, i32
  }
  func.func @transform_6(%arg0: i32) -> (i32, i32) {
    %c0_i32 = arith.constant 0 : i32
    %c0_i32_0 = arith.constant 0 : i32
    %c0_i32_1 = arith.constant 0 : i32
    return %c0_i32, %c0_i32_0 : i32, i32
  }
  func.func @transform_7(%arg0: i32) -> (i32, i32) {
    %c0_i32 = arith.constant 0 : i32
    %c0_i32_0 = arith.constant 0 : i32
    %c0_i32_1 = arith.constant 0 : i32
    return %c0_i32, %c0_i32_0 : i32, i32
  }
  func.func @transform_8(%arg0: i32) -> (i32, i32) {
    %c0_i32 = arith.constant 0 : i32
    %c0_i32_0 = arith.constant 0 : i32
    %c0_i32_1 = arith.constant 0 : i32
    return %c0_i32, %c0_i32_0 : i32, i32
  }
  func.func @transform_9(%arg0: i32) -> (i32, i32) {
    %c0_i32 = arith.constant 0 : i32
    %c0_i32_0 = arith.constant 0 : i32
    %c0_i32_1 = arith.constant 0 : i32
    return %c0_i32, %c0_i32_0 : i32, i32
  }
  func.func @transform_10(%arg0: i32) -> (i32, i32) {
    %c0_i32 = arith.constant 0 : i32
    %c0_i32_0 = arith.constant 0 : i32
    %c0_i32_1 = arith.constant 0 : i32
    return %c0_i32, %c0_i32_0 : i32, i32
  }
  func.func @transform_11(%arg0: i32) -> (i32, i32) {
    %c0_i32 = arith.constant 0 : i32
    %c0_i32_0 = arith.constant 0 : i32
    %c0_i32_1 = arith.constant 0 : i32
    return %c0_i32, %c0_i32_0 : i32, i32
  }
  func.func @transform_12(%arg0: i32) -> (i32, i32) {
    %c0_i32 = arith.constant 0 : i32
    %c0_i32_0 = arith.constant 0 : i32
    %c0_i32_1 = arith.constant 0 : i32
    return %c0_i32, %c0_i32_0 : i32, i32
  }
  func.func @transform_13(%arg0: i32) -> (i32, i32) {
    %c0_i32 = arith.constant 0 : i32
    %c0_i32_0 = arith.constant 0 : i32
    %c0_i32_1 = arith.constant 0 : i32
    return %c0_i32, %c0_i32_0 : i32, i32
  }
  func.func @transform_14(%arg0: i32) -> (i32, i32) {
    %c0_i32 = arith.constant 0 : i32
    %c0_i32_0 = arith.constant 0 : i32
    %c0_i32_1 = arith.constant 0 : i32
    return %c0_i32, %c0_i32_0 : i32, i32
  }
  func.func @transform_15(%arg0: i32) -> (i32, i32) {
    %c0_i32 = arith.constant 0 : i32
    %c0_i32_0 = arith.constant 0 : i32
    %c0_i32_1 = arith.constant 0 : i32
    return %c0_i32, %c0_i32_0 : i32, i32
  }
  func.func @transform_16(%arg0: i32) -> (i32, i32) {
    %c0_i32 = arith.constant 0 : i32
    %c0_i32_0 = arith.constant 0 : i32
    %c0_i32_1 = arith.constant 0 : i32
    return %c0_i32, %c0_i32_0 : i32, i32
  }
  func.func @transform_17(%arg0: i32) -> (i32, i32) {
    %c0_i32 = arith.constant 0 : i32
    %c0_i32_0 = arith.constant 0 : i32
    return %arg0, %c0_i32 : i32, i32
  }
}

</mosaic_0001>

<llo_original>
// kernel: tpu_custom_call.1
$region0: #{tpu_custom_call.1}
  #allocation0 [shape = 'u32[]', space=smem, size = 0x4, offset = 0x4, fixed_abs, tag = 'smem constant byte address 0x4 - core index']
  #allocation1 [shape = 'u32[144,128]{1,0:T(1,128)}', space=vmem, size = 0x12000, scoped, tag = 'internal scratch']
  #allocation2 [shape = 'f32[1,1]{1,0:T(1,128)S(6)}', space=smem, size = 0x200, scoped, tag = 'scoped memory for tpu_custom_call.1']
  #allocation3 [shape = 'f32[1,1]{1,0:T(1,128)S(6)}', space=smem, size = 0x200, scoped, tag = 'scoped memory for tpu_custom_call.1']
  #allocation4 [shape = 'f32[1,1]{1,0:T(1,128)S(6)}', space=smem, size = 0x200, scoped, tag = 'scoped memory for tpu_custom_call.1']
  #allocation5 [shape = 'f32[1,1]{1,0:T(1,128)S(6)}', space=smem, size = 0x200, scoped, tag = 'scoped memory for tpu_custom_call.1']
  %s0 = inlined_call_operand.hbm [shape: f32[16,1024], index: 0, kind: input, shape index: {}]
  %s1 = inlined_call_operand.hbm [shape: f32[1024,512], index: 1, kind: input, shape index: {}]
  %s2 = inlined_call_operand.hbm [shape: f32[1,512], index: 2, kind: input, shape index: {}]
  %s3 = inlined_call_operand.<no memory space> [shape: f32[1,1], index: 3, kind: input, shape index: {}]
  %s4 = inlined_call_operand.hbm [shape: f32[512,256], index: 4, kind: input, shape index: {}]
  %s5 = inlined_call_operand.hbm [shape: f32[1,256], index: 5, kind: input, shape index: {}]
  %s6 = inlined_call_operand.<no memory space> [shape: f32[1,1], index: 6, kind: input, shape index: {}]
  %s7 = inlined_call_operand.hbm [shape: f32[256,128], index: 7, kind: input, shape index: {}]
  %s8 = inlined_call_operand.hbm [shape: f32[1,128], index: 8, kind: input, shape index: {}]
  %s9 = inlined_call_operand.hbm [shape: f32[128,256], index: 9, kind: input, shape index: {}]
  %s10 = inlined_call_operand.hbm [shape: f32[1,256], index: 10, kind: input, shape index: {}]
  %s11 = inlined_call_operand.<no memory space> [shape: f32[1,1], index: 11, kind: input, shape index: {}]
  %s12 = inlined_call_operand.hbm [shape: f32[256,512], index: 12, kind: input, shape index: {}]
  %s13 = inlined_call_operand.hbm [shape: f32[1,512], index: 13, kind: input, shape index: {}]
  %s14 = inlined_call_operand.<no memory space> [shape: f32[1,1], index: 14, kind: input, shape index: {}]
  %s15 = inlined_call_operand.hbm [shape: f32[512,1024], index: 15, kind: input, shape index: {}]
  %s16 = inlined_call_operand.hbm [shape: f32[1,1024], index: 16, kind: input, shape index: {}]
  %s17 = inlined_call_operand.hbm [shape: f32[16,1024], index: 17, kind: output, shape index: {}]
  %s18 = sld [smem:[#allocation0]]
  $region153: #{tpu_custom_call.1} parent=0
    _
  %s20 = ssub.s32 1, %s18
  %s21 = scalar_select 0, %s20, %s18
  %22 = sst [smem:[#allocation2]] %s3
  %23 = sst [smem:[#allocation3]] %s6
  %24 = sst [smem:[#allocation4]] %s11
  %25 = sst [smem:[#allocation5]] %s14
  $region1: #{tpu_custom_call.1} parent=0
    #allocation6 [shape = 'u8[65536]{0}', space=vmem, size = 0x10000, scoped, tag = 'input window, operand 0']
    #allocation7 [shape = 's32[2]{0}', space=sflag, size = 0x8, scoped, tag = 'scoped memory for tpu_custom_call.1']
    #allocation8 [shape = 's32[2]{0}', space=sflag, size = 0x8, scoped, tag = 'scoped memory for tpu_custom_call.1']
    #allocation9 [shape = 'u8[2097152]{0}', space=vmem, size = 0x200000, scoped, tag = 'input window, operand 1, single buffered']
    #allocation10 [shape = 's32[1]{0}', space=sflag, size = 0x4, scoped, tag = 'scoped memory for tpu_custom_call.1']
    #allocation11 [shape = 'u8[2048]{0}', space=vmem, size = 0x800, scoped, tag = 'input window, operand 2, single buffered']
    #allocation12 [shape = 'u8[524288]{0}', space=vmem, size = 0x80000, scoped, tag = 'input window, operand 4, single buffered']
    #allocation13 [shape = 's32[1]{0}', space=sflag, size = 0x4, scoped, tag = 'scoped memory for tpu_custom_call.1']
    #allocation14 [shape = 'u8[1024]{0}', space=vmem, size = 0x400, scoped, tag = 'input window, operand 5, single buffered']
    #allocation15 [shape = 'u8[131072]{0}', space=vmem, size = 0x20000, scoped, tag = 'input window, operand 7, single buffered']
    #allocation16 [shape = 's32[1]{0}', space=sflag, size = 0x4, scoped, tag = 'scoped memory for tpu_custom_call.1']
    #allocation17 [shape = 'u8[512]{0}', space=vmem, size = 0x400, scoped, tag = 'input window, operand 8, single buffered']
    #allocation18 [shape = 'u8[131072]{0}', space=vmem, size = 0x20000, scoped, tag = 'input window, operand 9, single buffered']
    #allocation19 [shape = 's32[1]{0}', space=sflag, size = 0x4, scoped, tag = 'scoped memory for tpu_custom_call.1']
    #allocation20 [shape = 'u8[1024]{0}', space=vmem, size = 0x400, scoped, tag = 'input window, operand 10, single buffered']
    #allocation21 [shape = 'u8[524288]{0}', space=vmem, size = 0x80000, scoped, tag = 'input window, operand 12, single buffered']
    #allocation22 [shape = 's32[1]{0}', space=sflag, size = 0x4, scoped, tag = 'scoped memory for tpu_custom_call.1']
    #allocation23 [shape = 'u8[2048]{0}', space=vmem, size = 0x800, scoped, tag = 'input window, operand 13, single buffered']
    #allocation24 [shape = 'u8[2097152]{0}', space=vmem, size = 0x200000, scoped, tag = 'input window, operand 15, single buffered']
    #allocation25 [shape = 's32[1]{0}', space=sflag, size = 0x4, scoped, tag = 'scoped memory for tpu_custom_call.1']
    #allocation26 [shape = 'u8[4096]{0}', space=vmem, size = 0x1000, scoped, tag = 'input window, operand 16, single buffered']
    #allocation27 [shape = 'u8[65536]{0}', space=vmem, size = 0x10000, scoped, tag = 'output window, operand 0']
    %26 = vsyncpa [#allocation7], 0
    %s27 = scalar_lea.sflag [#allocation7], 1
    %28 = vsyncpa %s27, 0
    %29 = vsyncpa [#allocation10], 0
    %30 = vsyncpa [#allocation13], 0
    %31 = vsyncpa [#allocation16], 0
    %32 = vsyncpa [#allocation19], 0
    %33 = vsyncpa [#allocation22], 0
    %34 = vsyncpa [#allocation25], 0
    %35 = vsyncpa [#allocation8], 0
    %s36 = scalar_lea.sflag [#allocation8], 1
    %37 = vsyncpa %s36, 0
    loop: start=0, step=1, limit=4
    $region2: #{tpu_custom_call.1} parent=1 // loop_pre_header
      _
    $region3: #{tpu_custom_call.1} parent=1 // loop_header
      %s39 = sphi 0, %s43
      %p40 = scmp.ge.s32.totalorder %s39, 4
      %s49 = sphi 0, %s51
      %s52 = sphi 0, %s49
      %s53 = sphi 0, %s52
      %s69 = sphi 0, %s53
      %s73 = sphi 0, %s73
      %s75 = sphi 0, %s73
      %s76 = sphi 0, %s75
      %s90 = sphi 0, %s76
      %s94 = sphi 0, %s94
      %s96 = sphi 0, %s94
      %s97 = sphi 0, %s96
      %s111 = sphi 0, %s97
      %s115 = sphi 0, %s115
      %s117 = sphi 0, %s115
      %s118 = sphi 0, %s117
      %s132 = sphi 0, %s118
      %s136 = sphi 0, %s136
      %s138 = sphi 0, %s136
      %s139 = sphi 0, %s138
      %s153 = sphi 0, %s139
      %s157 = sphi 0, %s157
      %s159 = sphi 0, %s157
      %s160 = sphi 0, %s159
      %s174 = sphi 0, %s160
      %s178 = sphi 0, %s178
      %s180 = sphi 0, %s178
      %s181 = sphi 0, %s180
      %s195 = sphi 0, %s181
      %s199 = sphi 0, %s199
      %s201 = sphi 0, %s199
      %s202 = sphi 0, %s201
      %s216 = sphi 0, %s202
      %s220 = sphi 0, %s220
      %s222 = sphi 0, %s220
      %s223 = sphi 0, %s222
      %s237 = sphi 0, %s223
      %s241 = sphi 0, %s241
      %s243 = sphi 0, %s241
      %s244 = sphi 0, %s243
      %s258 = sphi 0, %s244
      %s262 = sphi 0, %s262
      %s264 = sphi 0, %s262
      %s265 = sphi 0, %s264
      %s279 = sphi 0, %s265
      %s283 = sphi 0, %s283
      %s285 = sphi 0, %s283
      %s286 = sphi 0, %s285
      %s300 = sphi 0, %s286
      %s304 = sphi 0, %s304
      %s306 = sphi 0, %s304
      %s307 = sphi 0, %s306
      %s321 = sphi 0, %s307
      %s325 = sphi 0, %s325
      %s327 = sphi 0, %s325
      %s328 = sphi 0, %s327
      %s342 = sphi 0, %s328
      %s346 = sphi 0, %s346
      %s348 = sphi 0, %s346
      %s349 = sphi 0, %s348
      %s363 = sphi 0, %s349
      %s367 = sphi 0, %s367
      %s369 = sphi 0, %s367
      %s370 = sphi 0, %s369
      %s384 = sphi 0, %s370
      %s388 = sphi 0, %s388
      %s390 = sphi 0, %s388
      %s391 = sphi 0, %s390
      %s405 = sphi 0, %s391
      %s411 = sphi 0, %s413
      %s414 = sphi 0, %s411
      %s415 = sphi 0, %s414
      %s431 = sphi 0, %s415
    $region4: #{tpu_custom_call.1} parent=1 // loop_header_branch
      %42 = sbr.rel (%p40) target = $region8
    $region5: #{tpu_custom_call.1} parent=1 // loop_body
      %s44 = ssub.s32 %s39, 1
      %s45 = ssub.s32 %s39, 2
      %s46 = sadd.s32 %s39, 1
      %s47 = ssub.s32 %s39, %s46
      %p48 = scmp.eq.s32.totalorder %s47, 0
      %s50 = sadd.s32 %s49, 1
      %s51 = scalar_select %p48, %s49, %s50
      %p54 = pneg %p48
      %p55 = scmp.eq.s32.totalorder %s39, 1
      %p56 = por %p54, %p55
      %p57 = scmp.ne.s32.totalorder %s49, %s52
      %p58 = scmp.eq.s32.totalorder %s39, 0
      %p59 = por %p57, %p58
      %p60 = scmp.ne.s32.totalorder %s49, %s52
      %p61 = scmp.eq.s32.totalorder %s44, 1
      %p62 = por %p60, %p61
      %p63 = scmp.ne.s32.totalorder %s52, %s53
      %p64 = scmp.eq.s32.totalorder %s44, 0
      %p65 = por %p63, %p64
      %p66 = scmp.ne.s32.totalorder %s52, %s53
      %p67 = scmp.eq.s32.totalorder %s45, 1
      %p68 = por %p66, %p67
      %p70 = scmp.ne.s32.totalorder %s53, %s69
      %p71 = scmp.eq.s32.totalorder %s45, 0
      %p72 = por %p70, %p71
      %s74 = sadd.s32 %s73, 1
      %p77 = scmp.eq.s32.totalorder %s39, 1
      %p78 = scmp.ne.s32.totalorder %s73, %s75
      %p79 = scmp.eq.s32.totalorder %s39, 0
      %p80 = por %p78, %p79
      %p81 = scmp.ne.s32.totalorder %s73, %s75
      %p82 = scmp.eq.s32.totalorder %s44, 1
      %p83 = por %p81, %p82
      %p84 = scmp.ne.s32.totalorder %s75, %s76
      %p85 = scmp.eq.s32.totalorder %s44, 0
      %p86 = por %p84, %p85
      %p87 = scmp.ne.s32.totalorder %s75, %s76
      %p88 = scmp.eq.s32.totalorder %s45, 1
      %p89 = por %p87, %p88
      %p91 = scmp.ne.s32.totalorder %s76, %s90
      %p92 = scmp.eq.s32.totalorder %s45, 0
      %p93 = por %p91, %p92
      %s95 = sadd.s32 %s94, 1
      %p98 = scmp.eq.s32.totalorder %s39, 1
      %p99 = scmp.ne.s32.totalorder %s94, %s96
      %p100 = scmp.eq.s32.totalorder %s39, 0
      %p101 = por %p99, %p100
      %p102 = scmp.ne.s32.totalorder %s94, %s96
      %p103 = scmp.eq.s32.totalorder %s44, 1
      %p104 = por %p102, %p103
      %p105 = scmp.ne.s32.totalorder %s96, %s97
      %p106 = scmp.eq.s32.totalorder %s44, 0
      %p107 = por %p105, %p106
      %p108 = scmp.ne.s32.totalorder %s96, %s97
      %p109 = scmp.eq.s32.totalorder %s45, 1
      %p110 = por %p108, %p109
      %p112 = scmp.ne.s32.totalorder %s97, %s111
      %p113 = scmp.eq.s32.totalorder %s45, 0
      %p114 = por %p112, %p113
      %s116 = sadd.s32 %s115, 1
      %p119 = scmp.eq.s32.totalorder %s39, 1
      %p120 = scmp.ne.s32.totalorder %s115, %s117
      %p121 = scmp.eq.s32.totalorder %s39, 0
      %p122 = por %p120, %p121
      %p123 = scmp.ne.s32.totalorder %s115, %s117
      %p124 = scmp.eq.s32.totalorder %s44, 1
      %p125 = por %p123, %p124
      %p126 = scmp.ne.s32.totalorder %s117, %s118
      %p127 = scmp.eq.s32.totalorder %s44, 0
      %p128 = por %p126, %p127
      %p129 = scmp.ne.s32.totalorder %s117, %s118
      %p130 = scmp.eq.s32.totalorder %s45, 1
      %p131 = por %p129, %p130
      %p133 = scmp.ne.s32.totalorder %s118, %s132
      %p134 = scmp.eq.s32.totalorder %s45, 0
      %p135 = por %p133, %p134
      %s137 = sadd.s32 %s136, 1
      %p140 = scmp.eq.s32.totalorder %s39, 1
      %p141 = scmp.ne.s32.totalorder %s136, %s138
      %p142 = scmp.eq.s32.totalorder %s39, 0
      %p143 = por %p141, %p142
      %p144 = scmp.ne.s32.totalorder %s136, %s138
      %p145 = scmp.eq.s32.totalorder %s44, 1
      %p146 = por %p144, %p145
      %p147 = scmp.ne.s32.totalorder %s138, %s139
      %p148 = scmp.eq.s32.totalorder %s44, 0
      %p149 = por %p147, %p148
      %p150 = scmp.ne.s32.totalorder %s138, %s139
      %p151 = scmp.eq.s32.totalorder %s45, 1
      %p152 = por %p150, %p151
      %p154 = scmp.ne.s32.totalorder %s139, %s153
      %p155 = scmp.eq.s32.totalorder %s45, 0
      %p156 = por %p154, %p155
      %s158 = sadd.s32 %s157, 1
      %p161 = scmp.eq.s32.totalorder %s39, 1
      %p162 = scmp.ne.s32.totalorder %s157, %s159
      %p163 = scmp.eq.s32.totalorder %s39, 0
      %p164 = por %p162, %p163
      %p165 = scmp.ne.s32.totalorder %s157, %s159
      %p166 = scmp.eq.s32.totalorder %s44, 1
      %p167 = por %p165, %p166
      %p168 = scmp.ne.s32.totalorder %s159, %s160
      %p169 = scmp.eq.s32.totalorder %s44, 0
      %p170 = por %p168, %p169
      %p171 = scmp.ne.s32.totalorder %s159, %s160
      %p172 = scmp.eq.s32.totalorder %s45, 1
      %p173 = por %p171, %p172
      %p175 = scmp.ne.s32.totalorder %s160, %s174
      %p176 = scmp.eq.s32.totalorder %s45, 0
      %p177 = por %p175, %p176
      %s179 = sadd.s32 %s178, 1
      %p182 = scmp.eq.s32.totalorder %s39, 1
      %p183 = scmp.ne.s32.totalorder %s178, %s180
      %p184 = scmp.eq.s32.totalorder %s39, 0
      %p185 = por %p183, %p184
      %p186 = scmp.ne.s32.totalorder %s178, %s180
      %p187 = scmp.eq.s32.totalorder %s44, 1
      %p188 = por %p186, %p187
      %p189 = scmp.ne.s32.totalorder %s180, %s181
      %p190 = scmp.eq.s32.totalorder %s44, 0
      %p191 = por %p189, %p190
      %p192 = scmp.ne.s32.totalorder %s180, %s181
      %p193 = scmp.eq.s32.totalorder %s45, 1
      %p194 = por %p192, %p193
      %p196 = scmp.ne.s32.totalorder %s181, %s195
      %p197 = scmp.eq.s32.totalorder %s45, 0
      %p198 = por %p196, %p197
      %s200 = sadd.s32 %s199, 1
      %p203 = scmp.eq.s32.totalorder %s39, 1
      %p204 = scmp.ne.s32.totalorder %s199, %s201
      %p205 = scmp.eq.s32.totalorder %s39, 0
      %p206 = por %p204, %p205
      %p207 = scmp.ne.s32.totalorder %s199, %s201
      %p208 = scmp.eq.s32.totalorder %s44, 1
      %p209 = por %p207, %p208
      %p210 = scmp.ne.s32.totalorder %s201, %s202
      %p211 = scmp.eq.s32.totalorder %s44, 0
      %p212 = por %p210, %p211
      %p213 = scmp.ne.s32.totalorder %s201, %s202
      %p214 = scmp.eq.s32.totalorder %s45, 1
      %p215 = por %p213, %p214
      %p217 = scmp.ne.s32.totalorder %s202, %s216
      %p218 = scmp.eq.s32.totalorder %s45, 0
      %p219 = por %p217, %p218
      %s221 = sadd.s32 %s220, 1
      %p224 = scmp.eq.s32.totalorder %s39, 1
      %p225 = scmp.ne.s32.totalorder %s220, %s222
      %p226 = scmp.eq.s32.totalorder %s39, 0
      %p227 = por %p225, %p226
      %p228 = scmp.ne.s32.totalorder %s220, %s222
      %p229 = scmp.eq.s32.totalorder %s44, 1
      %p230 = por %p228, %p229
      %p231 = scmp.ne.s32.totalorder %s222, %s223
      %p232 = scmp.eq.s32.totalorder %s44, 0
      %p233 = por %p231, %p232
      %p234 = scmp.ne.s32.totalorder %s222, %s223
      %p235 = scmp.eq.s32.totalorder %s45, 1
      %p236 = por %p234, %p235
      %p238 = scmp.ne.s32.totalorder %s223, %s237
      %p239 = scmp.eq.s32.totalorder %s45, 0
      %p240 = por %p238, %p239
      %s242 = sadd.s32 %s241, 1
      %p245 = scmp.eq.s32.totalorder %s39, 1
      %p246 = scmp.ne.s32.totalorder %s241, %s243
      %p247 = scmp.eq.s32.totalorder %s39, 0
      %p248 = por %p246, %p247
      %p249 = scmp.ne.s32.totalorder %s241, %s243
      %p250 = scmp.eq.s32.totalorder %s44, 1
      %p251 = por %p249, %p250
      %p252 = scmp.ne.s32.totalorder %s243, %s244
      %p253 = scmp.eq.s32.totalorder %s44, 0
      %p254 = por %p252, %p253
      %p255 = scmp.ne.s32.totalorder %s243, %s244
      %p256 = scmp.eq.s32.totalorder %s45, 1
      %p257 = por %p255, %p256
      %p259 = scmp.ne.s32.totalorder %s244, %s258
      %p260 = scmp.eq.s32.totalorder %s45, 0
      %p261 = por %p259, %p260
      %s263 = sadd.s32 %s262, 1
      %p266 = scmp.eq.s32.totalorder %s39, 1
      %p267 = scmp.ne.s32.totalorder %s262, %s264
      %p268 = scmp.eq.s32.totalorder %s39, 0
      %p269 = por %p267, %p268
      %p270 = scmp.ne.s32.totalorder %s262, %s264
      %p271 = scmp.eq.s32.totalorder %s44, 1
      %p272 = por %p270, %p271
      %p273 = scmp.ne.s32.totalorder %s264, %s265
      %p274 = scmp.eq.s32.totalorder %s44, 0
      %p275 = por %p273, %p274
      %p276 = scmp.ne.s32.totalorder %s264, %s265
      %p277 = scmp.eq.s32.totalorder %s45, 1
      %p278 = por %p276, %p277
      %p280 = scmp.ne.s32.totalorder %s265, %s279
      %p281 = scmp.eq.s32.totalorder %s45, 0
      %p282 = por %p280, %p281
      %s284 = sadd.s32 %s283, 1
      %p287 = scmp.eq.s32.totalorder %s39, 1
      %p288 = scmp.ne.s32.totalorder %s283, %s285
      %p289 = scmp.eq.s32.totalorder %s39, 0
      %p290 = por %p288, %p289
      %p291 = scmp.ne.s32.totalorder %s283, %s285
      %p292 = scmp.eq.s32.totalorder %s44, 1
      %p293 = por %p291, %p292
      %p294 = scmp.ne.s32.totalorder %s285, %s286
      %p295 = scmp.eq.s32.totalorder %s44, 0
      %p296 = por %p294, %p295
      %p297 = scmp.ne.s32.totalorder %s285, %s286
      %p298 = scmp.eq.s32.totalorder %s45, 1
      %p299 = por %p297, %p298
      %p301 = scmp.ne.s32.totalorder %s286, %s300
      %p302 = scmp.eq.s32.totalorder %s45, 0
      %p303 = por %p301, %p302
      %s305 = sadd.s32 %s304, 1
      %p308 = scmp.eq.s32.totalorder %s39, 1
      %p309 = scmp.ne.s32.totalorder %s304, %s306
      %p310 = scmp.eq.s32.totalorder %s39, 0
      %p311 = por %p309, %p310
      %p312 = scmp.ne.s32.totalorder %s304, %s306
      %p313 = scmp.eq.s32.totalorder %s44, 1
      %p314 = por %p312, %p313
      %p315 = scmp.ne.s32.totalorder %s306, %s307
      %p316 = scmp.eq.s32.totalorder %s44, 0
      %p317 = por %p315, %p316
      %p318 = scmp.ne.s32.totalorder %s306, %s307
      %p319 = scmp.eq.s32.totalorder %s45, 1
      %p320 = por %p318, %p319
      %p322 = scmp.ne.s32.totalorder %s307, %s321
      %p323 = scmp.eq.s32.totalorder %s45, 0
      %p324 = por %p322, %p323
      %s326 = sadd.s32 %s325, 1
      %p329 = scmp.eq.s32.totalorder %s39, 1
      %p330 = scmp.ne.s32.totalorder %s325, %s327
      %p331 = scmp.eq.s32.totalorder %s39, 0
      %p332 = por %p330, %p331
      %p333 = scmp.ne.s32.totalorder %s325, %s327
      %p334 = scmp.eq.s32.totalorder %s44, 1
      %p335 = por %p333, %p334
      %p336 = scmp.ne.s32.totalorder %s327, %s328
      %p337 = scmp.eq.s32.totalorder %s44, 0
      %p338 = por %p336, %p337
      %p339 = scmp.ne.s32.totalorder %s327, %s328
      %p340 = scmp.eq.s32.totalorder %s45, 1
      %p341 = por %p339, %p340
      %p343 = scmp.ne.s32.totalorder %s328, %s342
      %p344 = scmp.eq.s32.totalorder %s45, 0
      %p345 = por %p343, %p344
      %s347 = sadd.s32 %s346, 1
      %p350 = scmp.eq.s32.totalorder %s39, 1
      %p351 = scmp.ne.s32.totalorder %s346, %s348
      %p352 = scmp.eq.s32.totalorder %s39, 0
      %p353 = por %p351, %p352
      %p354 = scmp.ne.s32.totalorder %s346, %s348
      %p355 = scmp.eq.s32.totalorder %s44, 1
      %p356 = por %p354, %p355
      %p357 = scmp.ne.s32.totalorder %s348, %s349
      %p358 = scmp.eq.s32.totalorder %s44, 0
      %p359 = por %p357, %p358
      %p360 = scmp.ne.s32.totalorder %s348, %s349
      %p361 = scmp.eq.s32.totalorder %s45, 1
      %p362 = por %p360, %p361
      %p364 = scmp.ne.s32.totalorder %s349, %s363
      %p365 = scmp.eq.s32.totalorder %s45, 0
      %p366 = por %p364, %p365
      %s368 = sadd.s32 %s367, 1
      %p371 = scmp.eq.s32.totalorder %s39, 1
      %p372 = scmp.ne.s32.totalorder %s367, %s369
      %p373 = scmp.eq.s32.totalorder %s39, 0
      %p374 = por %p372, %p373
      %p375 = scmp.ne.s32.totalorder %s367, %s369
      %p376 = scmp.eq.s32.totalorder %s44, 1
      %p377 = por %p375, %p376
      %p378 = scmp.ne.s32.totalorder %s369, %s370
      %p379 = scmp.eq.s32.totalorder %s44, 0
      %p380 = por %p378, %p379
      %p381 = scmp.ne.s32.totalorder %s369, %s370
      %p382 = scmp.eq.s32.totalorder %s45, 1
      %p383 = por %p381, %p382
      %p385 = scmp.ne.s32.totalorder %s370, %s384
      %p386 = scmp.eq.s32.totalorder %s45, 0
      %p387 = por %p385, %p386
      %s389 = sadd.s32 %s388, 1
      %p392 = scmp.eq.s32.totalorder %s39, 1
      %p393 = scmp.ne.s32.totalorder %s388, %s390
      %p394 = scmp.eq.s32.totalorder %s39, 0
      %p395 = por %p393, %p394
      %p396 = scmp.ne.s32.totalorder %s388, %s390
      %p397 = scmp.eq.s32.totalorder %s44, 1
      %p398 = por %p396, %p397
      %p399 = scmp.ne.s32.totalorder %s390, %s391
      %p400 = scmp.eq.s32.totalorder %s44, 0
      %p401 = por %p399, %p400
      %p402 = scmp.ne.s32.totalorder %s390, %s391
      %p403 = scmp.eq.s32.totalorder %s45, 1
      %p404 = por %p402, %p403
      %p406 = scmp.ne.s32.totalorder %s391, %s405
      %p407 = scmp.eq.s32.totalorder %s45, 0
      %p408 = por %p406, %p407
      %s409 = ssub.s32 %s39, %s46
      %p410 = scmp.eq.s32.totalorder %s409, 0
      %s412 = sadd.s32 %s411, 1
      %s413 = scalar_select %p410, %s411, %s412
      %p416 = pneg %p410
      %p417 = scmp.eq.s32.totalorder %s39, 1
      %p418 = por %p416, %p417
      %p419 = scmp.ne.s32.totalorder %s411, %s414
      %p420 = scmp.eq.s32.totalorder %s39, 0
      %p421 = por %p419, %p420
      %p422 = scmp.ne.s32.totalorder %s411, %s414
      %p423 = scmp.eq.s32.totalorder %s44, 1
      %p424 = por %p422, %p423
      %p425 = scmp.ne.s32.totalorder %s414, %s415
      %p426 = scmp.eq.s32.totalorder %s44, 0
      %p427 = por %p425, %p426
      %p428 = scmp.ne.s32.totalorder %s414, %s415
      %p429 = scmp.eq.s32.totalorder %s45, 1
      %p430 = por %p428, %p429
      %p432 = scmp.ne.s32.totalorder %s415, %s431
      %p433 = scmp.eq.s32.totalorder %s45, 0
      %p434 = por %p432, %p433
      %p435 = scmp.le.s32.totalorder 1, %s39
      %p436 = scmp.lt.s32.totalorder %s39, 3
      %p437 = pnand %p435, %p436
      %p438 = pneg %p437
      // Predicated region
      $region9: #{tpu_custom_call.1} parent=5 // pred_check
        _
      $region10: #{tpu_custom_call.1} parent=5 // pred_check_branch
        %440 = sbr.rel (%p437) target = $region12
      $region11: #{tpu_custom_call.1} parent=5 // pred_region
        %s441 = ssub.s32 %s39, 1
        // Predicated region
        $region13: #{tpu_custom_call.1} parent=11 // pred_check
          %p442 = pneg %p86
        $region14: #{tpu_custom_call.1} parent=11 // pred_check_branch
          %444 = sbr.rel (%p442) target = $region16
        $region15: #{tpu_custom_call.1} parent=11 // pred_region
          %s446 = ssub.s32 65536, 65536
          %447 = vsyncadd [#allocation10], %s446
          %s448 = sshll.u32 [#allocation9], 4
          %s449 = int_to_ptr.vmem [resolvable:$true] %s448
          %454 = dma.hbm_to_vmem [thread:$0]  %s1, 65536, %s449, [#allocation10], 512, 512, 32
        $region16: #{tpu_custom_call.1} parent=11 // pred_fallthru
          _
        // Predicated region
        $region17: #{tpu_custom_call.1} parent=11 // pred_check
          %p455 = pneg %p107
        $region18: #{tpu_custom_call.1} parent=11 // pred_check_branch
          %457 = sbr.rel (%p455) target = $region20
        $region19: #{tpu_custom_call.1} parent=11 // pred_region
          %s459 = ssub.s32 64, 64
          %460 = vsyncadd [#allocation10], %s459
          %s462 = sshll.u32 [#allocation11], 4
          %s463 = int_to_ptr.vmem [resolvable:$true] %s462
          %465 = dma.hbm_to_vmem [thread:$0]  %s2, 64, %s463, [#allocation10]
        $region20: #{tpu_custom_call.1} parent=11 // pred_fallthru
          _
        // Predicated region
        $region21: #{tpu_custom_call.1} parent=11 // pred_check
          %p466 = pneg %p128
        $region22: #{tpu_custom_call.1} parent=11 // pred_check_branch
          %468 = sbr.rel (%p466) target = $region24
        $region23: #{tpu_custom_call.1} parent=11 // pred_region
          _
        $region24: #{tpu_custom_call.1} parent=11 // pred_fallthru
          _
        // Predicated region
        $region25: #{tpu_custom_call.1} parent=11 // pred_check
          %p469 = pneg %p149
        $region26: #{tpu_custom_call.1} parent=11 // pred_check_branch
          %471 = sbr.rel (%p469) target = $region28
        $region27: #{tpu_custom_call.1} parent=11 // pred_region
          %s473 = ssub.s32 16384, 16384
          %474 = vsyncadd [#allocation13], %s473
          %s475 = sshll.u32 [#allocation12], 4
          %s476 = int_to_ptr.vmem [resolvable:$true] %s475
          %481 = dma.hbm_to_vmem [thread:$0]  %s4, 16384, %s476, [#allocation13], 256, 256, 16
        $region28: #{tpu_custom_call.1} parent=11 // pred_fallthru
          _
        // Predicated region
        $region29: #{tpu_custom_call.1} parent=11 // pred_check
          %p482 = pneg %p170
        $region30: #{tpu_custom_call.1} parent=11 // pred_check_branch
          %484 = sbr.rel (%p482) target = $region32
        $region31: #{tpu_custom_call.1} parent=11 // pred_region
          %s486 = ssub.s32 32, 32
          %487 = vsyncadd [#allocation13], %s486
          %s489 = sshll.u32 [#allocation14], 4
          %s490 = int_to_ptr.vmem [resolvable:$true] %s489
          %492 = dma.hbm_to_vmem [thread:$0]  %s5, 32, %s490, [#allocation13]
        $region32: #{tpu_custom_call.1} parent=11 // pred_fallthru
          _
        // Predicated region
        $region33: #{tpu_custom_call.1} parent=11 // pred_check
          %p493 = pneg %p191
        $region34: #{tpu_custom_call.1} parent=11 // pred_check_branch
          %495 = sbr.rel (%p493) target = $region36
        $region35: #{tpu_custom_call.1} parent=11 // pred_region
          _
        $region36: #{tpu_custom_call.1} parent=11 // pred_fallthru
          _
        // Predicated region
        $region37: #{tpu_custom_call.1} parent=11 // pred_check
          %p496 = pneg %p212
        $region38: #{tpu_custom_call.1} parent=11 // pred_check_branch
          %498 = sbr.rel (%p496) target = $region40
        $region39: #{tpu_custom_call.1} parent=11 // pred_region
          %s500 = ssub.s32 4096, 4096
          %501 = vsyncadd [#allocation16], %s500
          %s502 = sshll.u32 [#allocation15], 4
          %s503 = int_to_ptr.vmem [resolvable:$true] %s502
          %508 = dma.hbm_to_vmem [thread:$0]  %s7, 4096, %s503, [#allocation16], 128, 128, 8
        $region40: #{tpu_custom_call.1} parent=11 // pred_fallthru
          _
        // Predicated region
        $region41: #{tpu_custom_call.1} parent=11 // pred_check
          %p509 = pneg %p233
        $region42: #{tpu_custom_call.1} parent=11 // pred_check_branch
          %511 = sbr.rel (%p509) target = $region44
        $region43: #{tpu_custom_call.1} parent=11 // pred_region
          %s513 = ssub.s32 16, 16
          %514 = vsyncadd [#allocation16], %s513
          %s516 = sshll.u32 [#allocation17], 4
          %s517 = int_to_ptr.vmem [resolvable:$true] %s516
          %519 = dma.hbm_to_vmem [thread:$0]  %s8, 16, %s517, [#allocation16]
        $region44: #{tpu_custom_call.1} parent=11 // pred_fallthru
          _
        // Predicated region
        $region45: #{tpu_custom_call.1} parent=11 // pred_check
          %p520 = pneg %p254
        $region46: #{tpu_custom_call.1} parent=11 // pred_check_branch
          %522 = sbr.rel (%p520) target = $region48
        $region47: #{tpu_custom_call.1} parent=11 // pred_region
          %s524 = ssub.s32 4096, 4096
          %525 = vsyncadd [#allocation19], %s524
          %s526 = sshll.u32 [#allocation18], 4
          %s527 = int_to_ptr.vmem [resolvable:$true] %s526
          %532 = dma.hbm_to_vmem [thread:$0]  %s9, 4096, %s527, [#allocation19], 256, 256, 16
        $region48: #{tpu_custom_call.1} parent=11 // pred_fallthru
          _
        // Predicated region
        $region49: #{tpu_custom_call.1} parent=11 // pred_check
          %p533 = pneg %p275
        $region50: #{tpu_custom_call.1} parent=11 // pred_check_branch
          %535 = sbr.rel (%p533) target = $region52
        $region51: #{tpu_custom_call.1} parent=11 // pred_region
          %s537 = ssub.s32 32, 32
          %538 = vsyncadd [#allocation19], %s537
          %s540 = sshll.u32 [#allocation20], 4
          %s541 = int_to_ptr.vmem [resolvable:$true] %s540
          %543 = dma.hbm_to_vmem [thread:$0]  %s10, 32, %s541, [#allocation19]
        $region52: #{tpu_custom_call.1} parent=11 // pred_fallthru
          _
        // Predicated region
        $region53: #{tpu_custom_call.1} parent=11 // pred_check
          %p544 = pneg %p296
        $region54: #{tpu_custom_call.1} parent=11 // pred_check_branch
          %546 = sbr.rel (%p544) target = $region56
        $region55: #{tpu_custom_call.1} parent=11 // pred_region
          _
        $region56: #{tpu_custom_call.1} parent=11 // pred_fallthru
          _
        // Predicated region
        $region57: #{tpu_custom_call.1} parent=11 // pred_check
          %p547 = pneg %p317
        $region58: #{tpu_custom_call.1} parent=11 // pred_check_branch
          %549 = sbr.rel (%p547) target = $region60
        $region59: #{tpu_custom_call.1} parent=11 // pred_region
          %s551 = ssub.s32 16384, 16384
          %552 = vsyncadd [#allocation22], %s551
          %s553 = sshll.u32 [#allocation21], 4
          %s554 = int_to_ptr.vmem [resolvable:$true] %s553
          %559 = dma.hbm_to_vmem [thread:$0]  %s12, 16384, %s554, [#allocation22], 512, 512, 32
        $region60: #{tpu_custom_call.1} parent=11 // pred_fallthru
          _
        // Predicated region
        $region61: #{tpu_custom_call.1} parent=11 // pred_check
          %p560 = pneg %p338
        $region62: #{tpu_custom_call.1} parent=11 // pred_check_branch
          %562 = sbr.rel (%p560) target = $region64
        $region63: #{tpu_custom_call.1} parent=11 // pred_region
          %s564 = ssub.s32 64, 64
          %565 = vsyncadd [#allocation22], %s564
          %s567 = sshll.u32 [#allocation23], 4
          %s568 = int_to_ptr.vmem [resolvable:$true] %s567
          %570 = dma.hbm_to_vmem [thread:$0]  %s13, 64, %s568, [#allocation22]
        $region64: #{tpu_custom_call.1} parent=11 // pred_fallthru
          _
        // Predicated region
        $region65: #{tpu_custom_call.1} parent=11 // pred_check
          %p571 = pneg %p359
        $region66: #{tpu_custom_call.1} parent=11 // pred_check_branch
          %573 = sbr.rel (%p571) target = $region68
        $region67: #{tpu_custom_call.1} parent=11 // pred_region
          _
        $region68: #{tpu_custom_call.1} parent=11 // pred_fallthru
          _
        // Predicated region
        $region69: #{tpu_custom_call.1} parent=11 // pred_check
          %p574 = pneg %p380
        $region70: #{tpu_custom_call.1} parent=11 // pred_check_branch
          %576 = sbr.rel (%p574) target = $region72
        $region71: #{tpu_custom_call.1} parent=11 // pred_region
          %s578 = ssub.s32 65536, 65536
          %579 = vsyncadd [#allocation25], %s578
          %s580 = sshll.u32 [#allocation24], 4
          %s581 = int_to_ptr.vmem [resolvable:$true] %s580
          %586 = dma.hbm_to_vmem [thread:$0]  %s15, 65536, %s581, [#allocation25], 1024, 1024, 64
        $region72: #{tpu_custom_call.1} parent=11 // pred_fallthru
          _
        // Predicated region
        $region73: #{tpu_custom_call.1} parent=11 // pred_check
          %p587 = pneg %p401
        $region74: #{tpu_custom_call.1} parent=11 // pred_check_branch
          %589 = sbr.rel (%p587) target = $region76
        $region75: #{tpu_custom_call.1} parent=11 // pred_region
          %s591 = ssub.s32 128, 128
          %592 = vsyncadd [#allocation25], %s591
          %s594 = sshll.u32 [#allocation26], 4
          %s595 = int_to_ptr.vmem [resolvable:$true] %s594
          %597 = dma.hbm_to_vmem [thread:$0]  %s16, 128, %s595, [#allocation25]
        $region76: #{tpu_custom_call.1} parent=11 // pred_fallthru
          _
      $region12: #{tpu_custom_call.1} parent=5 // pred_fallthru
        _
      %p598 = scmp.lt.s32.totalorder %s39, 2
      // Predicated region
      $region77: #{tpu_custom_call.1} parent=5 // pred_check
        %p599 = pneg %p598
      $region78: #{tpu_custom_call.1} parent=5 // pred_check_branch
        %601 = sbr.rel (%p599) target = $region80
      $region79: #{tpu_custom_call.1} parent=5 // pred_region
        // Predicated region
        $region81: #{tpu_custom_call.1} parent=79 // pred_check
          %p602 = pneg %p59
        $region82: #{tpu_custom_call.1} parent=79 // pred_check_branch
          %604 = sbr.rel (%p602) target = $region84
        $region83: #{tpu_custom_call.1} parent=79 // pred_region
          %s605 = sand.u32 %s49, 1
          %s606 = scalar_lea.sflag [#allocation7], %s605
          %s607 = sand.u32 %s49, 1
          %s608 = smul.addr %s607, 64
          %s609 = scalar_lea.vmem [#allocation6], %s608
          %s611 = ssub.s32 1024, 1024
          %612 = vsyncadd %s606, %s611
          %s613 = smul.addr %s39, 8
          %s614 = smul.addr %s613, 128
          %s615 = scalar_lea.hbm %s0, %s614
          %s617 = sshll.u32 %s609, 4
          %s618 = int_to_ptr.vmem [resolvable:$true] %s617
          %620 = dma.hbm_to_vmem [thread:$0]  %s615, 1024, %s618, %s606
        $region84: #{tpu_custom_call.1} parent=79 // pred_fallthru
          _
      $region80: #{tpu_custom_call.1} parent=5 // pred_fallthru
        _
      %p621 = scmp.le.s32.totalorder 1, %s39
      %p622 = scmp.lt.s32.totalorder %s39, 3
      %p623 = pnand %p621, %p622
      %p624 = pneg %p623
      // Predicated region
      $region85: #{tpu_custom_call.1} parent=5 // pred_check
        _
      $region86: #{tpu_custom_call.1} parent=5 // pred_check_branch
        %626 = sbr.rel (%p623) target = $region88
      $region87: #{tpu_custom_call.1} parent=5 // pred_region
        %s627 = ssub.s32 %s39, 1
        %s628 = sand.u32 %s52, 1
        %s629 = scalar_lea.sflag [#allocation7], %s628
        %s630 = sand.u32 %s52, 1
        %s631 = smul.addr %s630, 64
        %s632 = scalar_lea.vmem [#allocation6], %s631
        // Predicated region
        $region89: #{tpu_custom_call.1} parent=87 // pred_check
          %p633 = pneg %p65
        $region90: #{tpu_custom_call.1} parent=87 // pred_check_branch
          %635 = sbr.rel (%p633) target = $region92
        $region91: #{tpu_custom_call.1} parent=87 // pred_region
          %636 = dma.done %s629, 1024
        $region92: #{tpu_custom_call.1} parent=87 // pred_fallthru
          _
        // Predicated region
        $region93: #{tpu_custom_call.1} parent=87 // pred_check
          %p637 = pneg %p86
        $region94: #{tpu_custom_call.1} parent=87 // pred_check_branch
          %639 = sbr.rel (%p637) target = $region96
        $region95: #{tpu_custom_call.1} parent=87 // pred_region
          %640 = dma.done [#allocation10], 65536
        $region96: #{tpu_custom_call.1} parent=87 // pred_fallthru
          _
        // Predicated region
        $region97: #{tpu_custom_call.1} parent=87 // pred_check
          %p641 = pneg %p107
        $region98: #{tpu_custom_call.1} parent=87 // pred_check_branch
          %643 = sbr.rel (%p641) target = $region100
        $region99: #{tpu_custom_call.1} parent=87 // pred_region
          %644 = dma.done [#allocation10], 64
        $region100: #{tpu_custom_call.1} parent=87 // pred_fallthru
          _
        // Predicated region
        $region101: #{tpu_custom_call.1} parent=87 // pred_check
          %p645 = pneg %p149
        $region102: #{tpu_custom_call.1} parent=87 // pred_check_branch
          %647 = sbr.rel (%p645) target = $region104
        $region103: #{tpu_custom_call.1} parent=87 // pred_region
          %648 = dma.done [#allocation13], 16384
        $region104: #{tpu_custom_call.1} parent=87 // pred_fallthru
          _
        // Predicated region
        $region105: #{tpu_custom_call.1} parent=87 // pred_check
          %p649 = pneg %p170
        $region106: #{tpu_custom_call.1} parent=87 // pred_check_branch
          %651 = sbr.rel (%p649) target = $region108
        $region107: #{tpu_custom_call.1} parent=87 // pred_region
          %652 = dma.done [#allocation13], 32
        $region108: #{tpu_custom_call.1} parent=87 // pred_fallthru
          _
        // Predicated region
        $region109: #{tpu_custom_call.1} parent=87 // pred_check
          %p653 = pneg %p212
        $region110: #{tpu_custom_call.1} parent=87 // pred_check_branch
          %655 = sbr.rel (%p653) target = $region112
        $region111: #{tpu_custom_call.1} parent=87 // pred_region
          %656 = dma.done [#allocation16], 4096
        $region112: #{tpu_custom_call.1} parent=87 // pred_fallthru
          _
        // Predicated region
        $region113: #{tpu_custom_call.1} parent=87 // pred_check
          %p657 = pneg %p233
        $region114: #{tpu_custom_call.1} parent=87 // pred_check_branch
          %659 = sbr.rel (%p657) target = $region116
        $region115: #{tpu_custom_call.1} parent=87 // pred_region
          %660 = dma.done [#allocation16], 16
        $region116: #{tpu_custom_call.1} parent=87 // pred_fallthru
          _
        // Predicated region
        $region117: #{tpu_custom_call.1} parent=87 // pred_check
          %p661 = pneg %p254
        $region118: #{tpu_custom_call.1} parent=87 // pred_check_branch
          %663 = sbr.rel (%p661) target = $region120
        $region119: #{tpu_custom_call.1} parent=87 // pred_region
          %664 = dma.done [#allocation19], 4096
        $region120: #{tpu_custom_call.1} parent=87 // pred_fallthru
          _
        // Predicated region
        $region121: #{tpu_custom_call.1} parent=87 // pred_check
          %p665 = pneg %p275
        $region122: #{tpu_custom_call.1} parent=87 // pred_check_branch
          %667 = sbr.rel (%p665) target = $region124
        $region123: #{tpu_custom_call.1} parent=87 // pred_region
          %668 = dma.done [#allocation19], 32
        $region124: #{tpu_custom_call.1} parent=87 // pred_fallthru
          _
        // Predicated region
        $region125: #{tpu_custom_call.1} parent=87 // pred_check
          %p669 = pneg %p317
        $region126: #{tpu_custom_call.1} parent=87 // pred_check_branch
          %671 = sbr.rel (%p669) target = $region128
        $region127: #{tpu_custom_call.1} parent=87 // pred_region
          %672 = dma.done [#allocation22], 16384
        $region128: #{tpu_custom_call.1} parent=87 // pred_fallthru
          _
        // Predicated region
        $region129: #{tpu_custom_call.1} parent=87 // pred_check
          %p673 = pneg %p338
        $region130: #{tpu_custom_call.1} parent=87 // pred_check_branch
          %675 = sbr.rel (%p673) target = $region132
        $region131: #{tpu_custom_call.1} parent=87 // pred_region
          %676 = dma.done [#allocation22], 64
        $region132: #{tpu_custom_call.1} parent=87 // pred_fallthru
          _
        // Predicated region
        $region133: #{tpu_custom_call.1} parent=87 // pred_check
          %p677 = pneg %p380
        $region134: #{tpu_custom_call.1} parent=87 // pred_check_branch
          %679 = sbr.rel (%p677) target = $region136
        $region135: #{tpu_custom_call.1} parent=87 // pred_region
          %680 = dma.done [#allocation25], 65536
        $region136: #{tpu_custom_call.1} parent=87 // pred_fallthru
          _
        // Predicated region
        $region137: #{tpu_custom_call.1} parent=87 // pred_check
          %p681 = pneg %p401
        $region138: #{tpu_custom_call.1} parent=87 // pred_check_branch
          %683 = sbr.rel (%p681) target = $region140
        $region139: #{tpu_custom_call.1} parent=87 // pred_region
          %684 = dma.done [#allocation25], 128
        $region140: #{tpu_custom_call.1} parent=87 // pred_fallthru
          _
        %s685 = sand.u32 %s52, 1
        %s686 = scalar_lea.sflag [#allocation7], %s685
        %s687 = sand.u32 %s52, 1
        %s688 = smul.addr %s687, 64
        %s689 = scalar_lea.vmem [#allocation6], %s688
        %p690 = pneg %p65
        %p691 = pneg %p62
        %p692 = pneg %p86
        %p693 = pneg %p83
        %p694 = pneg %p107
        %p695 = pneg %p104
        %p696 = pneg %p128
        %p697 = pneg %p125
        %p698 = pneg %p149
        %p699 = pneg %p146
        %p700 = pneg %p170
        %p701 = pneg %p167
        %p702 = pneg %p191
        %p703 = pneg %p188
        %p704 = pneg %p212
        %p705 = pneg %p209
        %p706 = pneg %p233
        %p707 = pneg %p230
        %p708 = pneg %p254
        %p709 = pneg %p251
        %p710 = pneg %p275
        %p711 = pneg %p272
        %p712 = pneg %p296
        %p713 = pneg %p293
        %p714 = pneg %p317
        %p715 = pneg %p314
        %p716 = pneg %p338
        %p717 = pneg %p335
        %p718 = pneg %p359
        %p719 = pneg %p356
        %p720 = pneg %p380
        %p721 = pneg %p377
        %p722 = pneg %p401
        %p723 = pneg %p398
        %p724 = pneg %p427
        %p725 = pneg %p424
        %s726 = sand.u32 %s414, 1
        %s727 = scalar_lea.sflag [#allocation8], %s726
        %s728 = sand.u32 %s414, 1
        %s729 = smul.addr %s728, 64
        %s730 = scalar_lea.vmem [#allocation27], %s729
        %v731 = vld [vmem:[%s632] sm:$0xff]
        %v732 = vld [vmem:[%s632 + $0x8] sm:$0xff]
        %v733 = vld [vmem:[%s632 + $0x10] sm:$0xff]
        %v734 = vld [vmem:[%s632 + $0x18] sm:$0xff]
        %v735 = vld [vmem:[%s632 + $0x20] sm:$0xff]
        %v736 = vld [vmem:[%s632 + $0x28] sm:$0xff]
        %v737 = vld [vmem:[%s632 + $0x30] sm:$0xff]
        %v738 = vld [vmem:[%s632 + $0x38] sm:$0xff]
        %v739 = vld [vmem:[#allocation9] sm:$0xff]
        %v740 = vld [vmem:[#allocation9 + $0x8] sm:$0xff]
        %v741 = vld [vmem:[#allocation9 + $0x10] sm:$0xff]
        %v742 = vld [vmem:[#allocation9 + $0x18] sm:$0xff]
        %v743 = vld [vmem:[#allocation9 + $0x20] sm:$0xff]
        %v744 = vld [vmem:[#allocation9 + $0x28] sm:$0xff]
        %v745 = vld [vmem:[#allocation9 + $0x30] sm:$0xff]
        %v746 = vld [vmem:[#allocation9 + $0x38] sm:$0xff]
        %v747 = vld [vmem:[#allocation9 + $0x40] sm:$0xff]
        %v748 = vld [vmem:[#allocation9 + $0x48] sm:$0xff]
        %v749 = vld [vmem:[#allocation9 + $0x50] sm:$0xff]
        %v750 = vld [vmem:[#allocation9 + $0x58] sm:$0xff]
        %v751 = vld [vmem:[#allocation9 + $0x60] sm:$0xff]
        %v752 = vld [vmem:[#allocation9 + $0x68] sm:$0xff]
        %v753 = vld [vmem:[#allocation9 + $0x70] sm:$0xff]
        %v754 = vld [vmem:[#allocation9 + $0x78] sm:$0xff]
        %v755 = vld [vmem:[#allocation9 + $0x80] sm:$0xff]
        %v756 = vld [vmem:[#allocation9 + $0x88] sm:$0xff]
        %v757 = vld [vmem:[#allocation9 + $0x90] sm:$0xff]
        %v758 = vld [vmem:[#allocation9 + $0x98] sm:$0xff]
        %v759 = vld [vmem:[#allocation9 + $0xa0] sm:$0xff]
        %v760 = vld [vmem:[#allocation9 + $0xa8] sm:$0xff]
        %v761 = vld [vmem:[#allocation9 + $0xb0] sm:$0xff]
        %v762 = vld [vmem:[#allocation9 + $0xb8] sm:$0xff]
        %v763 = vld [vmem:[#allocation9 + $0xc0] sm:$0xff]
        %v764 = vld [vmem:[#allocation9 + $0xc8] sm:$0xff]
        %v765 = vld [vmem:[#allocation9 + $0xd0] sm:$0xff]
        %v766 = vld [vmem:[#allocation9 + $0xd8] sm:$0xff]
        %v767 = vld [vmem:[#allocation9 + $0xe0] sm:$0xff]
        %v768 = vld [vmem:[#allocation9 + $0xe8] sm:$0xff]
        %v769 = vld [vmem:[#allocation9 + $0xf0] sm:$0xff]
        %v770 = vld [vmem:[#allocation9 + $0xf8] sm:$0xff]
        %v771 = vld [vmem:[#allocation9 + $0x100] sm:$0xff]
        %v772 = vld [vmem:[#allocation9 + $0x108] sm:$0xff]
        %v773 = vld [vmem:[#allocation9 + $0x110] sm:$0xff]
        %v774 = vld [vmem:[#allocation9 + $0x118] sm:$0xff]
        %v775 = vld [vmem:[#allocation9 + $0x120] sm:$0xff]
        %v776 = vld [vmem:[#allocation9 + $0x128] sm:$0xff]
        %v777 = vld [vmem:[#allocation9 + $0x130] sm:$0xff]
        %v778 = vld [vmem:[#allocation9 + $0x138] sm:$0xff]
        %v779 = vld [vmem:[#allocation9 + $0x140] sm:$0xff]
        %v780 = vld [vmem:[#allocation9 + $0x148] sm:$0xff]
        %v781 = vld [vmem:[#allocation9 + $0x150] sm:$0xff]
        %v782 = vld [vmem:[#allocation9 + $0x158] sm:$0xff]
        %v783 = vld [vmem:[#allocation9 + $0x160] sm:$0xff]
        %v784 = vld [vmem:[#allocation9 + $0x168] sm:$0xff]
        %v785 = vld [vmem:[#allocation9 + $0x170] sm:$0xff]
        %v786 = vld [vmem:[#allocation9 + $0x178] sm:$0xff]
        %v787 = vld [vmem:[#allocation9 + $0x180] sm:$0xff]
        %v788 = vld [vmem:[#allocation9 + $0x188] sm:$0xff]
        %v789 = vld [vmem:[#allocation9 + $0x190] sm:$0xff]
        %v790 = vld [vmem:[#allocation9 + $0x198] sm:$0xff]
        %v791 = vld [vmem:[#allocation9 + $0x1a0] sm:$0xff]
        %v792 = vld [vmem:[#allocation9 + $0x1a8] sm:$0xff]
        %v793 = vld [vmem:[#allocation9 + $0x1b0] sm:$0xff]
        %v794 = vld [vmem:[#allocation9 + $0x1b8] sm:$0xff]
        %v795 = vld [vmem:[#allocation9 + $0x1c0] sm:$0xff]
        %v796 = vld [vmem:[#allocation9 + $0x1c8] sm:$0xff]
        %v797 = vld [vmem:[#allocation9 + $0x1d0] sm:$0xff]
        %v798 = vld [vmem:[#allocation9 + $0x1d8] sm:$0xff]
        %v799 = vld [vmem:[#allocation9 + $0x1e0] sm:$0xff]
        %v800 = vld [vmem:[#allocation9 + $0x1e8] sm:$0xff]
        %v801 = vld [vmem:[#allocation9 + $0x1f0] sm:$0xff]
        %v802 = vld [vmem:[#allocation9 + $0x1f8] sm:$0xff]
        %v803 = vld [vmem:[#allocation9 + $0x200] sm:$0xff]
        %v804 = vld [vmem:[#allocation9 + $0x208] sm:$0xff]
        %v805 = vld [vmem:[#allocation9 + $0x210] sm:$0xff]
        %v806 = vld [vmem:[#allocation9 + $0x218] sm:$0xff]
        %v807 = vld [vmem:[#allocation9 + $0x220] sm:$0xff]
        %v808 = vld [vmem:[#allocation9 + $0x228] sm:$0xff]
        %v809 = vld [vmem:[#allocation9 + $0x230] sm:$0xff]
        %v810 = vld [vmem:[#allocation9 + $0x238] sm:$0xff]
        %v811 = vld [vmem:[#allocation9 + $0x240] sm:$0xff]
        %v812 = vld [vmem:[#allocation9 + $0x248] sm:$0xff]
        %v813 = vld [vmem:[#allocation9 + $0x250] sm:$0xff]
        %v814 = vld [vmem:[#allocation9 + $0x258] sm:$0xff]
        %v815 = vld [vmem:[#allocation9 + $0x260] sm:$0xff]
        %v816 = vld [vmem:[#allocation9 + $0x268] sm:$0xff]
        %v817 = vld [vmem:[#allocation9 + $0x270] sm:$0xff]
        %v818 = vld [vmem:[#allocation9 + $0x278] sm:$0xff]
        %v819 = vld [vmem:[#allocation9 + $0x280] sm:$0xff]
        %v820 = vld [vmem:[#allocation9 + $0x288] sm:$0xff]
        %v821 = vld [vmem:[#allocation9 + $0x290] sm:$0xff]
        %v822 = vld [vmem:[#allocation9 + $0x298] sm:$0xff]
        %v823 = vld [vmem:[#allocation9 + $0x2a0] sm:$0xff]
        %v824 = vld [vmem:[#allocation9 + $0x2a8] sm:$0xff]
        %v825 = vld [vmem:[#allocation9 + $0x2b0] sm:$0xff]
        %v826 = vld [vmem:[#allocation9 + $0x2b8] sm:$0xff]
        %v827 = vld [vmem:[#allocation9 + $0x2c0] sm:$0xff]
        %v828 = vld [vmem:[#allocation9 + $0x2c8] sm:$0xff]
        %v829 = vld [vmem:[#allocation9 + $0x2d0] sm:$0xff]
        %v830 = vld [vmem:[#allocation9 + $0x2d8] sm:$0xff]
        %v831 = vld [vmem:[#allocation9 + $0x2e0] sm:$0xff]
        %v832 = vld [vmem:[#allocation9 + $0x2e8] sm:$0xff]
        %v833 = vld [vmem:[#allocation9 + $0x2f0] sm:$0xff]
        %v834 = vld [vmem:[#allocation9 + $0x2f8] sm:$0xff]
        %v835 = vld [vmem:[#allocation9 + $0x300] sm:$0xff]
        %v836 = vld [vmem:[#allocation9 + $0x308] sm:$0xff]
        %v837 = vld [vmem:[#allocation9 + $0x310] sm:$0xff]
        %v838 = vld [vmem:[#allocation9 + $0x318] sm:$0xff]
        %v839 = vld [vmem:[#allocation9 + $0x320] sm:$0xff]
        %v840 = vld [vmem:[#allocation9 + $0x328] sm:$0xff]
        %v841 = vld [vmem:[#allocation9 + $0x330] sm:$0xff]
        %v842 = vld [vmem:[#allocation9 + $0x338] sm:$0xff]
        %v843 = vld [vmem:[#allocation9 + $0x340] sm:$0xff]
        %v844 = vld [vmem:[#allocation9 + $0x348] sm:$0xff]
        %v845 = vld [vmem:[#allocation9 + $0x350] sm:$0xff]
        %v846 = vld [vmem:[#allocation9 + $0x358] sm:$0xff]
        %v847 = vld [vmem:[#allocation9 + $0x360] sm:$0xff]
        %v848 = vld [vmem:[#allocation9 + $0x368] sm:$0xff]
        %v849 = vld [vmem:[#allocation9 + $0x370] sm:$0xff]
        %v850 = vld [vmem:[#allocation9 + $0x378] sm:$0xff]
        %v851 = vld [vmem:[#allocation9 + $0x380] sm:$0xff]
        %v852 = vld [vmem:[#allocation9 + $0x388] sm:$0xff]
        %v853 = vld [vmem:[#allocation9 + $0x390] sm:$0xff]
        %v854 = vld [vmem:[#allocation9 + $0x398] sm:$0xff]
        %v855 = vld [vmem:[#allocation9 + $0x3a0] sm:$0xff]
        %v856 = vld [vmem:[#allocation9 + $0x3a8] sm:$0xff]
        %v857 = vld [vmem:[#allocation9 + $0x3b0] sm:$0xff]
        %v858 = vld [vmem:[#allocation9 + $0x3b8] sm:$0xff]
        %v859 = vld [vmem:[#allocation9 + $0x3c0] sm:$0xff]
        %v860 = vld [vmem:[#allocation9 + $0x3c8] sm:$0xff]
        %v861 = vld [vmem:[#allocation9 + $0x3d0] sm:$0xff]
        %v862 = vld [vmem:[#allocation9 + $0x3d8] sm:$0xff]
        %v863 = vld [vmem:[#allocation9 + $0x3e0] sm:$0xff]
        %v864 = vld [vmem:[#allocation9 + $0x3e8] sm:$0xff]
        %v865 = vld [vmem:[#allocation9 + $0x3f0] sm:$0xff]
        %v866 = vld [vmem:[#allocation9 + $0x3f8] sm:$0xff]
        %v867 = vld [vmem:[#allocation9 + $0x400] sm:$0xff]
        %v868 = vld [vmem:[#allocation9 + $0x408] sm:$0xff]
        %v869 = vld [vmem:[#allocation9 + $0x410] sm:$0xff]
        %v870 = vld [vmem:[#allocation9 + $0x418] sm:$0xff]
        %v871 = vld [vmem:[#allocation9 + $0x420] sm:$0xff]
        %v872 = vld [vmem:[#allocation9 + $0x428] sm:$0xff]
        %v873 = vld [vmem:[#allocation9 + $0x430] sm:$0xff]
        %v874 = vld [vmem:[#allocation9 + $0x438] sm:$0xff]
        %v875 = vld [vmem:[#allocation9 + $0x440] sm:$0xff]
        %v876 = vld [vmem:[#allocation9 + $0x448] sm:$0xff]
        %v877 = vld [vmem:[#allocation9 + $0x450] sm:$0xff]
        %v878 = vld [vmem:[#allocation9 + $0x458] sm:$0xff]
        %v879 = vld [vmem:[#allocation9 + $0x460] sm:$0xff]
        %v880 = vld [vmem:[#allocation9 + $0x468] sm:$0xff]
        %v881 = vld [vmem:[#allocation9 + $0x470] sm:$0xff]
        %v882 = vld [vmem:[#allocation9 + $0x478] sm:$0xff]
        %v883 = vld [vmem:[#allocation9 + $0x480] sm:$0xff]
        %v884 = vld [vmem:[#allocation9 + $0x488] sm:$0xff]
        %v885 = vld [vmem:[#allocation9 + $0x490] sm:$0xff]
        %v886 = vld [vmem:[#allocation9 + $0x498] sm:$0xff]
        %v887 = vld [vmem:[#allocation9 + $0x4a0] sm:$0xff]
        %v888 = vld [vmem:[#allocation9 + $0x4a8] sm:$0xff]
        %v889 = vld [vmem:[#allocation9 + $0x4b0] sm:$0xff]
        %v890 = vld [vmem:[#allocation9 + $0x4b8] sm:$0xff]
        %v891 = vld [vmem:[#allocation9 + $0x4c0] sm:$0xff]
        %v892 = vld [vmem:[#allocation9 + $0x4c8] sm:$0xff]
        %v893 = vld [vmem:[#allocation9 + $0x4d0] sm:$0xff]
        %v894 = vld [vmem:[#allocation9 + $0x4d8] sm:$0xff]
        %v895 = vld [vmem:[#allocation9 + $0x4e0] sm:$0xff]
        %v896 = vld [vmem:[#allocation9 + $0x4e8] sm:$0xff]
        %v897 = vld [vmem:[#allocation9 + $0x4f0] sm:$0xff]
        %v898 = vld [vmem:[#allocation9 + $0x4f8] sm:$0xff]
        %v899 = vld [vmem:[#allocation9 + $0x500] sm:$0xff]
        %v900 = vld [vmem:[#allocation9 + $0x508] sm:$0xff]
        %v901 = vld [vmem:[#allocation9 + $0x510] sm:$0xff]
        %v902 = vld [vmem:[#allocation9 + $0x518] sm:$0xff]
        %v903 = vld [vmem:[#allocation9 + $0x520] sm:$0xff]
        %v904 = vld [vmem:[#allocation9 + $0x528] sm:$0xff]
        %v905 = vld [vmem:[#allocation9 + $0x530] sm:$0xff]
        %v906 = vld [vmem:[#allocation9 + $0x538] sm:$0xff]
        %v907 = vld [vmem:[#allocation9 + $0x540] sm:$0xff]
        %v908 = vld [vmem:[#allocation9 + $0x548] sm:$0xff]
        %v909 = vld [vmem:[#allocation9 + $0x550] sm:$0xff]
        %v910 = vld [vmem:[#allocation9 + $0x558] sm:$0xff]
        %v911 = vld [vmem:[#allocation9 + $0x560] sm:$0xff]
        %v912 = vld [vmem:[#allocation9 + $0x568] sm:$0xff]
        %v913 = vld [vmem:[#allocation9 + $0x570] sm:$0xff]
        %v914 = vld [vmem:[#allocation9 + $0x578] sm:$0xff]
        %v915 = vld [vmem:[#allocation9 + $0x580] sm:$0xff]
        %v916 = vld [vmem:[#allocation9 + $0x588] sm:$0xff]
        %v917 = vld [vmem:[#allocation9 + $0x590] sm:$0xff]
        %v918 = vld [vmem:[#allocation9 + $0x598] sm:$0xff]
        %v919 = vld [vmem:[#allocation9 + $0x5a0] sm:$0xff]
        %v920 = vld [vmem:[#allocation9 + $0x5a8] sm:$0xff]
        %v921 = vld [vmem:[#allocation9 + $0x5b0] sm:$0xff]
        %v922 = vld [vmem:[#allocation9 + $0x5b8] sm:$0xff]
        %v923 = vld [vmem:[#allocation9 + $0x5c0] sm:$0xff]
        %v924 = vld [vmem:[#allocation9 + $0x5c8] sm:$0xff]
        %v925 = vld [vmem:[#allocation9 + $0x5d0] sm:$0xff]
        %v926 = vld [vmem:[#allocation9 + $0x5d8] sm:$0xff]
        %v927 = vld [vmem:[#allocation9 + $0x5e0] sm:$0xff]
        %v928 = vld [vmem:[#allocation9 + $0x5e8] sm:$0xff]
        %v929 = vld [vmem:[#allocation9 + $0x5f0] sm:$0xff]
        %v930 = vld [vmem:[#allocation9 + $0x5f8] sm:$0xff]
        %v931 = vld [vmem:[#allocation9 + $0x600] sm:$0xff]
        %v932 = vld [vmem:[#allocation9 + $0x608] sm:$0xff]
        %v933 = vld [vmem:[#allocation9 + $0x610] sm:$0xff]
        %v934 = vld [vmem:[#allocation9 + $0x618] sm:$0xff]
        %v935 = vld [vmem:[#allocation9 + $0x620] sm:$0xff]
        %v936 = vld [vmem:[#allocation9 + $0x628] sm:$0xff]
        %v937 = vld [vmem:[#allocation9 + $0x630] sm:$0xff]
        %v938 = vld [vmem:[#allocation9 + $0x638] sm:$0xff]
        %v939 = vld [vmem:[#allocation9 + $0x640] sm:$0xff]
        %v940 = vld [vmem:[#allocation9 + $0x648] sm:$0xff]
        %v941 = vld [vmem:[#allocation9 + $0x650] sm:$0xff]
        %v942 = vld [vmem:[#allocation9 + $0x658] sm:$0xff]
        %v943 = vld [vmem:[#allocation9 + $0x660] sm:$0xff]
        %v944 = vld [vmem:[#allocation9 + $0x668] sm:$0xff]
        %v945 = vld [vmem:[#allocation9 + $0x670] sm:$0xff]
        %v946 = vld [vmem:[#allocation9 + $0x678] sm:$0xff]
        %v947 = vld [vmem:[#allocation9 + $0x680] sm:$0xff]
        %v948 = vld [vmem:[#allocation9 + $0x688] sm:$0xff]
        %v949 = vld [vmem:[#allocation9 + $0x690] sm:$0xff]
        %v950 = vld [vmem:[#allocation9 + $0x698] sm:$0xff]
        %v951 = vld [vmem:[#allocation9 + $0x6a0] sm:$0xff]
        %v952 = vld [vmem:[#allocation9 + $0x6a8] sm:$0xff]
        %v953 = vld [vmem:[#allocation9 + $0x6b0] sm:$0xff]
        %v954 = vld [vmem:[#allocation9 + $0x6b8] sm:$0xff]
        %v955 = vld [vmem:[#allocation9 + $0x6c0] sm:$0xff]
        %v956 = vld [vmem:[#allocation9 + $0x6c8] sm:$0xff]
        %v957 = vld [vmem:[#allocation9 + $0x6d0] sm:$0xff]
        %v958 = vld [vmem:[#allocation9 + $0x6d8] sm:$0xff]
        %v959 = vld [vmem:[#allocation9 + $0x6e0] sm:$0xff]
        %v960 = vld [vmem:[#allocation9 + $0x6e8] sm:$0xff]
        %v961 = vld [vmem:[#allocation9 + $0x6f0] sm:$0xff]
        %v962 = vld [vmem:[#allocation9 + $0x6f8] sm:$0xff]
        %v963 = vld [vmem:[#allocation9 + $0x700] sm:$0xff]
        %v964 = vld [vmem:[#allocation9 + $0x708] sm:$0xff]
        %v965 = vld [vmem:[#allocation9 + $0x710] sm:$0xff]
        %v966 = vld [vmem:[#allocation9 + $0x718] sm:$0xff]
        %v967 = vld [vmem:[#allocation9 + $0x720] sm:$0xff]
        %v968 = vld [vmem:[#allocation9 + $0x728] sm:$0xff]
        %v969 = vld [vmem:[#allocation9 + $0x730] sm:$0xff]
        %v970 = vld [vmem:[#allocation9 + $0x738] sm:$0xff]
        %v971 = vld [vmem:[#allocation9 + $0x740] sm:$0xff]
        %v972 = vld [vmem:[#allocation9 + $0x748] sm:$0xff]
        %v973 = vld [vmem:[#allocation9 + $0x750] sm:$0xff]
        %v974 = vld [vmem:[#allocation9 + $0x758] sm:$0xff]
        %v975 = vld [vmem:[#allocation9 + $0x760] sm:$0xff]
        %v976 = vld [vmem:[#allocation9 + $0x768] sm:$0xff]
        %v977 = vld [vmem:[#allocation9 + $0x770] sm:$0xff]
        %v978 = vld [vmem:[#allocation9 + $0x778] sm:$0xff]
        %v979 = vld [vmem:[#allocation9 + $0x780] sm:$0xff]
        %v980 = vld [vmem:[#allocation9 + $0x788] sm:$0xff]
        %v981 = vld [vmem:[#allocation9 + $0x790] sm:$0xff]
        %v982 = vld [vmem:[#allocation9 + $0x798] sm:$0xff]
        %v983 = vld [vmem:[#allocation9 + $0x7a0] sm:$0xff]
        %v984 = vld [vmem:[#allocation9 + $0x7a8] sm:$0xff]
        %v985 = vld [vmem:[#allocation9 + $0x7b0] sm:$0xff]
        %v986 = vld [vmem:[#allocation9 + $0x7b8] sm:$0xff]
        %v987 = vld [vmem:[#allocation9 + $0x7c0] sm:$0xff]
        %v988 = vld [vmem:[#allocation9 + $0x7c8] sm:$0xff]
        %v989 = vld [vmem:[#allocation9 + $0x7d0] sm:$0xff]
        %v990 = vld [vmem:[#allocation9 + $0x7d8] sm:$0xff]
        %v991 = vld [vmem:[#allocation9 + $0x7e0] sm:$0xff]
        %v992 = vld [vmem:[#allocation9 + $0x7e8] sm:$0xff]
        %v993 = vld [vmem:[#allocation9 + $0x7f0] sm:$0xff]
        %v994 = vld [vmem:[#allocation9 + $0x7f8] sm:$0xff]
        %v995 = vld [vmem:[#allocation9 + $0x800] sm:$0xff]
        %v996 = vld [vmem:[#allocation9 + $0x808] sm:$0xff]
        %v997 = vld [vmem:[#allocation9 + $0x810] sm:$0xff]
        %v998 = vld [vmem:[#allocation9 + $0x818] sm:$0xff]
        %v999 = vld [vmem:[#allocation9 + $0x820] sm:$0xff]
        %v1000 = vld [vmem:[#allocation9 + $0x828] sm:$0xff]
        %v1001 = vld [vmem:[#allocation9 + $0x830] sm:$0xff]
        %v1002 = vld [vmem:[#allocation9 + $0x838] sm:$0xff]
        %v1003 = vld [vmem:[#allocation9 + $0x840] sm:$0xff]
        %v1004 = vld [vmem:[#allocation9 + $0x848] sm:$0xff]
        %v1005 = vld [vmem:[#allocation9 + $0x850] sm:$0xff]
        %v1006 = vld [vmem:[#allocation9 + $0x858] sm:$0xff]
        %v1007 = vld [vmem:[#allocation9 + $0x860] sm:$0xff]
        %v1008 = vld [vmem:[#allocation9 + $0x868] sm:$0xff]
        %v1009 = vld [vmem:[#allocation9 + $0x870] sm:$0xff]
        %v1010 = vld [vmem:[#allocation9 + $0x878] sm:$0xff]
        %v1011 = vld [vmem:[#allocation9 + $0x880] sm:$0xff]
        %v1012 = vld [vmem:[#allocation9 + $0x888] sm:$0xff]
        %v1013 = vld [vmem:[#allocation9 + $0x890] sm:$0xff]
        %v1014 = vld [vmem:[#allocation9 + $0x898] sm:$0xff]
        %v1015 = vld [vmem:[#allocation9 + $0x8a0] sm:$0xff]
        %v1016 = vld [vmem:[#allocation9 + $0x8a8] sm:$0xff]
        %v1017 = vld [vmem:[#allocation9 + $0x8b0] sm:$0xff]
        %v1018 = vld [vmem:[#allocation9 + $0x8b8] sm:$0xff]
        %v1019 = vld [vmem:[#allocation9 + $0x8c0] sm:$0xff]
        %v1020 = vld [vmem:[#allocation9 + $0x8c8] sm:$0xff]
        %v1021 = vld [vmem:[#allocation9 + $0x8d0] sm:$0xff]
        %v1022 = vld [vmem:[#allocation9 + $0x8d8] sm:$0xff]
        %v1023 = vld [vmem:[#allocation9 + $0x8e0] sm:$0xff]
        %v1024 = vld [vmem:[#allocation9 + $0x8e8] sm:$0xff]
        %v1025 = vld [vmem:[#allocation9 + $0x8f0] sm:$0xff]
        %v1026 = vld [vmem:[#allocation9 + $0x8f8] sm:$0xff]
        %v1027 = vld [vmem:[#allocation9 + $0x900] sm:$0xff]
        %v1028 = vld [vmem:[#allocation9 + $0x908] sm:$0xff]
        %v1029 = vld [vmem:[#allocation9 + $0x910] sm:$0xff]
        %v1030 = vld [vmem:[#allocation9 + $0x918] sm:$0xff]
        %v1031 = vld [vmem:[#allocation9 + $0x920] sm:$0xff]
        %v1032 = vld [vmem:[#allocation9 + $0x928] sm:$0xff]
        %v1033 = vld [vmem:[#allocation9 + $0x930] sm:$0xff]
        %v1034 = vld [vmem:[#allocation9 + $0x938] sm:$0xff]
        %v1035 = vld [vmem:[#allocation9 + $0x940] sm:$0xff]
        %v1036 = vld [vmem:[#allocation9 + $0x948] sm:$0xff]
        %v1037 = vld [vmem:[#allocation9 + $0x950] sm:$0xff]
        %v1038 = vld [vmem:[#allocation9 + $0x958] sm:$0xff]
        %v1039 = vld [vmem:[#allocation9 + $0x960] sm:$0xff]
        %v1040 = vld [vmem:[#allocation9 + $0x968] sm:$0xff]
        %v1041 = vld [vmem:[#allocation9 + $0x970] sm:$0xff]
        %v1042 = vld [vmem:[#allocation9 + $0x978] sm:$0xff]
        %v1043 = vld [vmem:[#allocation9 + $0x980] sm:$0xff]
        %v1044 = vld [vmem:[#allocation9 + $0x988] sm:$0xff]
        %v1045 = vld [vmem:[#allocation9 + $0x990] sm:$0xff]
        %v1046 = vld [vmem:[#allocation9 + $0x998] sm:$0xff]
        %v1047 = vld [vmem:[#allocation9 + $0x9a0] sm:$0xff]
        %v1048 = vld [vmem:[#allocation9 + $0x9a8] sm:$0xff]
        %v1049 = vld [vmem:[#allocation9 + $0x9b0] sm:$0xff]
        %v1050 = vld [vmem:[#allocation9 + $0x9b8] sm:$0xff]
        %v1051 = vld [vmem:[#allocation9 + $0x9c0] sm:$0xff]
        %v1052 = vld [vmem:[#allocation9 + $0x9c8] sm:$0xff]
        %v1053 = vld [vmem:[#allocation9 + $0x9d0] sm:$0xff]
        %v1054 = vld [vmem:[#allocation9 + $0x9d8] sm:$0xff]
        %v1055 = vld [vmem:[#allocation9 + $0x9e0] sm:$0xff]
        %v1056 = vld [vmem:[#allocation9 + $0x9e8] sm:$0xff]
        %v1057 = vld [vmem:[#allocation9 + $0x9f0] sm:$0xff]
        %v1058 = vld [vmem:[#allocation9 + $0x9f8] sm:$0xff]
        %v1059 = vld [vmem:[#allocation9 + $0xa00] sm:$0xff]
        %v1060 = vld [vmem:[#allocation9 + $0xa08] sm:$0xff]
        %v1061 = vld [vmem:[#allocation9 + $0xa10] sm:$0xff]
        %v1062 = vld [vmem:[#allocation9 + $0xa18] sm:$0xff]
        %v1063 = vld [vmem:[#allocation9 + $0xa20] sm:$0xff]
        %v1064 = vld [vmem:[#allocation9 + $0xa28] sm:$0xff]
        %v1065 = vld [vmem:[#allocation9 + $0xa30] sm:$0xff]
        %v1066 = vld [vmem:[#allocation9 + $0xa38] sm:$0xff]
        %v1067 = vld [vmem:[#allocation9 + $0xa40] sm:$0xff]
        %v1068 = vld [vmem:[#allocation9 + $0xa48] sm:$0xff]
        %v1069 = vld [vmem:[#allocation9 + $0xa50] sm:$0xff]
        %v1070 = vld [vmem:[#allocation9 + $0xa58] sm:$0xff]
        %v1071 = vld [vmem:[#allocation9 + $0xa60] sm:$0xff]
        %v1072 = vld [vmem:[#allocation9 + $0xa68] sm:$0xff]
        %v1073 = vld [vmem:[#allocation9 + $0xa70] sm:$0xff]
        %v1074 = vld [vmem:[#allocation9 + $0xa78] sm:$0xff]
        %v1075 = vld [vmem:[#allocation9 + $0xa80] sm:$0xff]
        %v1076 = vld [vmem:[#allocation9 + $0xa88] sm:$0xff]
        %v1077 = vld [vmem:[#allocation9 + $0xa90] sm:$0xff]
        %v1078 = vld [vmem:[#allocation9 + $0xa98] sm:$0xff]
        %v1079 = vld [vmem:[#allocation9 + $0xaa0] sm:$0xff]
        %v1080 = vld [vmem:[#allocation9 + $0xaa8] sm:$0xff]
        %v1081 = vld [vmem:[#allocation9 + $0xab0] sm:$0xff]
        %v1082 = vld [vmem:[#allocation9 + $0xab8] sm:$0xff]
        %v1083 = vld [vmem:[#allocation9 + $0xac0] sm:$0xff]
        %v1084 = vld [vmem:[#allocation9 + $0xac8] sm:$0xff]
        %v1085 = vld [vmem:[#allocation9 + $0xad0] sm:$0xff]
        %v1086 = vld [vmem:[#allocation9 + $0xad8] sm:$0xff]
        %v1087 = vld [vmem:[#allocation9 + $0xae0] sm:$0xff]
        %v1088 = vld [vmem:[#allocation9 + $0xae8] sm:$0xff]
        %v1089 = vld [vmem:[#allocation9 + $0xaf0] sm:$0xff]
        %v1090 = vld [vmem:[#allocation9 + $0xaf8] sm:$0xff]
        %v1091 = vld [vmem:[#allocation9 + $0xb00] sm:$0xff]
        %v1092 = vld [vmem:[#allocation9 + $0xb08] sm:$0xff]
        %v1093 = vld [vmem:[#allocation9 + $0xb10] sm:$0xff]
        %v1094 = vld [vmem:[#allocation9 + $0xb18] sm:$0xff]
        %v1095 = vld [vmem:[#allocation9 + $0xb20] sm:$0xff]
        %v1096 = vld [vmem:[#allocation9 + $0xb28] sm:$0xff]
        %v1097 = vld [vmem:[#allocation9 + $0xb30] sm:$0xff]
        %v1098 = vld [vmem:[#allocation9 + $0xb38] sm:$0xff]
        %v1099 = vld [vmem:[#allocation9 + $0xb40] sm:$0xff]
        %v1100 = vld [vmem:[#allocation9 + $0xb48] sm:$0xff]
        %v1101 = vld [vmem:[#allocation9 + $0xb50] sm:$0xff]
        %v1102 = vld [vmem:[#allocation9 + $0xb58] sm:$0xff]
        %v1103 = vld [vmem:[#allocation9 + $0xb60] sm:$0xff]
        %v1104 = vld [vmem:[#allocation9 + $0xb68] sm:$0xff]
        %v1105 = vld [vmem:[#allocation9 + $0xb70] sm:$0xff]
        %v1106 = vld [vmem:[#allocation9 + $0xb78] sm:$0xff]
        %v1107 = vld [vmem:[#allocation9 + $0xb80] sm:$0xff]
        %v1108 = vld [vmem:[#allocation9 + $0xb88] sm:$0xff]
        %v1109 = vld [vmem:[#allocation9 + $0xb90] sm:$0xff]
        %v1110 = vld [vmem:[#allocation9 + $0xb98] sm:$0xff]
        %v1111 = vld [vmem:[#allocation9 + $0xba0] sm:$0xff]
        %v1112 = vld [vmem:[#allocation9 + $0xba8] sm:$0xff]
        %v1113 = vld [vmem:[#allocation9 + $0xbb0] sm:$0xff]
        %v1114 = vld [vmem:[#allocation9 + $0xbb8] sm:$0xff]
        %v1115 = vld [vmem:[#allocation9 + $0xbc0] sm:$0xff]
        %v1116 = vld [vmem:[#allocation9 + $0xbc8] sm:$0xff]
        %v1117 = vld [vmem:[#allocation9 + $0xbd0] sm:$0xff]
        %v1118 = vld [vmem:[#allocation9 + $0xbd8] sm:$0xff]
        %v1119 = vld [vmem:[#allocation9 + $0xbe0] sm:$0xff]
        %v1120 = vld [vmem:[#allocation9 + $0xbe8] sm:$0xff]
        %v1121 = vld [vmem:[#allocation9 + $0xbf0] sm:$0xff]
        %v1122 = vld [vmem:[#allocation9 + $0xbf8] sm:$0xff]
        %v1123 = vld [vmem:[#allocation9 + $0xc00] sm:$0xff]
        %v1124 = vld [vmem:[#allocation9 + $0xc08] sm:$0xff]
        %v1125 = vld [vmem:[#allocation9 + $0xc10] sm:$0xff]
        %v1126 = vld [vmem:[#allocation9 + $0xc18] sm:$0xff]
        %v1127 = vld [vmem:[#allocation9 + $0xc20] sm:$0xff]
        %v1128 = vld [vmem:[#allocation9 + $0xc28] sm:$0xff]
        %v1129 = vld [vmem:[#allocation9 + $0xc30] sm:$0xff]
        %v1130 = vld [vmem:[#allocation9 + $0xc38] sm:$0xff]
        %v1131 = vld [vmem:[#allocation9 + $0xc40] sm:$0xff]
        %v1132 = vld [vmem:[#allocation9 + $0xc48] sm:$0xff]
        %v1133 = vld [vmem:[#allocation9 + $0xc50] sm:$0xff]
        %v1134 = vld [vmem:[#allocation9 + $0xc58] sm:$0xff]
        %v1135 = vld [vmem:[#allocation9 + $0xc60] sm:$0xff]
        %v1136 = vld [vmem:[#allocation9 + $0xc68] sm:$0xff]
        %v1137 = vld [vmem:[#allocation9 + $0xc70] sm:$0xff]
        %v1138 = vld [vmem:[#allocation9 + $0xc78] sm:$0xff]
        %v1139 = vld [vmem:[#allocation9 + $0xc80] sm:$0xff]
        %v1140 = vld [vmem:[#allocation9 + $0xc88] sm:$0xff]
        %v1141 = vld [vmem:[#allocation9 + $0xc90] sm:$0xff]
        %v1142 = vld [vmem:[#allocation9 + $0xc98] sm:$0xff]
        %v1143 = vld [vmem:[#allocation9 + $0xca0] sm:$0xff]
        %v1144 = vld [vmem:[#allocation9 + $0xca8] sm:$0xff]
        %v1145 = vld [vmem:[#allocation9 + $0xcb0] sm:$0xff]
        %v1146 = vld [vmem:[#allocation9 + $0xcb8] sm:$0xff]
        %v1147 = vld [vmem:[#allocation9 + $0xcc0] sm:$0xff]
        %v1148 = vld [vmem:[#allocation9 + $0xcc8] sm:$0xff]
        %v1149 = vld [vmem:[#allocation9 + $0xcd0] sm:$0xff]
        %v1150 = vld [vmem:[#allocation9 + $0xcd8] sm:$0xff]
        %v1151 = vld [vmem:[#allocation9 + $0xce0] sm:$0xff]
        %v1152 = vld [vmem:[#allocation9 + $0xce8] sm:$0xff]
        %v1153 = vld [vmem:[#allocation9 + $0xcf0] sm:$0xff]
        %v1154 = vld [vmem:[#allocation9 + $0xcf8] sm:$0xff]
        %v1155 = vld [vmem:[#allocation9 + $0xd00] sm:$0xff]
        %v1156 = vld [vmem:[#allocation9 + $0xd08] sm:$0xff]
        %v1157 = vld [vmem:[#allocation9 + $0xd10] sm:$0xff]
        %v1158 = vld [vmem:[#allocation9 + $0xd18] sm:$0xff]
        %v1159 = vld [vmem:[#allocation9 + $0xd20] sm:$0xff]
        %v1160 = vld [vmem:[#allocation9 + $0xd28] sm:$0xff]
        %v1161 = vld [vmem:[#allocation9 + $0xd30] sm:$0xff]
        %v1162 = vld [vmem:[#allocation9 + $0xd38] sm:$0xff]
        %v1163 = vld [vmem:[#allocation9 + $0xd40] sm:$0xff]
        %v1164 = vld [vmem:[#allocation9 + $0xd48] sm:$0xff]
        %v1165 = vld [vmem:[#allocation9 + $0xd50] sm:$0xff]
        %v1166 = vld [vmem:[#allocation9 + $0xd58] sm:$0xff]
        %v1167 = vld [vmem:[#allocation9 + $0xd60] sm:$0xff]
        %v1168 = vld [vmem:[#allocation9 + $0xd68] sm:$0xff]
        %v1169 = vld [vmem:[#allocation9 + $0xd70] sm:$0xff]
        %v1170 = vld [vmem:[#allocation9 + $0xd78] sm:$0xff]
        %v1171 = vld [vmem:[#allocation9 + $0xd80] sm:$0xff]
        %v1172 = vld [vmem:[#allocation9 + $0xd88] sm:$0xff]
        %v1173 = vld [vmem:[#allocation9 + $0xd90] sm:$0xff]
        %v1174 = vld [vmem:[#allocation9 + $0xd98] sm:$0xff]
        %v1175 = vld [vmem:[#allocation9 + $0xda0] sm:$0xff]
        %v1176 = vld [vmem:[#allocation9 + $0xda8] sm:$0xff]
        %v1177 = vld [vmem:[#allocation9 + $0xdb0] sm:$0xff]
        %v1178 = vld [vmem:[#allocation9 + $0xdb8] sm:$0xff]
        %v1179 = vld [vmem:[#allocation9 + $0xdc0] sm:$0xff]
        %v1180 = vld [vmem:[#allocation9 + $0xdc8] sm:$0xff]
        %v1181 = vld [vmem:[#allocation9 + $0xdd0] sm:$0xff]
        %v1182 = vld [vmem:[#allocation9 + $0xdd8] sm:$0xff]
        %v1183 = vld [vmem:[#allocation9 + $0xde0] sm:$0xff]
        %v1184 = vld [vmem:[#allocation9 + $0xde8] sm:$0xff]
        %v1185 = vld [vmem:[#allocation9 + $0xdf0] sm:$0xff]
        %v1186 = vld [vmem:[#allocation9 + $0xdf8] sm:$0xff]
        %v1187 = vld [vmem:[#allocation9 + $0xe00] sm:$0xff]
        %v1188 = vld [vmem:[#allocation9 + $0xe08] sm:$0xff]
        %v1189 = vld [vmem:[#allocation9 + $0xe10] sm:$0xff]
        %v1190 = vld [vmem:[#allocation9 + $0xe18] sm:$0xff]
        %v1191 = vld [vmem:[#allocation9 + $0xe20] sm:$0xff]
        %v1192 = vld [vmem:[#allocation9 + $0xe28] sm:$0xff]
        %v1193 = vld [vmem:[#allocation9 + $0xe30] sm:$0xff]
        %v1194 = vld [vmem:[#allocation9 + $0xe38] sm:$0xff]
        %v1195 = vld [vmem:[#allocation9 + $0xe40] sm:$0xff]
        %v1196 = vld [vmem:[#allocation9 + $0xe48] sm:$0xff]
        %v1197 = vld [vmem:[#allocation9 + $0xe50] sm:$0xff]
        %v1198 = vld [vmem:[#allocation9 + $0xe58] sm:$0xff]
        %v1199 = vld [vmem:[#allocation9 + $0xe60] sm:$0xff]
        %v1200 = vld [vmem:[#allocation9 + $0xe68] sm:$0xff]
        %v1201 = vld [vmem:[#allocation9 + $0xe70] sm:$0xff]
        %v1202 = vld [vmem:[#allocation9 + $0xe78] sm:$0xff]
        %v1203 = vld [vmem:[#allocation9 + $0xe80] sm:$0xff]
        %v1204 = vld [vmem:[#allocation9 + $0xe88] sm:$0xff]
        %v1205 = vld [vmem:[#allocation9 + $0xe90] sm:$0xff]
        %v1206 = vld [vmem:[#allocation9 + $0xe98] sm:$0xff]
        %v1207 = vld [vmem:[#allocation9 + $0xea0] sm:$0xff]
        %v1208 = vld [vmem:[#allocation9 + $0xea8] sm:$0xff]
        %v1209 = vld [vmem:[#allocation9 + $0xeb0] sm:$0xff]
        %v1210 = vld [vmem:[#allocation9 + $0xeb8] sm:$0xff]
        %v1211 = vld [vmem:[#allocation9 + $0xec0] sm:$0xff]
        %v1212 = vld [vmem:[#allocation9 + $0xec8] sm:$0xff]
        %v1213 = vld [vmem:[#allocation9 + $0xed0] sm:$0xff]
        %v1214 = vld [vmem:[#allocation9 + $0xed8] sm:$0xff]
        %v1215 = vld [vmem:[#allocation9 + $0xee0] sm:$0xff]
        %v1216 = vld [vmem:[#allocation9 + $0xee8] sm:$0xff]
        %v1217 = vld [vmem:[#allocation9 + $0xef0] sm:$0xff]
        %v1218 = vld [vmem:[#allocation9 + $0xef8] sm:$0xff]
        %v1219 = vld [vmem:[#allocation9 + $0xf00] sm:$0xff]
        %v1220 = vld [vmem:[#allocation9 + $0xf08] sm:$0xff]
        %v1221 = vld [vmem:[#allocation9 + $0xf10] sm:$0xff]
        %v1222 = vld [vmem:[#allocation9 + $0xf18] sm:$0xff]
        %v1223 = vld [vmem:[#allocation9 + $0xf20] sm:$0xff]
        %v1224 = vld [vmem:[#allocation9 + $0xf28] sm:$0xff]
        %v1225 = vld [vmem:[#allocation9 + $0xf30] sm:$0xff]
        %v1226 = vld [vmem:[#allocation9 + $0xf38] sm:$0xff]
        %v1227 = vld [vmem:[#allocation9 + $0xf40] sm:$0xff]
        %v1228 = vld [vmem:[#allocation9 + $0xf48] sm:$0xff]
        %v1229 = vld [vmem:[#allocation9 + $0xf50] sm:$0xff]
        %v1230 = vld [vmem:[#allocation9 + $0xf58] sm:$0xff]
        %v1231 = vld [vmem:[#allocation9 + $0xf60] sm:$0xff]
        %v1232 = vld [vmem:[#allocation9 + $0xf68] sm:$0xff]
        %v1233 = vld [vmem:[#allocation9 + $0xf70] sm:$0xff]
        %v1234 = vld [vmem:[#allocation9 + $0xf78] sm:$0xff]
        %v1235 = vld [vmem:[#allocation9 + $0xf80] sm:$0xff]
        %v1236 = vld [vmem:[#allocation9 + $0xf88] sm:$0xff]
        %v1237 = vld [vmem:[#allocation9 + $0xf90] sm:$0xff]
        %v1238 = vld [vmem:[#allocation9 + $0xf98] sm:$0xff]
        %v1239 = vld [vmem:[#allocation9 + $0xfa0] sm:$0xff]
        %v1240 = vld [vmem:[#allocation9 + $0xfa8] sm:$0xff]
        %v1241 = vld [vmem:[#allocation9 + $0xfb0] sm:$0xff]
        %v1242 = vld [vmem:[#allocation9 + $0xfb8] sm:$0xff]
        %v1243 = vld [vmem:[#allocation9 + $0xfc0] sm:$0xff]
        %v1244 = vld [vmem:[#allocation9 + $0xfc8] sm:$0xff]
        %v1245 = vld [vmem:[#allocation9 + $0xfd0] sm:$0xff]
        %v1246 = vld [vmem:[#allocation9 + $0xfd8] sm:$0xff]
        %v1247 = vld [vmem:[#allocation9 + $0xfe0] sm:$0xff]
        %v1248 = vld [vmem:[#allocation9 + $0xfe8] sm:$0xff]
        %v1249 = vld [vmem:[#allocation9 + $0xff0] sm:$0xff]
        %v1250 = vld [vmem:[#allocation9 + $0xff8] sm:$0xff]
        %v1251 = vld [vmem:[#allocation11] sm:$0xf]
        %v1253 = vlaneseq
        %v1254 = vshrl.u32 %v1253, 7
        %v1255 = vsub.s32 0, %v1254
        %v1256 = vrot.slane %v1251, %v1255
        %v1257 = vlaneseq
        %v1258 = vshrl.u32 %v1257, 7
        %v1259 = vsub.s32 1, %v1258
        %v1260 = vrot.slane %v1251, %v1259
        %v1261 = vlaneseq
        %v1262 = vshrl.u32 %v1261, 7
        %v1263 = vsub.s32 2, %v1262
        %v1264 = vrot.slane %v1251, %v1263
        %v1265 = vlaneseq
        %v1266 = vshrl.u32 %v1265, 7
        %v1267 = vsub.s32 3, %v1266
        %v1268 = vrot.slane %v1251, %v1267
        %1273 = vmatprep.subr.mxu0 %v800
        %1274 = vmatpush1.msra.mxu0 %v799
        %1275 = vmatprep.subr.mxu0 %v796
        %1276 = vmatpush1.msra.mxu0 %v795
        %1277 = vmatprep.subr.mxu0 %v792
        %1278 = vmatpush1.msra.mxu0 %v791
        %1279 = vmatprep.subr.mxu0 %v788
        %1280 = vmatpush1.msra.mxu0 %v787
        %1281 = vmatprep.subr.mxu0 %v784
        %1282 = vmatpush1.msra.mxu0 %v783
        %1283 = vmatprep.subr.mxu0 %v780
        %1284 = vmatpush1.msra.mxu0 %v779
        %1285 = vmatprep.subr.mxu0 %v776
        %1286 = vmatpush1.msra.mxu0 %v775
        %1287 = vmatprep.subr.mxu0 %v772
        %1288 = vmatpush1.msra.mxu0 %v771
        %1289 = vmatprep.subr.mxu0 %v768
        %1290 = vmatpush1.msra.mxu0 %v767
        %1291 = vmatprep.subr.mxu0 %v764
        %1292 = vmatpush1.msra.mxu0 %v763
        %1293 = vmatprep.subr.mxu0 %v760
        %1294 = vmatpush1.msra.mxu0 %v759
        %1295 = vmatprep.subr.mxu0 %v756
        %1296 = vmatpush1.msra.mxu0 %v755
        %1297 = vmatprep.subr.mxu0 %v752
        %1298 = vmatpush1.msra.mxu0 %v751
        %1299 = vmatprep.subr.mxu0 %v748
        %1300 = vmatpush1.msra.mxu0 %v747
        %1301 = vmatprep.subr.mxu0 %v744
        %1302 = vmatpush1.msra.mxu0 %v743
        %1303 = vmatprep.subr.mxu0 %v740
        %1304 = vmatpush1.msra.mxu0 %v739
        %1305 = vmatprep.subr.mxu0 %v864
        %1306 = vmatpush2.msra.mxu0 %v863
        %1307 = vmatprep.subr.mxu0 %v860
        %1308 = vmatpush2.msra.mxu0 %v859
        %1309 = vmatprep.subr.mxu0 %v856
        %1310 = vmatpush2.msra.mxu0 %v855
        %1311 = vmatprep.subr.mxu0 %v852
        %1312 = vmatpush2.msra.mxu0 %v851
        %1313 = vmatprep.subr.mxu0 %v848
        %1314 = vmatpush2.msra.mxu0 %v847
        %1315 = vmatprep.subr.mxu0 %v844
        %1316 = vmatpush2.msra.mxu0 %v843
        %1317 = vmatprep.subr.mxu0 %v840
        %1318 = vmatpush2.msra.mxu0 %v839
        %1319 = vmatprep.subr.mxu0 %v836
        %1320 = vmatpush2.msra.mxu0 %v835
        %1321 = vmatprep.subr.mxu0 %v832
        %1322 = vmatpush2.msra.mxu0 %v831
        %1323 = vmatprep.subr.mxu0 %v828
        %1324 = vmatpush2.msra.mxu0 %v827
        %1325 = vmatprep.subr.mxu0 %v824
        %1326 = vmatpush2.msra.mxu0 %v823
        %1327 = vmatprep.subr.mxu0 %v820
        %1328 = vmatpush2.msra.mxu0 %v819
        %1329 = vmatprep.subr.mxu0 %v816
        %1330 = vmatpush2.msra.mxu0 %v815
        %1331 = vmatprep.subr.mxu0 %v812
        %1332 = vmatpush2.msra.mxu0 %v811
        %1333 = vmatprep.subr.mxu0 %v808
        %1334 = vmatpush2.msra.mxu0 %v807
        %1335 = vmatprep.subr.mxu0 %v804
        %1336 = vmatpush2.msra.mxu0 %v803
        %1337 = vmatprep.mubr.f32.mxu0 %v732
        %1338 = vmatmul.mubr.f32.gmra.mxu0 %v731
        %v1339 = vpop.f32.mrf.mxu0
        %v1340 = vadd.f32 %v1256, %v1339
        %v1341 = vpop.f32.mrf.mxu0
        %v1342 = vadd.f32 %v1260, %v1341
        %1343 = vdwg.mxu0
        %1344 = vmatprep.subr.mxu0 %v928
        %1345 = vmatpush1.msra.mxu0 %v927
        %1346 = vmatprep.subr.mxu0 %v924
        %1347 = vmatpush1.msra.mxu0 %v923
        %1348 = vmatprep.subr.mxu0 %v920
        %1349 = vmatpush1.msra.mxu0 %v919
        %1350 = vmatprep.subr.mxu0 %v916
        %1351 = vmatpush1.msra.mxu0 %v915
        %1352 = vmatprep.subr.mxu0 %v912
        %1353 = vmatpush1.msra.mxu0 %v911
        %1354 = vmatprep.subr.mxu0 %v908
        %1355 = vmatpush1.msra.mxu0 %v907
        %1356 = vmatprep.subr.mxu0 %v904
        %1357 = vmatpush1.msra.mxu0 %v903
        %1358 = vmatprep.subr.mxu0 %v900
        %1359 = vmatpush1.msra.mxu0 %v899
        %1360 = vmatprep.subr.mxu0 %v896
        %1361 = vmatpush1.msra.mxu0 %v895
        %1362 = vmatprep.subr.mxu0 %v892
        %1363 = vmatpush1.msra.mxu0 %v891
        %1364 = vmatprep.subr.mxu0 %v888
        %1365 = vmatpush1.msra.mxu0 %v887
        %1366 = vmatprep.subr.mxu0 %v884
        %1367 = vmatpush1.msra.mxu0 %v883
        %1368 = vmatprep.subr.mxu0 %v880
        %1369 = vmatpush1.msra.mxu0 %v879
        %1370 = vmatprep.subr.mxu0 %v876
        %1371 = vmatpush1.msra.mxu0 %v875
        %1372 = vmatprep.subr.mxu0 %v872
        %1373 = vmatpush1.msra.mxu0 %v871
        %1374 = vmatprep.subr.mxu0 %v868
        %1375 = vmatpush1.msra.mxu0 %v867
        %1376 = vmatprep.subr.mxu0 %v992
        %1377 = vmatpush2.msra.mxu0 %v991
        %1378 = vmatprep.subr.mxu0 %v988
        %1379 = vmatpush2.msra.mxu0 %v987
        %1380 = vmatprep.subr.mxu0 %v984
        %1381 = vmatpush2.msra.mxu0 %v983
        %1382 = vmatprep.subr.mxu0 %v980
        %1383 = vmatpush2.msra.mxu0 %v979
        %1384 = vmatprep.subr.mxu0 %v976
        %1385 = vmatpush2.msra.mxu0 %v975
        %1386 = vmatprep.subr.mxu0 %v972
        %1387 = vmatpush2.msra.mxu0 %v971
        %1388 = vmatprep.subr.mxu0 %v968
        %1389 = vmatpush2.msra.mxu0 %v967
        %1390 = vmatprep.subr.mxu0 %v964
        %1391 = vmatpush2.msra.mxu0 %v963
        %1392 = vmatprep.subr.mxu0 %v960
        %1393 = vmatpush2.msra.mxu0 %v959
        %1394 = vmatprep.subr.mxu0 %v956
        %1395 = vmatpush2.msra.mxu0 %v955
        %1396 = vmatprep.subr.mxu0 %v952
        %1397 = vmatpush2.msra.mxu0 %v951
        %1398 = vmatprep.subr.mxu0 %v948
        %1399 = vmatpush2.msra.mxu0 %v947
        %1400 = vmatprep.subr.mxu0 %v944
        %1401 = vmatpush2.msra.mxu0 %v943
        %1402 = vmatprep.subr.mxu0 %v940
        %1403 = vmatpush2.msra.mxu0 %v939
        %1404 = vmatprep.subr.mxu0 %v936
        %1405 = vmatpush2.msra.mxu0 %v935
        %1406 = vmatprep.subr.mxu0 %v932
        %1407 = vmatpush2.msra.mxu0 %v931
        %1408 = vmatprep.mubr.f32.mxu0 %v734
        %1409 = vmatmul.mubr.f32.gmra.mxu0 %v733
        %v1410 = vpop.f32.mrf.mxu0
        %v1411 = vadd.f32 %v1340, %v1410
        %v1412 = vpop.f32.mrf.mxu0
        %v1413 = vadd.f32 %v1342, %v1412
        %1414 = vdwg.mxu0
        %1415 = vmatprep.subr.mxu0 %v1056
        %1416 = vmatpush1.msra.mxu0 %v1055
        %1417 = vmatprep.subr.mxu0 %v1052
        %1418 = vmatpush1.msra.mxu0 %v1051
        %1419 = vmatprep.subr.mxu0 %v1048
        %1420 = vmatpush1.msra.mxu0 %v1047
        %1421 = vmatprep.subr.mxu0 %v1044
        %1422 = vmatpush1.msra.mxu0 %v1043
        %1423 = vmatprep.subr.mxu0 %v1040
        %1424 = vmatpush1.msra.mxu0 %v1039
        %1425 = vmatprep.subr.mxu0 %v1036
        %1426 = vmatpush1.msra.mxu0 %v1035
        %1427 = vmatprep.subr.mxu0 %v1032
        %1428 = vmatpush1.msra.mxu0 %v1031
        %1429 = vmatprep.subr.mxu0 %v1028
        %1430 = vmatpush1.msra.mxu0 %v1027
        %1431 = vmatprep.subr.mxu0 %v1024
        %1432 = vmatpush1.msra.mxu0 %v1023
        %1433 = vmatprep.subr.mxu0 %v1020
        %1434 = vmatpush1.msra.mxu0 %v1019
        %1435 = vmatprep.subr.mxu0 %v1016
        %1436 = vmatpush1.msra.mxu0 %v1015
        %1437 = vmatprep.subr.mxu0 %v1012
        %1438 = vmatpush1.msra.mxu0 %v1011
        %1439 = vmatprep.subr.mxu0 %v1008
        %1440 = vmatpush1.msra.mxu0 %v1007
        %1441 = vmatprep.subr.mxu0 %v1004
        %1442 = vmatpush1.msra.mxu0 %v1003
        %1443 = vmatprep.subr.mxu0 %v1000
        %1444 = vmatpush1.msra.mxu0 %v999
        %1445 = vmatprep.subr.mxu0 %v996
        %1446 = vmatpush1.msra.mxu0 %v995
        %1447 = vmatprep.subr.mxu0 %v1120
        %1448 = vmatpush2.msra.mxu0 %v1119
        %1449 = vmatprep.subr.mxu0 %v1116
        %1450 = vmatpush2.msra.mxu0 %v1115
        %1451 = vmatprep.subr.mxu0 %v1112
        %1452 = vmatpush2.msra.mxu0 %v1111
        %1453 = vmatprep.subr.mxu0 %v1108
        %1454 = vmatpush2.msra.mxu0 %v1107
        %1455 = vmatprep.subr.mxu0 %v1104
        %1456 = vmatpush2.msra.mxu0 %v1103
        %1457 = vmatprep.subr.mxu0 %v1100
        %1458 = vmatpush2.msra.mxu0 %v1099
        %1459 = vmatprep.subr.mxu0 %v1096
        %1460 = vmatpush2.msra.mxu0 %v1095
        %1461 = vmatprep.subr.mxu0 %v1092
        %1462 = vmatpush2.msra.mxu0 %v1091
        %1463 = vmatprep.subr.mxu0 %v1088
        %1464 = vmatpush2.msra.mxu0 %v1087
        %1465 = vmatprep.subr.mxu0 %v1084
        %1466 = vmatpush2.msra.mxu0 %v1083
        %1467 = vmatprep.subr.mxu0 %v1080
        %1468 = vmatpush2.msra.mxu0 %v1079
        %1469 = vmatprep.subr.mxu0 %v1076
        %1470 = vmatpush2.msra.mxu0 %v1075
        %1471 = vmatprep.subr.mxu0 %v1072
        %1472 = vmatpush2.msra.mxu0 %v1071
        %1473 = vmatprep.subr.mxu0 %v1068
        %1474 = vmatpush2.msra.mxu0 %v1067
        %1475 = vmatprep.subr.mxu0 %v1064
        %1476 = vmatpush2.msra.mxu0 %v1063
        %1477 = vmatprep.subr.mxu0 %v1060
        %1478 = vmatpush2.msra.mxu0 %v1059
        %1479 = vmatprep.mubr.f32.mxu0 %v736
        %1480 = vmatmul.mubr.f32.gmra.mxu0 %v735
        %v1481 = vpop.f32.mrf.mxu0
        %v1482 = vadd.f32 %v1411, %v1481
        %v1483 = vpop.f32.mrf.mxu0
        %v1484 = vadd.f32 %v1413, %v1483
        %1485 = vdwg.mxu0
        %1486 = vmatprep.subr.mxu0 %v1184
        %1487 = vmatpush1.msra.mxu0 %v1183
        %1488 = vmatprep.subr.mxu0 %v1180
        %1489 = vmatpush1.msra.mxu0 %v1179
        %1490 = vmatprep.subr.mxu0 %v1176
        %1491 = vmatpush1.msra.mxu0 %v1175
        %1492 = vmatprep.subr.mxu0 %v1172
        %1493 = vmatpush1.msra.mxu0 %v1171
        %1494 = vmatprep.subr.mxu0 %v1168
        %1495 = vmatpush1.msra.mxu0 %v1167
        %1496 = vmatprep.subr.mxu0 %v1164
        %1497 = vmatpush1.msra.mxu0 %v1163
        %1498 = vmatprep.subr.mxu0 %v1160
        %1499 = vmatpush1.msra.mxu0 %v1159
        %1500 = vmatprep.subr.mxu0 %v1156
        %1501 = vmatpush1.msra.mxu0 %v1155
        %1502 = vmatprep.subr.mxu0 %v1152
        %1503 = vmatpush1.msra.mxu0 %v1151
        %1504 = vmatprep.subr.mxu0 %v1148
        %1505 = vmatpush1.msra.mxu0 %v1147
        %1506 = vmatprep.subr.mxu0 %v1144
        %1507 = vmatpush1.msra.mxu0 %v1143
        %1508 = vmatprep.subr.mxu0 %v1140
        %1509 = vmatpush1.msra.mxu0 %v1139
        %1510 = vmatprep.subr.mxu0 %v1136
        %1511 = vmatpush1.msra.mxu0 %v1135
        %1512 = vmatprep.subr.mxu0 %v1132
        %1513 = vmatpush1.msra.mxu0 %v1131
        %1514 = vmatprep.subr.mxu0 %v1128
        %1515 = vmatpush1.msra.mxu0 %v1127
        %1516 = vmatprep.subr.mxu0 %v1124
        %1517 = vmatpush1.msra.mxu0 %v1123
        %1518 = vmatprep.subr.mxu0 %v1248
        %1519 = vmatpush2.msra.mxu0 %v1247
        %1520 = vmatprep.subr.mxu0 %v1244
        %1521 = vmatpush2.msra.mxu0 %v1243
        %1522 = vmatprep.subr.mxu0 %v1240
        %1523 = vmatpush2.msra.mxu0 %v1239
        %1524 = vmatprep.subr.mxu0 %v1236
        %1525 = vmatpush2.msra.mxu0 %v1235
        %1526 = vmatprep.subr.mxu0 %v1232
        %1527 = vmatpush2.msra.mxu0 %v1231
        %1528 = vmatprep.subr.mxu0 %v1228
        %1529 = vmatpush2.msra.mxu0 %v1227
        %1530 = vmatprep.subr.mxu0 %v1224
        %1531 = vmatpush2.msra.mxu0 %v1223
        %1532 = vmatprep.subr.mxu0 %v1220
        %1533 = vmatpush2.msra.mxu0 %v1219
        %1534 = vmatprep.subr.mxu0 %v1216
        %1535 = vmatpush2.msra.mxu0 %v1215
        %1536 = vmatprep.subr.mxu0 %v1212
        %1537 = vmatpush2.msra.mxu0 %v1211
        %1538 = vmatprep.subr.mxu0 %v1208
        %1539 = vmatpush2.msra.mxu0 %v1207
        %1540 = vmatprep.subr.mxu0 %v1204
        %1541 = vmatpush2.msra.mxu0 %v1203
        %1542 = vmatprep.subr.mxu0 %v1200
        %1543 = vmatpush2.msra.mxu0 %v1199
        %1544 = vmatprep.subr.mxu0 %v1196
        %1545 = vmatpush2.msra.mxu0 %v1195
        %1546 = vmatprep.subr.mxu0 %v1192
        %1547 = vmatpush2.msra.mxu0 %v1191
        %1548 = vmatprep.subr.mxu0 %v1188
        %1549 = vmatpush2.msra.mxu0 %v1187
        %1550 = vmatprep.mubr.f32.mxu0 %v738
        %1551 = vmatmul.mubr.f32.gmra.mxu0 %v737
        %v1552 = vpop.f32.mrf.mxu0
        %v1553 = vadd.f32 %v1482, %v1552
        %v1554 = vpop.f32.mrf.mxu0
        %v1555 = vadd.f32 %v1484, %v1554
        %1556 = vdwg.mxu0
        %1557 = vmatprep.subr.mxu0 %v802
        %1558 = vmatpush1.msra.mxu0 %v801
        %1559 = vmatprep.subr.mxu0 %v798
        %1560 = vmatpush1.msra.mxu0 %v797
        %1561 = vmatprep.subr.mxu0 %v794
        %1562 = vmatpush1.msra.mxu0 %v793
        %1563 = vmatprep.subr.mxu0 %v790
        %1564 = vmatpush1.msra.mxu0 %v789
        %1565 = vmatprep.subr.mxu0 %v786
        %1566 = vmatpush1.msra.mxu0 %v785
        %1567 = vmatprep.subr.mxu0 %v782
        %1568 = vmatpush1.msra.mxu0 %v781
        %1569 = vmatprep.subr.mxu0 %v778
        %1570 = vmatpush1.msra.mxu0 %v777
        %1571 = vmatprep.subr.mxu0 %v774
        %1572 = vmatpush1.msra.mxu0 %v773
        %1573 = vmatprep.subr.mxu0 %v770
        %1574 = vmatpush1.msra.mxu0 %v769
        %1575 = vmatprep.subr.mxu0 %v766
        %1576 = vmatpush1.msra.mxu0 %v765
        %1577 = vmatprep.subr.mxu0 %v762
        %1578 = vmatpush1.msra.mxu0 %v761
        %1579 = vmatprep.subr.mxu0 %v758
        %1580 = vmatpush1.msra.mxu0 %v757
        %1581 = vmatprep.subr.mxu0 %v754
        %1582 = vmatpush1.msra.mxu0 %v753
        %1583 = vmatprep.subr.mxu0 %v750
        %1584 = vmatpush1.msra.mxu0 %v749
        %1585 = vmatprep.subr.mxu0 %v746
        %1586 = vmatpush1.msra.mxu0 %v745
        %1587 = vmatprep.subr.mxu0 %v742
        %1588 = vmatpush1.msra.mxu0 %v741
        %1589 = vmatprep.subr.mxu0 %v866
        %1590 = vmatpush2.msra.mxu0 %v865
        %1591 = vmatprep.subr.mxu0 %v862
        %1592 = vmatpush2.msra.mxu0 %v861
        %1593 = vmatprep.subr.mxu0 %v858
        %1594 = vmatpush2.msra.mxu0 %v857
        %1595 = vmatprep.subr.mxu0 %v854
        %1596 = vmatpush2.msra.mxu0 %v853
        %1597 = vmatprep.subr.mxu0 %v850
        %1598 = vmatpush2.msra.mxu0 %v849
        %1599 = vmatprep.subr.mxu0 %v846
        %1600 = vmatpush2.msra.mxu0 %v845
        %1601 = vmatprep.subr.mxu0 %v842
        %1602 = vmatpush2.msra.mxu0 %v841
        %1603 = vmatprep.subr.mxu0 %v838
        %1604 = vmatpush2.msra.mxu0 %v837
        %1605 = vmatprep.subr.mxu0 %v834
        %1606 = vmatpush2.msra.mxu0 %v833
        %1607 = vmatprep.subr.mxu0 %v830
        %1608 = vmatpush2.msra.mxu0 %v829
        %1609 = vmatprep.subr.mxu0 %v826
        %1610 = vmatpush2.msra.mxu0 %v825
        %1611 = vmatprep.subr.mxu0 %v822
        %1612 = vmatpush2.msra.mxu0 %v821
        %1613 = vmatprep.subr.mxu0 %v818
        %1614 = vmatpush2.msra.mxu0 %v817
        %1615 = vmatprep.subr.mxu0 %v814
        %1616 = vmatpush2.msra.mxu0 %v813
        %1617 = vmatprep.subr.mxu0 %v810
        %1618 = vmatpush2.msra.mxu0 %v809
        %1619 = vmatprep.subr.mxu0 %v806
        %1620 = vmatpush2.msra.mxu0 %v805
        %1621 = vmatprep.mubr.f32.mxu0 %v732
        %1622 = vmatmul.mubr.f32.gmra.mxu0 %v731
        %v1623 = vpop.f32.mrf.mxu0
        %v1624 = vadd.f32 %v1264, %v1623
        %v1625 = vpop.f32.mrf.mxu0
        %v1626 = vadd.f32 %v1268, %v1625
        %1627 = vdwg.mxu0
        %1628 = vmatprep.subr.mxu0 %v930
        %1629 = vmatpush1.msra.mxu0 %v929
        %1630 = vmatprep.subr.mxu0 %v926
        %1631 = vmatpush1.msra.mxu0 %v925
        %1632 = vmatprep.subr.mxu0 %v922
        %1633 = vmatpush1.msra.mxu0 %v921
        %1634 = vmatprep.subr.mxu0 %v918
        %1635 = vmatpush1.msra.mxu0 %v917
        %1636 = vmatprep.subr.mxu0 %v914
        %1637 = vmatpush1.msra.mxu0 %v913
        %1638 = vmatprep.subr.mxu0 %v910
        %1639 = vmatpush1.msra.mxu0 %v909
        %1640 = vmatprep.subr.mxu0 %v906
        %1641 = vmatpush1.msra.mxu0 %v905
        %1642 = vmatprep.subr.mxu0 %v902
        %1643 = vmatpush1.msra.mxu0 %v901
        %1644 = vmatprep.subr.mxu0 %v898
        %1645 = vmatpush1.msra.mxu0 %v897
        %1646 = vmatprep.subr.mxu0 %v894
        %1647 = vmatpush1.msra.mxu0 %v893
        %1648 = vmatprep.subr.mxu0 %v890
        %1649 = vmatpush1.msra.mxu0 %v889
        %1650 = vmatprep.subr.mxu0 %v886
        %1651 = vmatpush1.msra.mxu0 %v885
        %1652 = vmatprep.subr.mxu0 %v882
        %1653 = vmatpush1.msra.mxu0 %v881
        %1654 = vmatprep.subr.mxu0 %v878
        %1655 = vmatpush1.msra.mxu0 %v877
        %1656 = vmatprep.subr.mxu0 %v874
        %1657 = vmatpush1.msra.mxu0 %v873
        %1658 = vmatprep.subr.mxu0 %v870
        %1659 = vmatpush1.msra.mxu0 %v869
        %1660 = vmatprep.subr.mxu0 %v994
        %1661 = vmatpush2.msra.mxu0 %v993
        %1662 = vmatprep.subr.mxu0 %v990
        %1663 = vmatpush2.msra.mxu0 %v989
        %1664 = vmatprep.subr.mxu0 %v986
        %1665 = vmatpush2.msra.mxu0 %v985
        %1666 = vmatprep.subr.mxu0 %v982
        %1667 = vmatpush2.msra.mxu0 %v981
        %1668 = vmatprep.subr.mxu0 %v978
        %1669 = vmatpush2.msra.mxu0 %v977
        %1670 = vmatprep.subr.mxu0 %v974
        %1671 = vmatpush2.msra.mxu0 %v973
        %1672 = vmatprep.subr.mxu0 %v970
        %1673 = vmatpush2.msra.mxu0 %v969
        %1674 = vmatprep.subr.mxu0 %v966
        %1675 = vmatpush2.msra.mxu0 %v965
        %1676 = vmatprep.subr.mxu0 %v962
        %1677 = vmatpush2.msra.mxu0 %v961
        %1678 = vmatprep.subr.mxu0 %v958
        %1679 = vmatpush2.msra.mxu0 %v957
        %1680 = vmatprep.subr.mxu0 %v954
        %1681 = vmatpush2.msra.mxu0 %v953
        %1682 = vmatprep.subr.mxu0 %v950
        %1683 = vmatpush2.msra.mxu0 %v949
        %1684 = vmatprep.subr.mxu0 %v946
        %1685 = vmatpush2.msra.mxu0 %v945
        %1686 = vmatprep.subr.mxu0 %v942
        %1687 = vmatpush2.msra.mxu0 %v941
        %1688 = vmatprep.subr.mxu0 %v938
        %1689 = vmatpush2.msra.mxu0 %v937
        %1690 = vmatprep.subr.mxu0 %v934
        %1691 = vmatpush2.msra.mxu0 %v933
        %1692 = vmatprep.mubr.f32.mxu0 %v734
        %1693 = vmatmul.mubr.f32.gmra.mxu0 %v733
        %v1694 = vpop.f32.mrf.mxu0
        %v1695 = vadd.f32 %v1624, %v1694
        %v1696 = vpop.f32.mrf.mxu0
        %v1697 = vadd.f32 %v1626, %v1696
        %1698 = vdwg.mxu0
        %1699 = vmatprep.subr.mxu0 %v1058
        %1700 = vmatpush1.msra.mxu0 %v1057
        %1701 = vmatprep.subr.mxu0 %v1054
        %1702 = vmatpush1.msra.mxu0 %v1053
        %1703 = vmatprep.subr.mxu0 %v1050
        %1704 = vmatpush1.msra.mxu0 %v1049
        %1705 = vmatprep.subr.mxu0 %v1046
        %1706 = vmatpush1.msra.mxu0 %v1045
        %1707 = vmatprep.subr.mxu0 %v1042
        %1708 = vmatpush1.msra.mxu0 %v1041
        %1709 = vmatprep.subr.mxu0 %v1038
        %1710 = vmatpush1.msra.mxu0 %v1037
        %1711 = vmatprep.subr.mxu0 %v1034
        %1712 = vmatpush1.msra.mxu0 %v1033
        %1713 = vmatprep.subr.mxu0 %v1030
        %1714 = vmatpush1.msra.mxu0 %v1029
        %1715 = vmatprep.subr.mxu0 %v1026
        %1716 = vmatpush1.msra.mxu0 %v1025
        %1717 = vmatprep.subr.mxu0 %v1022
        %1718 = vmatpush1.msra.mxu0 %v1021
        %1719 = vmatprep.subr.mxu0 %v1018
        %1720 = vmatpush1.msra.mxu0 %v1017
        %1721 = vmatprep.subr.mxu0 %v1014
        %1722 = vmatpush1.msra.mxu0 %v1013
        %1723 = vmatprep.subr.mxu0 %v1010
        %1724 = vmatpush1.msra.mxu0 %v1009
        %1725 = vmatprep.subr.mxu0 %v1006
        %1726 = vmatpush1.msra.mxu0 %v1005
        %1727 = vmatprep.subr.mxu0 %v1002
        %1728 = vmatpush1.msra.mxu0 %v1001
        %1729 = vmatprep.subr.mxu0 %v998
        %1730 = vmatpush1.msra.mxu0 %v997
        %1731 = vmatprep.subr.mxu0 %v1122
        %1732 = vmatpush2.msra.mxu0 %v1121
        %1733 = vmatprep.subr.mxu0 %v1118
        %1734 = vmatpush2.msra.mxu0 %v1117
        %1735 = vmatprep.subr.mxu0 %v1114
        %1736 = vmatpush2.msra.mxu0 %v1113
        %1737 = vmatprep.subr.mxu0 %v1110
        %1738 = vmatpush2.msra.mxu0 %v1109
        %1739 = vmatprep.subr.mxu0 %v1106
        %1740 = vmatpush2.msra.mxu0 %v1105
        %1741 = vmatprep.subr.mxu0 %v1102
        %1742 = vmatpush2.msra.mxu0 %v1101
        %1743 = vmatprep.subr.mxu0 %v1098
        %1744 = vmatpush2.msra.mxu0 %v1097
        %1745 = vmatprep.subr.mxu0 %v1094
        %1746 = vmatpush2.msra.mxu0 %v1093
        %1747 = vmatprep.subr.mxu0 %v1090
        %1748 = vmatpush2.msra.mxu0 %v1089
        %1749 = vmatprep.subr.mxu0 %v1086
        %1750 = vmatpush2.msra.mxu0 %v1085
        %1751 = vmatprep.subr.mxu0 %v1082
        %1752 = vmatpush2.msra.mxu0 %v1081
        %1753 = vmatprep.subr.mxu0 %v1078
        %1754 = vmatpush2.msra.mxu0 %v1077
        %1755 = vmatprep.subr.mxu0 %v1074
        %1756 = vmatpush2.msra.mxu0 %v1073
        %1757 = vmatprep.subr.mxu0 %v1070
        %1758 = vmatpush2.msra.mxu0 %v1069
        %1759 = vmatprep.subr.mxu0 %v1066
        %1760 = vmatpush2.msra.mxu0 %v1065
        %1761 = vmatprep.subr.mxu0 %v1062
        %1762 = vmatpush2.msra.mxu0 %v1061
        %1763 = vmatprep.mubr.f32.mxu0 %v736
        %1764 = vmatmul.mubr.f32.gmra.mxu0 %v735
        %v1765 = vpop.f32.mrf.mxu0
        %v1766 = vadd.f32 %v1695, %v1765
        %v1767 = vpop.f32.mrf.mxu0
        %v1768 = vadd.f32 %v1697, %v1767
        %1769 = vdwg.mxu0
        %1770 = vmatprep.subr.mxu0 %v1186
        %1771 = vmatpush1.msra.mxu0 %v1185
        %1772 = vmatprep.subr.mxu0 %v1182
        %1773 = vmatpush1.msra.mxu0 %v1181
        %1774 = vmatprep.subr.mxu0 %v1178
        %1775 = vmatpush1.msra.mxu0 %v1177
        %1776 = vmatprep.subr.mxu0 %v1174
        %1777 = vmatpush1.msra.mxu0 %v1173
        %1778 = vmatprep.subr.mxu0 %v1170
        %1779 = vmatpush1.msra.mxu0 %v1169
        %1780 = vmatprep.subr.mxu0 %v1166
        %1781 = vmatpush1.msra.mxu0 %v1165
        %1782 = vmatprep.subr.mxu0 %v1162
        %1783 = vmatpush1.msra.mxu0 %v1161
        %1784 = vmatprep.subr.mxu0 %v1158
        %1785 = vmatpush1.msra.mxu0 %v1157
        %1786 = vmatprep.subr.mxu0 %v1154
        %1787 = vmatpush1.msra.mxu0 %v1153
        %1788 = vmatprep.subr.mxu0 %v1150
        %1789 = vmatpush1.msra.mxu0 %v1149
        %1790 = vmatprep.subr.mxu0 %v1146
        %1791 = vmatpush1.msra.mxu0 %v1145
        %1792 = vmatprep.subr.mxu0 %v1142
        %1793 = vmatpush1.msra.mxu0 %v1141
        %1794 = vmatprep.subr.mxu0 %v1138
        %1795 = vmatpush1.msra.mxu0 %v1137
        %1796 = vmatprep.subr.mxu0 %v1134
        %1797 = vmatpush1.msra.mxu0 %v1133
        %1798 = vmatprep.subr.mxu0 %v1130
        %1799 = vmatpush1.msra.mxu0 %v1129
        %1800 = vmatprep.subr.mxu0 %v1126
        %1801 = vmatpush1.msra.mxu0 %v1125
        %1802 = vmatprep.subr.mxu0 %v1250
        %1803 = vmatpush2.msra.mxu0 %v1249
        %1804 = vmatprep.subr.mxu0 %v1246
        %1805 = vmatpush2.msra.mxu0 %v1245
        %1806 = vmatprep.subr.mxu0 %v1242
        %1807 = vmatpush2.msra.mxu0 %v1241
        %1808 = vmatprep.subr.mxu0 %v1238
        %1809 = vmatpush2.msra.mxu0 %v1237
        %1810 = vmatprep.subr.mxu0 %v1234
        %1811 = vmatpush2.msra.mxu0 %v1233
        %1812 = vmatprep.subr.mxu0 %v1230
        %1813 = vmatpush2.msra.mxu0 %v1229
        %1814 = vmatprep.subr.mxu0 %v1226
        %1815 = vmatpush2.msra.mxu0 %v1225
        %1816 = vmatprep.subr.mxu0 %v1222
        %1817 = vmatpush2.msra.mxu0 %v1221
        %1818 = vmatprep.subr.mxu0 %v1218
        %1819 = vmatpush2.msra.mxu0 %v1217
        %1820 = vmatprep.subr.mxu0 %v1214
        %1821 = vmatpush2.msra.mxu0 %v1213
        %1822 = vmatprep.subr.mxu0 %v1210
        %1823 = vmatpush2.msra.mxu0 %v1209
        %1824 = vmatprep.subr.mxu0 %v1206
        %1825 = vmatpush2.msra.mxu0 %v1205
        %1826 = vmatprep.subr.mxu0 %v1202
        %1827 = vmatpush2.msra.mxu0 %v1201
        %1828 = vmatprep.subr.mxu0 %v1198
        %1829 = vmatpush2.msra.mxu0 %v1197
        %1830 = vmatprep.subr.mxu0 %v1194
        %1831 = vmatpush2.msra.mxu0 %v1193
        %1832 = vmatprep.subr.mxu0 %v1190
        %1833 = vmatpush2.msra.mxu0 %v1189
        %1834 = vmatprep.mubr.f32.mxu0 %v738
        %1835 = vmatmul.mubr.f32.gmra.mxu0 %v737
        %v1836 = vpop.f32.mrf.mxu0
        %v1837 = vadd.f32 %v1766, %v1836
        %v1838 = vpop.f32.mrf.mxu0
        %v1839 = vadd.f32 %v1768, %v1838
        %1840 = vdwg.mxu0
        %s1841 = sld [smem:[#allocation2]]
        %vm1842 = vcmp.gt.f32.partialorder %v1553, 0.0
        %vm1843 = vcmp.gt.f32.partialorder %v1555, 0.0
        %vm1844 = vcmp.gt.f32.partialorder %v1837, 0.0
        %vm1845 = vcmp.gt.f32.partialorder %v1839, 0.0
        %v1846 = vstv %s1841
        %v1847 = vmul.f32 %v1846, %v1553
        %v1848 = vmul.f32 %v1846, %v1555
        %v1849 = vmul.f32 %v1846, %v1837
        %v1850 = vmul.f32 %v1846, %v1839
        %v1851 = vsel %vm1842, %v1553, %v1847
        %v1852 = vsel %vm1843, %v1555, %v1848
        %v1853 = vsel %vm1844, %v1837, %v1849
        %v1854 = vsel %vm1845, %v1839, %v1850
        %v1855 = vld [vmem:[#allocation12] sm:$0xff]
        %v1856 = vld [vmem:[#allocation12 + $0x8] sm:$0xff]
        %v1857 = vld [vmem:[#allocation12 + $0x10] sm:$0xff]
        %v1858 = vld [vmem:[#allocation12 + $0x18] sm:$0xff]
        %v1859 = vld [vmem:[#allocation12 + $0x20] sm:$0xff]
        %v1860 = vld [vmem:[#allocation12 + $0x28] sm:$0xff]
        %v1861 = vld [vmem:[#allocation12 + $0x30] sm:$0xff]
        %v1862 = vld [vmem:[#allocation12 + $0x38] sm:$0xff]
        %v1863 = vld [vmem:[#allocation12 + $0x40] sm:$0xff]
        %v1864 = vld [vmem:[#allocation12 + $0x48] sm:$0xff]
        %v1865 = vld [vmem:[#allocation12 + $0x50] sm:$0xff]
        %v1866 = vld [vmem:[#allocation12 + $0x58] sm:$0xff]
        %v1867 = vld [vmem:[#allocation12 + $0x60] sm:$0xff]
        %v1868 = vld [vmem:[#allocation12 + $0x68] sm:$0xff]
        %v1869 = vld [vmem:[#allocation12 + $0x70] sm:$0xff]
        %v1870 = vld [vmem:[#allocation12 + $0x78] sm:$0xff]
        %v1871 = vld [vmem:[#allocation12 + $0x80] sm:$0xff]
        %v1872 = vld [vmem:[#allocation12 + $0x88] sm:$0xff]
        %v1873 = vld [vmem:[#allocation12 + $0x90] sm:$0xff]
        %v1874 = vld [vmem:[#allocation12 + $0x98] sm:$0xff]
        %v1875 = vld [vmem:[#allocation12 + $0xa0] sm:$0xff]
        %v1876 = vld [vmem:[#allocation12 + $0xa8] sm:$0xff]
        %v1877 = vld [vmem:[#allocation12 + $0xb0] sm:$0xff]
        %v1878 = vld [vmem:[#allocation12 + $0xb8] sm:$0xff]
        %v1879 = vld [vmem:[#allocation12 + $0xc0] sm:$0xff]
        %v1880 = vld [vmem:[#allocation12 + $0xc8] sm:$0xff]
        %v1881 = vld [vmem:[#allocation12 + $0xd0] sm:$0xff]
        %v1882 = vld [vmem:[#allocation12 + $0xd8] sm:$0xff]
        %v1883 = vld [vmem:[#allocation12 + $0xe0] sm:$0xff]
        %v1884 = vld [vmem:[#allocation12 + $0xe8] sm:$0xff]
        %v1885 = vld [vmem:[#allocation12 + $0xf0] sm:$0xff]
        %v1886 = vld [vmem:[#allocation12 + $0xf8] sm:$0xff]
        %v1887 = vld [vmem:[#allocation12 + $0x100] sm:$0xff]
        %v1888 = vld [vmem:[#allocation12 + $0x108] sm:$0xff]
        %v1889 = vld [vmem:[#allocation12 + $0x110] sm:$0xff]
        %v1890 = vld [vmem:[#allocation12 + $0x118] sm:$0xff]
        %v1891 = vld [vmem:[#allocation12 + $0x120] sm:$0xff]
        %v1892 = vld [vmem:[#allocation12 + $0x128] sm:$0xff]
        %v1893 = vld [vmem:[#allocation12 + $0x130] sm:$0xff]
        %v1894 = vld [vmem:[#allocation12 + $0x138] sm:$0xff]
        %v1895 = vld [vmem:[#allocation12 + $0x140] sm:$0xff]
        %v1896 = vld [vmem:[#allocation12 + $0x148] sm:$0xff]
        %v1897 = vld [vmem:[#allocation12 + $0x150] sm:$0xff]
        %v1898 = vld [vmem:[#allocation12 + $0x158] sm:$0xff]
        %v1899 = vld [vmem:[#allocation12 + $0x160] sm:$0xff]
        %v1900 = vld [vmem:[#allocation12 + $0x168] sm:$0xff]
        %v1901 = vld [vmem:[#allocation12 + $0x170] sm:$0xff]
        %v1902 = vld [vmem:[#allocation12 + $0x178] sm:$0xff]
        %v1903 = vld [vmem:[#allocation12 + $0x180] sm:$0xff]
        %v1904 = vld [vmem:[#allocation12 + $0x188] sm:$0xff]
        %v1905 = vld [vmem:[#allocation12 + $0x190] sm:$0xff]
        %v1906 = vld [vmem:[#allocation12 + $0x198] sm:$0xff]
        %v1907 = vld [vmem:[#allocation12 + $0x1a0] sm:$0xff]
        %v1908 = vld [vmem:[#allocation12 + $0x1a8] sm:$0xff]
        %v1909 = vld [vmem:[#allocation12 + $0x1b0] sm:$0xff]
        %v1910 = vld [vmem:[#allocation12 + $0x1b8] sm:$0xff]
        %v1911 = vld [vmem:[#allocation12 + $0x1c0] sm:$0xff]
        %v1912 = vld [vmem:[#allocation12 + $0x1c8] sm:$0xff]
        %v1913 = vld [vmem:[#allocation12 + $0x1d0] sm:$0xff]
        %v1914 = vld [vmem:[#allocation12 + $0x1d8] sm:$0xff]
        %v1915 = vld [vmem:[#allocation12 + $0x1e0] sm:$0xff]
        %v1916 = vld [vmem:[#allocation12 + $0x1e8] sm:$0xff]
        %v1917 = vld [vmem:[#allocation12 + $0x1f0] sm:$0xff]
        %v1918 = vld [vmem:[#allocation12 + $0x1f8] sm:$0xff]
        %v1919 = vld [vmem:[#allocation12 + $0x200] sm:$0xff]
        %v1920 = vld [vmem:[#allocation12 + $0x208] sm:$0xff]
        %v1921 = vld [vmem:[#allocation12 + $0x210] sm:$0xff]
        %v1922 = vld [vmem:[#allocation12 + $0x218] sm:$0xff]
        %v1923 = vld [vmem:[#allocation12 + $0x220] sm:$0xff]
        %v1924 = vld [vmem:[#allocation12 + $0x228] sm:$0xff]
        %v1925 = vld [vmem:[#allocation12 + $0x230] sm:$0xff]
        %v1926 = vld [vmem:[#allocation12 + $0x238] sm:$0xff]
        %v1927 = vld [vmem:[#allocation12 + $0x240] sm:$0xff]
        %v1928 = vld [vmem:[#allocation12 + $0x248] sm:$0xff]
        %v1929 = vld [vmem:[#allocation12 + $0x250] sm:$0xff]
        %v1930 = vld [vmem:[#allocation12 + $0x258] sm:$0xff]
        %v1931 = vld [vmem:[#allocation12 + $0x260] sm:$0xff]
        %v1932 = vld [vmem:[#allocation12 + $0x268] sm:$0xff]
        %v1933 = vld [vmem:[#allocation12 + $0x270] sm:$0xff]
        %v1934 = vld [vmem:[#allocation12 + $0x278] sm:$0xff]
        %v1935 = vld [vmem:[#allocation12 + $0x280] sm:$0xff]
        %v1936 = vld [vmem:[#allocation12 + $0x288] sm:$0xff]
        %v1937 = vld [vmem:[#allocation12 + $0x290] sm:$0xff]
        %v1938 = vld [vmem:[#allocation12 + $0x298] sm:$0xff]
        %v1939 = vld [vmem:[#allocation12 + $0x2a0] sm:$0xff]
        %v1940 = vld [vmem:[#allocation12 + $0x2a8] sm:$0xff]
        %v1941 = vld [vmem:[#allocation12 + $0x2b0] sm:$0xff]
        %v1942 = vld [vmem:[#allocation12 + $0x2b8] sm:$0xff]
        %v1943 = vld [vmem:[#allocation12 + $0x2c0] sm:$0xff]
        %v1944 = vld [vmem:[#allocation12 + $0x2c8] sm:$0xff]
        %v1945 = vld [vmem:[#allocation12 + $0x2d0] sm:$0xff]
        %v1946 = vld [vmem:[#allocation12 + $0x2d8] sm:$0xff]
        %v1947 = vld [vmem:[#allocation12 + $0x2e0] sm:$0xff]
        %v1948 = vld [vmem:[#allocation12 + $0x2e8] sm:$0xff]
        %v1949 = vld [vmem:[#allocation12 + $0x2f0] sm:$0xff]
        %v1950 = vld [vmem:[#allocation12 + $0x2f8] sm:$0xff]
        %v1951 = vld [vmem:[#allocation12 + $0x300] sm:$0xff]
        %v1952 = vld [vmem:[#allocation12 + $0x308] sm:$0xff]
        %v1953 = vld [vmem:[#allocation12 + $0x310] sm:$0xff]
        %v1954 = vld [vmem:[#allocation12 + $0x318] sm:$0xff]
        %v1955 = vld [vmem:[#allocation12 + $0x320] sm:$0xff]
        %v1956 = vld [vmem:[#allocation12 + $0x328] sm:$0xff]
        %v1957 = vld [vmem:[#allocation12 + $0x330] sm:$0xff]
        %v1958 = vld [vmem:[#allocation12 + $0x338] sm:$0xff]
        %v1959 = vld [vmem:[#allocation12 + $0x340] sm:$0xff]
        %v1960 = vld [vmem:[#allocation12 + $0x348] sm:$0xff]
        %v1961 = vld [vmem:[#allocation12 + $0x350] sm:$0xff]
        %v1962 = vld [vmem:[#allocation12 + $0x358] sm:$0xff]
        %v1963 = vld [vmem:[#allocation12 + $0x360] sm:$0xff]
        %v1964 = vld [vmem:[#allocation12 + $0x368] sm:$0xff]
        %v1965 = vld [vmem:[#allocation12 + $0x370] sm:$0xff]
        %v1966 = vld [vmem:[#allocation12 + $0x378] sm:$0xff]
        %v1967 = vld [vmem:[#allocation12 + $0x380] sm:$0xff]
        %v1968 = vld [vmem:[#allocation12 + $0x388] sm:$0xff]
        %v1969 = vld [vmem:[#allocation12 + $0x390] sm:$0xff]
        %v1970 = vld [vmem:[#allocation12 + $0x398] sm:$0xff]
        %v1971 = vld [vmem:[#allocation12 + $0x3a0] sm:$0xff]
        %v1972 = vld [vmem:[#allocation12 + $0x3a8] sm:$0xff]
        %v1973 = vld [vmem:[#allocation12 + $0x3b0] sm:$0xff]
        %v1974 = vld [vmem:[#allocation12 + $0x3b8] sm:$0xff]
        %v1975 = vld [vmem:[#allocation12 + $0x3c0] sm:$0xff]
        %v1976 = vld [vmem:[#allocation12 + $0x3c8] sm:$0xff]
        %v1977 = vld [vmem:[#allocation12 + $0x3d0] sm:$0xff]
        %v1978 = vld [vmem:[#allocation12 + $0x3d8] sm:$0xff]
        %v1979 = vld [vmem:[#allocation12 + $0x3e0] sm:$0xff]
        %v1980 = vld [vmem:[#allocation12 + $0x3e8] sm:$0xff]
        %v1981 = vld [vmem:[#allocation12 + $0x3f0] sm:$0xff]
        %v1982 = vld [vmem:[#allocation12 + $0x3f8] sm:$0xff]
        %v1983 = vld [vmem:[#allocation14] sm:$0x3]
        %v1985 = vlaneseq
        %v1986 = vshrl.u32 %v1985, 7
        %v1987 = vsub.s32 0, %v1986
        %v1988 = vrot.slane %v1983, %v1987
        %v1989 = vlaneseq
        %v1990 = vshrl.u32 %v1989, 7
        %v1991 = vsub.s32 1, %v1990
        %v1992 = vrot.slane %v1983, %v1991
        %1995 = vmatprep.subr.mxu0 %v1886
        %1996 = vmatpush1.msra.mxu0 %v1885
        %1997 = vmatprep.subr.mxu0 %v1884
        %1998 = vmatpush1.msra.mxu0 %v1883
        %1999 = vmatprep.subr.mxu0 %v1882
        %2000 = vmatpush1.msra.mxu0 %v1881
        %2001 = vmatprep.subr.mxu0 %v1880
        %2002 = vmatpush1.msra.mxu0 %v1879
        %2003 = vmatprep.subr.mxu0 %v1878
        %2004 = vmatpush1.msra.mxu0 %v1877
        %2005 = vmatprep.subr.mxu0 %v1876
        %2006 = vmatpush1.msra.mxu0 %v1875
        %2007 = vmatprep.subr.mxu0 %v1874
        %2008 = vmatpush1.msra.mxu0 %v1873
        %2009 = vmatprep.subr.mxu0 %v1872
        %2010 = vmatpush1.msra.mxu0 %v1871
        %2011 = vmatprep.subr.mxu0 %v1870
        %2012 = vmatpush1.msra.mxu0 %v1869
        %2013 = vmatprep.subr.mxu0 %v1868
        %2014 = vmatpush1.msra.mxu0 %v1867
        %2015 = vmatprep.subr.mxu0 %v1866
        %2016 = vmatpush1.msra.mxu0 %v1865
        %2017 = vmatprep.subr.mxu0 %v1864
        %2018 = vmatpush1.msra.mxu0 %v1863
        %2019 = vmatprep.subr.mxu0 %v1862
        %2020 = vmatpush1.msra.mxu0 %v1861
        %2021 = vmatprep.subr.mxu0 %v1860
        %2022 = vmatpush1.msra.mxu0 %v1859
        %2023 = vmatprep.subr.mxu0 %v1858
        %2024 = vmatpush1.msra.mxu0 %v1857
        %2025 = vmatprep.subr.mxu0 %v1856
        %2026 = vmatpush1.msra.mxu0 %v1855
        %2027 = vmatprep.subr.mxu0 %v1918
        %2028 = vmatpush2.msra.mxu0 %v1917
        %2029 = vmatprep.subr.mxu0 %v1916
        %2030 = vmatpush2.msra.mxu0 %v1915
        %2031 = vmatprep.subr.mxu0 %v1914
        %2032 = vmatpush2.msra.mxu0 %v1913
        %2033 = vmatprep.subr.mxu0 %v1912
        %2034 = vmatpush2.msra.mxu0 %v1911
        %2035 = vmatprep.subr.mxu0 %v1910
        %2036 = vmatpush2.msra.mxu0 %v1909
        %2037 = vmatprep.subr.mxu0 %v1908
        %2038 = vmatpush2.msra.mxu0 %v1907
        %2039 = vmatprep.subr.mxu0 %v1906
        %2040 = vmatpush2.msra.mxu0 %v1905
        %2041 = vmatprep.subr.mxu0 %v1904
        %2042 = vmatpush2.msra.mxu0 %v1903
        %2043 = vmatprep.subr.mxu0 %v1902
        %2044 = vmatpush2.msra.mxu0 %v1901
        %2045 = vmatprep.subr.mxu0 %v1900
        %2046 = vmatpush2.msra.mxu0 %v1899
        %2047 = vmatprep.subr.mxu0 %v1898
        %2048 = vmatpush2.msra.mxu0 %v1897
        %2049 = vmatprep.subr.mxu0 %v1896
        %2050 = vmatpush2.msra.mxu0 %v1895
        %2051 = vmatprep.subr.mxu0 %v1894
        %2052 = vmatpush2.msra.mxu0 %v1893
        %2053 = vmatprep.subr.mxu0 %v1892
        %2054 = vmatpush2.msra.mxu0 %v1891
        %2055 = vmatprep.subr.mxu0 %v1890
        %2056 = vmatpush2.msra.mxu0 %v1889
        %2057 = vmatprep.subr.mxu0 %v1888
        %2058 = vmatpush2.msra.mxu0 %v1887
        %2059 = vmatprep.mubr.f32.mxu0 %v1852
        %2060 = vmatmul.mubr.f32.gmra.mxu0 %v1851
        %v2061 = vpop.f32.mrf.mxu0
        %v2062 = vadd.f32 %v1988, %v2061
        %v2063 = vpop.f32.mrf.mxu0
        %v2064 = vadd.f32 %v1992, %v2063
        %2065 = vdwg.mxu0
        %2066 = vmatprep.subr.mxu0 %v1950
        %2067 = vmatpush1.msra.mxu0 %v1949
        %2068 = vmatprep.subr.mxu0 %v1948
        %2069 = vmatpush1.msra.mxu0 %v1947
        %2070 = vmatprep.subr.mxu0 %v1946
        %2071 = vmatpush1.msra.mxu0 %v1945
        %2072 = vmatprep.subr.mxu0 %v1944
        %2073 = vmatpush1.msra.mxu0 %v1943
        %2074 = vmatprep.subr.mxu0 %v1942
        %2075 = vmatpush1.msra.mxu0 %v1941
        %2076 = vmatprep.subr.mxu0 %v1940
        %2077 = vmatpush1.msra.mxu0 %v1939
        %2078 = vmatprep.subr.mxu0 %v1938
        %2079 = vmatpush1.msra.mxu0 %v1937
        %2080 = vmatprep.subr.mxu0 %v1936
        %2081 = vmatpush1.msra.mxu0 %v1935
        %2082 = vmatprep.subr.mxu0 %v1934
        %2083 = vmatpush1.msra.mxu0 %v1933
        %2084 = vmatprep.subr.mxu0 %v1932
        %2085 = vmatpush1.msra.mxu0 %v1931
        %2086 = vmatprep.subr.mxu0 %v1930
        %2087 = vmatpush1.msra.mxu0 %v1929
        %2088 = vmatprep.subr.mxu0 %v1928
        %2089 = vmatpush1.msra.mxu0 %v1927
        %2090 = vmatprep.subr.mxu0 %v1926
        %2091 = vmatpush1.msra.mxu0 %v1925
        %2092 = vmatprep.subr.mxu0 %v1924
        %2093 = vmatpush1.msra.mxu0 %v1923
        %2094 = vmatprep.subr.mxu0 %v1922
        %2095 = vmatpush1.msra.mxu0 %v1921
        %2096 = vmatprep.subr.mxu0 %v1920
        %2097 = vmatpush1.msra.mxu0 %v1919
        %2098 = vmatprep.subr.mxu0 %v1982
        %2099 = vmatpush2.msra.mxu0 %v1981
        %2100 = vmatprep.subr.mxu0 %v1980
        %2101 = vmatpush2.msra.mxu0 %v1979
        %2102 = vmatprep.subr.mxu0 %v1978
        %2103 = vmatpush2.msra.mxu0 %v1977
        %2104 = vmatprep.subr.mxu0 %v1976
        %2105 = vmatpush2.msra.mxu0 %v1975
        %2106 = vmatprep.subr.mxu0 %v1974
        %2107 = vmatpush2.msra.mxu0 %v1973
        %2108 = vmatprep.subr.mxu0 %v1972
        %2109 = vmatpush2.msra.mxu0 %v1971
        %2110 = vmatprep.subr.mxu0 %v1970
        %2111 = vmatpush2.msra.mxu0 %v1969
        %2112 = vmatprep.subr.mxu0 %v1968
        %2113 = vmatpush2.msra.mxu0 %v1967
        %2114 = vmatprep.subr.mxu0 %v1966
        %2115 = vmatpush2.msra.mxu0 %v1965
        %2116 = vmatprep.subr.mxu0 %v1964
        %2117 = vmatpush2.msra.mxu0 %v1963
        %2118 = vmatprep.subr.mxu0 %v1962
        %2119 = vmatpush2.msra.mxu0 %v1961
        %2120 = vmatprep.subr.mxu0 %v1960
        %2121 = vmatpush2.msra.mxu0 %v1959
        %2122 = vmatprep.subr.mxu0 %v1958
        %2123 = vmatpush2.msra.mxu0 %v1957
        %2124 = vmatprep.subr.mxu0 %v1956
        %2125 = vmatpush2.msra.mxu0 %v1955
        %2126 = vmatprep.subr.mxu0 %v1954
        %2127 = vmatpush2.msra.mxu0 %v1953
        %2128 = vmatprep.subr.mxu0 %v1952
        %2129 = vmatpush2.msra.mxu0 %v1951
        %2130 = vmatprep.mubr.f32.mxu0 %v1854
        %2131 = vmatmul.mubr.f32.gmra.mxu0 %v1853
        %v2132 = vpop.f32.mrf.mxu0
        %v2133 = vadd.f32 %v2062, %v2132
        %v2134 = vpop.f32.mrf.mxu0
        %v2135 = vadd.f32 %v2064, %v2134
        %2136 = vdwg.mxu0
        %s2137 = sld [smem:[#allocation3]]
        %vm2138 = vcmp.gt.f32.partialorder %v2133, 0.0
        %vm2139 = vcmp.gt.f32.partialorder %v2135, 0.0
        %v2140 = vstv %s2137
        %v2141 = vmul.f32 %v2140, %v2133
        %v2142 = vmul.f32 %v2140, %v2135
        %v2143 = vsel %vm2138, %v2133, %v2141
        %v2144 = vsel %vm2139, %v2135, %v2142
        %v2145 = vld [vmem:[#allocation15] sm:$0xff]
        %v2146 = vld [vmem:[#allocation15 + $0x8] sm:$0xff]
        %v2147 = vld [vmem:[#allocation15 + $0x10] sm:$0xff]
        %v2148 = vld [vmem:[#allocation15 + $0x18] sm:$0xff]
        %v2149 = vld [vmem:[#allocation15 + $0x20] sm:$0xff]
        %v2150 = vld [vmem:[#allocation15 + $0x28] sm:$0xff]
        %v2151 = vld [vmem:[#allocation15 + $0x30] sm:$0xff]
        %v2152 = vld [vmem:[#allocation15 + $0x38] sm:$0xff]
        %v2153 = vld [vmem:[#allocation15 + $0x40] sm:$0xff]
        %v2154 = vld [vmem:[#allocation15 + $0x48] sm:$0xff]
        %v2155 = vld [vmem:[#allocation15 + $0x50] sm:$0xff]
        %v2156 = vld [vmem:[#allocation15 + $0x58] sm:$0xff]
        %v2157 = vld [vmem:[#allocation15 + $0x60] sm:$0xff]
        %v2158 = vld [vmem:[#allocation15 + $0x68] sm:$0xff]
        %v2159 = vld [vmem:[#allocation15 + $0x70] sm:$0xff]
        %v2160 = vld [vmem:[#allocation15 + $0x78] sm:$0xff]
        %v2161 = vld [vmem:[#allocation15 + $0x80] sm:$0xff]
        %v2162 = vld [vmem:[#allocation15 + $0x88] sm:$0xff]
        %v2163 = vld [vmem:[#allocation15 + $0x90] sm:$0xff]
        %v2164 = vld [vmem:[#allocation15 + $0x98] sm:$0xff]
        %v2165 = vld [vmem:[#allocation15 + $0xa0] sm:$0xff]
        %v2166 = vld [vmem:[#allocation15 + $0xa8] sm:$0xff]
        %v2167 = vld [vmem:[#allocation15 + $0xb0] sm:$0xff]
        %v2168 = vld [vmem:[#allocation15 + $0xb8] sm:$0xff]
        %v2169 = vld [vmem:[#allocation15 + $0xc0] sm:$0xff]
        %v2170 = vld [vmem:[#allocation15 + $0xc8] sm:$0xff]
        %v2171 = vld [vmem:[#allocation15 + $0xd0] sm:$0xff]
        %v2172 = vld [vmem:[#allocation15 + $0xd8] sm:$0xff]
        %v2173 = vld [vmem:[#allocation15 + $0xe0] sm:$0xff]
        %v2174 = vld [vmem:[#allocation15 + $0xe8] sm:$0xff]
        %v2175 = vld [vmem:[#allocation15 + $0xf0] sm:$0xff]
        %v2176 = vld [vmem:[#allocation15 + $0xf8] sm:$0xff]
        %v2177 = vld [vmem:[#allocation17] sm:$0x1]
        %v2179 = vlaneseq
        %v2180 = vshrl.u32 %v2179, 7
        %v2181 = vsub.s32 0, %v2180
        %v2182 = vrot.slane %v2177, %v2181
        %2184 = vmatprep.subr.mxu0 0.0
        %2185 = vmatpush1.msra.mxu0 %v2160
        %2186 = vmatprep.subr.mxu0 0.0
        %2187 = vmatpush1.msra.mxu0 %v2159
        %2188 = vmatprep.subr.mxu0 0.0
        %2189 = vmatpush1.msra.mxu0 %v2158
        %2190 = vmatprep.subr.mxu0 0.0
        %2191 = vmatpush1.msra.mxu0 %v2157
        %2192 = vmatprep.subr.mxu0 0.0
        %2193 = vmatpush1.msra.mxu0 %v2156
        %2194 = vmatprep.subr.mxu0 0.0
        %2195 = vmatpush1.msra.mxu0 %v2155
        %2196 = vmatprep.subr.mxu0 0.0
        %2197 = vmatpush1.msra.mxu0 %v2154
        %2198 = vmatprep.subr.mxu0 0.0
        %2199 = vmatpush1.msra.mxu0 %v2153
        %2200 = vmatprep.subr.mxu0 0.0
        %2201 = vmatpush1.msra.mxu0 %v2152
        %2202 = vmatprep.subr.mxu0 0.0
        %2203 = vmatpush1.msra.mxu0 %v2151
        %2204 = vmatprep.subr.mxu0 0.0
        %2205 = vmatpush1.msra.mxu0 %v2150
        %2206 = vmatprep.subr.mxu0 0.0
        %2207 = vmatpush1.msra.mxu0 %v2149
        %2208 = vmatprep.subr.mxu0 0.0
        %2209 = vmatpush1.msra.mxu0 %v2148
        %2210 = vmatprep.subr.mxu0 0.0
        %2211 = vmatpush1.msra.mxu0 %v2147
        %2212 = vmatprep.subr.mxu0 0.0
        %2213 = vmatpush1.msra.mxu0 %v2146
        %2214 = vmatprep.subr.mxu0 0.0
        %2215 = vmatpush1.msra.mxu0 %v2145
        %2216 = vmatprep.subr.mxu0 0.0
        %2217 = vmatpush2.msra.mxu0 %v2176
        %2218 = vmatprep.subr.mxu0 0.0
        %2219 = vmatpush2.msra.mxu0 %v2175
        %2220 = vmatprep.subr.mxu0 0.0
        %2221 = vmatpush2.msra.mxu0 %v2174
        %2222 = vmatprep.subr.mxu0 0.0
        %2223 = vmatpush2.msra.mxu0 %v2173
        %2224 = vmatprep.subr.mxu0 0.0
        %2225 = vmatpush2.msra.mxu0 %v2172
        %2226 = vmatprep.subr.mxu0 0.0
        %2227 = vmatpush2.msra.mxu0 %v2171
        %2228 = vmatprep.subr.mxu0 0.0
        %2229 = vmatpush2.msra.mxu0 %v2170
        %2230 = vmatprep.subr.mxu0 0.0
        %2231 = vmatpush2.msra.mxu0 %v2169
        %2232 = vmatprep.subr.mxu0 0.0
        %2233 = vmatpush2.msra.mxu0 %v2168
        %2234 = vmatprep.subr.mxu0 0.0
        %2235 = vmatpush2.msra.mxu0 %v2167
        %2236 = vmatprep.subr.mxu0 0.0
        %2237 = vmatpush2.msra.mxu0 %v2166
        %2238 = vmatprep.subr.mxu0 0.0
        %2239 = vmatpush2.msra.mxu0 %v2165
        %2240 = vmatprep.subr.mxu0 0.0
        %2241 = vmatpush2.msra.mxu0 %v2164
        %2242 = vmatprep.subr.mxu0 0.0
        %2243 = vmatpush2.msra.mxu0 %v2163
        %2244 = vmatprep.subr.mxu0 0.0
        %2245 = vmatpush2.msra.mxu0 %v2162
        %2246 = vmatprep.subr.mxu0 0.0
        %2247 = vmatpush2.msra.mxu0 %v2161
        %2248 = vmatprep.mubr.f32.mxu0 %v2144
        %2249 = vmatmul.mubr.f32.gmra.mxu0 %v2143
        %v2250 = vpop.f32.mrf.mxu0
        %v2251 = vadd.f32 %v2182, %v2250
        %v2252 = vpop.f32.mrf.mxu0
        %2253 = vdwg.mxu0
        %v2254 = vld [vmem:[#allocation18] sm:$0xff]
        %v2255 = vld [vmem:[#allocation18 + $0x8] sm:$0xff]
        %v2256 = vld [vmem:[#allocation18 + $0x10] sm:$0xff]
        %v2257 = vld [vmem:[#allocation18 + $0x18] sm:$0xff]
        %v2258 = vld [vmem:[#allocation18 + $0x20] sm:$0xff]
        %v2259 = vld [vmem:[#allocation18 + $0x28] sm:$0xff]
        %v2260 = vld [vmem:[#allocation18 + $0x30] sm:$0xff]
        %v2261 = vld [vmem:[#allocation18 + $0x38] sm:$0xff]
        %v2262 = vld [vmem:[#allocation18 + $0x40] sm:$0xff]
        %v2263 = vld [vmem:[#allocation18 + $0x48] sm:$0xff]
        %v2264 = vld [vmem:[#allocation18 + $0x50] sm:$0xff]
        %v2265 = vld [vmem:[#allocation18 + $0x58] sm:$0xff]
        %v2266 = vld [vmem:[#allocation18 + $0x60] sm:$0xff]
        %v2267 = vld [vmem:[#allocation18 + $0x68] sm:$0xff]
        %v2268 = vld [vmem:[#allocation18 + $0x70] sm:$0xff]
        %v2269 = vld [vmem:[#allocation18 + $0x78] sm:$0xff]
        %v2270 = vld [vmem:[#allocation18 + $0x80] sm:$0xff]
        %v2271 = vld [vmem:[#allocation18 + $0x88] sm:$0xff]
        %v2272 = vld [vmem:[#allocation18 + $0x90] sm:$0xff]
        %v2273 = vld [vmem:[#allocation18 + $0x98] sm:$0xff]
        %v2274 = vld [vmem:[#allocation18 + $0xa0] sm:$0xff]
        %v2275 = vld [vmem:[#allocation18 + $0xa8] sm:$0xff]
        %v2276 = vld [vmem:[#allocation18 + $0xb0] sm:$0xff]
        %v2277 = vld [vmem:[#allocation18 + $0xb8] sm:$0xff]
        %v2278 = vld [vmem:[#allocation18 + $0xc0] sm:$0xff]
        %v2279 = vld [vmem:[#allocation18 + $0xc8] sm:$0xff]
        %v2280 = vld [vmem:[#allocation18 + $0xd0] sm:$0xff]
        %v2281 = vld [vmem:[#allocation18 + $0xd8] sm:$0xff]
        %v2282 = vld [vmem:[#allocation18 + $0xe0] sm:$0xff]
        %v2283 = vld [vmem:[#allocation18 + $0xe8] sm:$0xff]
        %v2284 = vld [vmem:[#allocation18 + $0xf0] sm:$0xff]
        %v2285 = vld [vmem:[#allocation18 + $0xf8] sm:$0xff]
        %v2286 = vld [vmem:[#allocation20] sm:$0x3]
        %v2288 = vlaneseq
        %v2289 = vshrl.u32 %v2288, 7
        %v2290 = vsub.s32 0, %v2289
        %v2291 = vrot.slane %v2286, %v2290
        %v2292 = vlaneseq
        %v2293 = vshrl.u32 %v2292, 7
        %v2294 = vsub.s32 1, %v2293
        %v2295 = vrot.slane %v2286, %v2294
        %2298 = vmatprep.subr.mxu0 %v2285
        %2299 = vmatpush1.msra.mxu0 %v2284
        %2300 = vmatprep.subr.mxu0 %v2283
        %2301 = vmatpush1.msra.mxu0 %v2282
        %2302 = vmatprep.subr.mxu0 %v2281
        %2303 = vmatpush1.msra.mxu0 %v2280
        %2304 = vmatprep.subr.mxu0 %v2279
        %2305 = vmatpush1.msra.mxu0 %v2278
        %2306 = vmatprep.subr.mxu0 %v2277
        %2307 = vmatpush1.msra.mxu0 %v2276
        %2308 = vmatprep.subr.mxu0 %v2275
        %2309 = vmatpush1.msra.mxu0 %v2274
        %2310 = vmatprep.subr.mxu0 %v2273
        %2311 = vmatpush1.msra.mxu0 %v2272
        %2312 = vmatprep.subr.mxu0 %v2271
        %2313 = vmatpush1.msra.mxu0 %v2270
        %2314 = vmatprep.subr.mxu0 %v2269
        %2315 = vmatpush1.msra.mxu0 %v2268
        %2316 = vmatprep.subr.mxu0 %v2267
        %2317 = vmatpush1.msra.mxu0 %v2266
        %2318 = vmatprep.subr.mxu0 %v2265
        %2319 = vmatpush1.msra.mxu0 %v2264
        %2320 = vmatprep.subr.mxu0 %v2263
        %2321 = vmatpush1.msra.mxu0 %v2262
        %2322 = vmatprep.subr.mxu0 %v2261
        %2323 = vmatpush1.msra.mxu0 %v2260
        %2324 = vmatprep.subr.mxu0 %v2259
        %2325 = vmatpush1.msra.mxu0 %v2258
        %2326 = vmatprep.subr.mxu0 %v2257
        %2327 = vmatpush1.msra.mxu0 %v2256
        %2328 = vmatprep.subr.mxu0 %v2255
        %2329 = vmatpush1.msra.mxu0 %v2254
        %2330 = vmatprep.subr.mxu0 0.0
        %2331 = vmatpush2.msra.mxu0 0.0
        %2332 = vmatprep.subr.mxu0 0.0
        %2333 = vmatpush2.msra.mxu0 0.0
        %2334 = vmatprep.subr.mxu0 0.0
        %2335 = vmatpush2.msra.mxu0 0.0
        %2336 = vmatprep.subr.mxu0 0.0
        %2337 = vmatpush2.msra.mxu0 0.0
        %2338 = vmatprep.subr.mxu0 0.0
        %2339 = vmatpush2.msra.mxu0 0.0
        %2340 = vmatprep.subr.mxu0 0.0
        %2341 = vmatpush2.msra.mxu0 0.0
        %2342 = vmatprep.subr.mxu0 0.0
        %2343 = vmatpush2.msra.mxu0 0.0
        %2344 = vmatprep.subr.mxu0 0.0
        %2345 = vmatpush2.msra.mxu0 0.0
        %2346 = vmatprep.subr.mxu0 0.0
        %2347 = vmatpush2.msra.mxu0 0.0
        %2348 = vmatprep.subr.mxu0 0.0
        %2349 = vmatpush2.msra.mxu0 0.0
        %2350 = vmatprep.subr.mxu0 0.0
        %2351 = vmatpush2.msra.mxu0 0.0
        %2352 = vmatprep.subr.mxu0 0.0
        %2353 = vmatpush2.msra.mxu0 0.0
        %2354 = vmatprep.subr.mxu0 0.0
        %2355 = vmatpush2.msra.mxu0 0.0
        %2356 = vmatprep.subr.mxu0 0.0
        %2357 = vmatpush2.msra.mxu0 0.0
        %2358 = vmatprep.subr.mxu0 0.0
        %2359 = vmatpush2.msra.mxu0 0.0
        %2360 = vmatprep.subr.mxu0 0.0
        %2361 = vmatpush2.msra.mxu0 0.0
        %2362 = vmatprep.mubr.f32.mxu0 0.0
        %2363 = vmatmul.mubr.f32.gmra.mxu0 %v2251
        %v2364 = vpop.f32.mrf.mxu0
        %v2365 = vadd.f32 %v2291, %v2364
        %v2366 = vpop.f32.mrf.mxu0
        %v2367 = vadd.f32 %v2295, %v2366
        %2368 = vdwg.mxu0
        %s2369 = sld [smem:[#allocation4]]
        %vm2370 = vcmp.gt.f32.partialorder %v2365, 0.0
        %vm2371 = vcmp.gt.f32.partialorder %v2367, 0.0
        %v2372 = vstv %s2369
        %v2373 = vmul.f32 %v2372, %v2365
        %v2374 = vmul.f32 %v2372, %v2367
        %v2375 = vsel %vm2370, %v2365, %v2373
        %v2376 = vsel %vm2371, %v2367, %v2374
        %v2377 = vld [vmem:[#allocation21] sm:$0xff]
        %v2378 = vld [vmem:[#allocation21 + $0x8] sm:$0xff]
        %v2379 = vld [vmem:[#allocation21 + $0x10] sm:$0xff]
        %v2380 = vld [vmem:[#allocation21 + $0x18] sm:$0xff]
        %v2381 = vld [vmem:[#allocation21 + $0x20] sm:$0xff]
        %v2382 = vld [vmem:[#allocation21 + $0x28] sm:$0xff]
        %v2383 = vld [vmem:[#allocation21 + $0x30] sm:$0xff]
        %v2384 = vld [vmem:[#allocation21 + $0x38] sm:$0xff]
        %v2385 = vld [vmem:[#allocation21 + $0x40] sm:$0xff]
        %v2386 = vld [vmem:[#allocation21 + $0x48] sm:$0xff]
        %v2387 = vld [vmem:[#allocation21 + $0x50] sm:$0xff]
        %v2388 = vld [vmem:[#allocation21 + $0x58] sm:$0xff]
        %v2389 = vld [vmem:[#allocation21 + $0x60] sm:$0xff]
        %v2390 = vld [vmem:[#allocation21 + $0x68] sm:$0xff]
        %v2391 = vld [vmem:[#allocation21 + $0x70] sm:$0xff]
        %v2392 = vld [vmem:[#allocation21 + $0x78] sm:$0xff]
        %v2393 = vld [vmem:[#allocation21 + $0x80] sm:$0xff]
        %v2394 = vld [vmem:[#allocation21 + $0x88] sm:$0xff]
        %v2395 = vld [vmem:[#allocation21 + $0x90] sm:$0xff]
        %v2396 = vld [vmem:[#allocation21 + $0x98] sm:$0xff]
        %v2397 = vld [vmem:[#allocation21 + $0xa0] sm:$0xff]
        %v2398 = vld [vmem:[#allocation21 + $0xa8] sm:$0xff]
        %v2399 = vld [vmem:[#allocation21 + $0xb0] sm:$0xff]
        %v2400 = vld [vmem:[#allocation21 + $0xb8] sm:$0xff]
        %v2401 = vld [vmem:[#allocation21 + $0xc0] sm:$0xff]
        %v2402 = vld [vmem:[#allocation21 + $0xc8] sm:$0xff]
        %v2403 = vld [vmem:[#allocation21 + $0xd0] sm:$0xff]
        %v2404 = vld [vmem:[#allocation21 + $0xd8] sm:$0xff]
        %v2405 = vld [vmem:[#allocation21 + $0xe0] sm:$0xff]
        %v2406 = vld [vmem:[#allocation21 + $0xe8] sm:$0xff]
        %v2407 = vld [vmem:[#allocation21 + $0xf0] sm:$0xff]
        %v2408 = vld [vmem:[#allocation21 + $0xf8] sm:$0xff]
        %v2409 = vld [vmem:[#allocation21 + $0x100] sm:$0xff]
        %v2410 = vld [vmem:[#allocation21 + $0x108] sm:$0xff]
        %v2411 = vld [vmem:[#allocation21 + $0x110] sm:$0xff]
        %v2412 = vld [vmem:[#allocation21 + $0x118] sm:$0xff]
        %v2413 = vld [vmem:[#allocation21 + $0x120] sm:$0xff]
        %v2414 = vld [vmem:[#allocation21 + $0x128] sm:$0xff]
        %v2415 = vld [vmem:[#allocation21 + $0x130] sm:$0xff]
        %v2416 = vld [vmem:[#allocation21 + $0x138] sm:$0xff]
        %v2417 = vld [vmem:[#allocation21 + $0x140] sm:$0xff]
        %v2418 = vld [vmem:[#allocation21 + $0x148] sm:$0xff]
        %v2419 = vld [vmem:[#allocation21 + $0x150] sm:$0xff]
        %v2420 = vld [vmem:[#allocation21 + $0x158] sm:$0xff]
        %v2421 = vld [vmem:[#allocation21 + $0x160] sm:$0xff]
        %v2422 = vld [vmem:[#allocation21 + $0x168] sm:$0xff]
        %v2423 = vld [vmem:[#allocation21 + $0x170] sm:$0xff]
        %v2424 = vld [vmem:[#allocation21 + $0x178] sm:$0xff]
        %v2425 = vld [vmem:[#allocation21 + $0x180] sm:$0xff]
        %v2426 = vld [vmem:[#allocation21 + $0x188] sm:$0xff]
        %v2427 = vld [vmem:[#allocation21 + $0x190] sm:$0xff]
        %v2428 = vld [vmem:[#allocation21 + $0x198] sm:$0xff]
        %v2429 = vld [vmem:[#allocation21 + $0x1a0] sm:$0xff]
        %v2430 = vld [vmem:[#allocation21 + $0x1a8] sm:$0xff]
        %v2431 = vld [vmem:[#allocation21 + $0x1b0] sm:$0xff]
        %v2432 = vld [vmem:[#allocation21 + $0x1b8] sm:$0xff]
        %v2433 = vld [vmem:[#allocation21 + $0x1c0] sm:$0xff]
        %v2434 = vld [vmem:[#allocation21 + $0x1c8] sm:$0xff]
        %v2435 = vld [vmem:[#allocation21 + $0x1d0] sm:$0xff]
        %v2436 = vld [vmem:[#allocation21 + $0x1d8] sm:$0xff]
        %v2437 = vld [vmem:[#allocation21 + $0x1e0] sm:$0xff]
        %v2438 = vld [vmem:[#allocation21 + $0x1e8] sm:$0xff]
        %v2439 = vld [vmem:[#allocation21 + $0x1f0] sm:$0xff]
        %v2440 = vld [vmem:[#allocation21 + $0x1f8] sm:$0xff]
        %v2441 = vld [vmem:[#allocation21 + $0x200] sm:$0xff]
        %v2442 = vld [vmem:[#allocation21 + $0x208] sm:$0xff]
        %v2443 = vld [vmem:[#allocation21 + $0x210] sm:$0xff]
        %v2444 = vld [vmem:[#allocation21 + $0x218] sm:$0xff]
        %v2445 = vld [vmem:[#allocation21 + $0x220] sm:$0xff]
        %v2446 = vld [vmem:[#allocation21 + $0x228] sm:$0xff]
        %v2447 = vld [vmem:[#allocation21 + $0x230] sm:$0xff]
        %v2448 = vld [vmem:[#allocation21 + $0x238] sm:$0xff]
        %v2449 = vld [vmem:[#allocation21 + $0x240] sm:$0xff]
        %v2450 = vld [vmem:[#allocation21 + $0x248] sm:$0xff]
        %v2451 = vld [vmem:[#allocation21 + $0x250] sm:$0xff]
        %v2452 = vld [vmem:[#allocation21 + $0x258] sm:$0xff]
        %v2453 = vld [vmem:[#allocation21 + $0x260] sm:$0xff]
        %v2454 = vld [vmem:[#allocation21 + $0x268] sm:$0xff]
        %v2455 = vld [vmem:[#allocation21 + $0x270] sm:$0xff]
        %v2456 = vld [vmem:[#allocation21 + $0x278] sm:$0xff]
        %v2457 = vld [vmem:[#allocation21 + $0x280] sm:$0xff]
        %v2458 = vld [vmem:[#allocation21 + $0x288] sm:$0xff]
        %v2459 = vld [vmem:[#allocation21 + $0x290] sm:$0xff]
        %v2460 = vld [vmem:[#allocation21 + $0x298] sm:$0xff]
        %v2461 = vld [vmem:[#allocation21 + $0x2a0] sm:$0xff]
        %v2462 = vld [vmem:[#allocation21 + $0x2a8] sm:$0xff]
        %v2463 = vld [vmem:[#allocation21 + $0x2b0] sm:$0xff]
        %v2464 = vld [vmem:[#allocation21 + $0x2b8] sm:$0xff]
        %v2465 = vld [vmem:[#allocation21 + $0x2c0] sm:$0xff]
        %v2466 = vld [vmem:[#allocation21 + $0x2c8] sm:$0xff]
        %v2467 = vld [vmem:[#allocation21 + $0x2d0] sm:$0xff]
        %v2468 = vld [vmem:[#allocation21 + $0x2d8] sm:$0xff]
        %v2469 = vld [vmem:[#allocation21 + $0x2e0] sm:$0xff]
        %v2470 = vld [vmem:[#allocation21 + $0x2e8] sm:$0xff]
        %v2471 = vld [vmem:[#allocation21 + $0x2f0] sm:$0xff]
        %v2472 = vld [vmem:[#allocation21 + $0x2f8] sm:$0xff]
        %v2473 = vld [vmem:[#allocation21 + $0x300] sm:$0xff]
        %v2474 = vld [vmem:[#allocation21 + $0x308] sm:$0xff]
        %v2475 = vld [vmem:[#allocation21 + $0x310] sm:$0xff]
        %v2476 = vld [vmem:[#allocation21 + $0x318] sm:$0xff]
        %v2477 = vld [vmem:[#allocation21 + $0x320] sm:$0xff]
        %v2478 = vld [vmem:[#allocation21 + $0x328] sm:$0xff]
        %v2479 = vld [vmem:[#allocation21 + $0x330] sm:$0xff]
        %v2480 = vld [vmem:[#allocation21 + $0x338] sm:$0xff]
        %v2481 = vld [vmem:[#allocation21 + $0x340] sm:$0xff]
        %v2482 = vld [vmem:[#allocation21 + $0x348] sm:$0xff]
        %v2483 = vld [vmem:[#allocation21 + $0x350] sm:$0xff]
        %v2484 = vld [vmem:[#allocation21 + $0x358] sm:$0xff]
        %v2485 = vld [vmem:[#allocation21 + $0x360] sm:$0xff]
        %v2486 = vld [vmem:[#allocation21 + $0x368] sm:$0xff]
        %v2487 = vld [vmem:[#allocation21 + $0x370] sm:$0xff]
        %v2488 = vld [vmem:[#allocation21 + $0x378] sm:$0xff]
        %v2489 = vld [vmem:[#allocation21 + $0x380] sm:$0xff]
        %v2490 = vld [vmem:[#allocation21 + $0x388] sm:$0xff]
        %v2491 = vld [vmem:[#allocation21 + $0x390] sm:$0xff]
        %v2492 = vld [vmem:[#allocation21 + $0x398] sm:$0xff]
        %v2493 = vld [vmem:[#allocation21 + $0x3a0] sm:$0xff]
        %v2494 = vld [vmem:[#allocation21 + $0x3a8] sm:$0xff]
        %v2495 = vld [vmem:[#allocation21 + $0x3b0] sm:$0xff]
        %v2496 = vld [vmem:[#allocation21 + $0x3b8] sm:$0xff]
        %v2497 = vld [vmem:[#allocation21 + $0x3c0] sm:$0xff]
        %v2498 = vld [vmem:[#allocation21 + $0x3c8] sm:$0xff]
        %v2499 = vld [vmem:[#allocation21 + $0x3d0] sm:$0xff]
        %v2500 = vld [vmem:[#allocation21 + $0x3d8] sm:$0xff]
        %v2501 = vld [vmem:[#allocation21 + $0x3e0] sm:$0xff]
        %v2502 = vld [vmem:[#allocation21 + $0x3e8] sm:$0xff]
        %v2503 = vld [vmem:[#allocation21 + $0x3f0] sm:$0xff]
        %v2504 = vld [vmem:[#allocation21 + $0x3f8] sm:$0xff]
        %v2505 = vld [vmem:[#allocation23] sm:$0xf]
        %v2507 = vlaneseq
        %v2508 = vshrl.u32 %v2507, 7
        %v2509 = vsub.s32 0, %v2508
        %v2510 = vrot.slane %v2505, %v2509
        %v2511 = vlaneseq
        %v2512 = vshrl.u32 %v2511, 7
        %v2513 = vsub.s32 1, %v2512
        %v2514 = vrot.slane %v2505, %v2513
        %v2515 = vlaneseq
        %v2516 = vshrl.u32 %v2515, 7
        %v2517 = vsub.s32 2, %v2516
        %v2518 = vrot.slane %v2505, %v2517
        %v2519 = vlaneseq
        %v2520 = vshrl.u32 %v2519, 7
        %v2521 = vsub.s32 3, %v2520
        %v2522 = vrot.slane %v2505, %v2521
        %2527 = vmatprep.subr.mxu0 %v2438
        %2528 = vmatpush1.msra.mxu0 %v2437
        %2529 = vmatprep.subr.mxu0 %v2434
        %2530 = vmatpush1.msra.mxu0 %v2433
        %2531 = vmatprep.subr.mxu0 %v2430
        %2532 = vmatpush1.msra.mxu0 %v2429
        %2533 = vmatprep.subr.mxu0 %v2426
        %2534 = vmatpush1.msra.mxu0 %v2425
        %2535 = vmatprep.subr.mxu0 %v2422
        %2536 = vmatpush1.msra.mxu0 %v2421
        %2537 = vmatprep.subr.mxu0 %v2418
        %2538 = vmatpush1.msra.mxu0 %v2417
        %2539 = vmatprep.subr.mxu0 %v2414
        %2540 = vmatpush1.msra.mxu0 %v2413
        %2541 = vmatprep.subr.mxu0 %v2410
        %2542 = vmatpush1.msra.mxu0 %v2409
        %2543 = vmatprep.subr.mxu0 %v2406
        %2544 = vmatpush1.msra.mxu0 %v2405
        %2545 = vmatprep.subr.mxu0 %v2402
        %2546 = vmatpush1.msra.mxu0 %v2401
        %2547 = vmatprep.subr.mxu0 %v2398
        %2548 = vmatpush1.msra.mxu0 %v2397
        %2549 = vmatprep.subr.mxu0 %v2394
        %2550 = vmatpush1.msra.mxu0 %v2393
        %2551 = vmatprep.subr.mxu0 %v2390
        %2552 = vmatpush1.msra.mxu0 %v2389
        %2553 = vmatprep.subr.mxu0 %v2386
        %2554 = vmatpush1.msra.mxu0 %v2385
        %2555 = vmatprep.subr.mxu0 %v2382
        %2556 = vmatpush1.msra.mxu0 %v2381
        %2557 = vmatprep.subr.mxu0 %v2378
        %2558 = vmatpush1.msra.mxu0 %v2377
        %2559 = vmatprep.subr.mxu0 %v2502
        %2560 = vmatpush2.msra.mxu0 %v2501
        %2561 = vmatprep.subr.mxu0 %v2498
        %2562 = vmatpush2.msra.mxu0 %v2497
        %2563 = vmatprep.subr.mxu0 %v2494
        %2564 = vmatpush2.msra.mxu0 %v2493
        %2565 = vmatprep.subr.mxu0 %v2490
        %2566 = vmatpush2.msra.mxu0 %v2489
        %2567 = vmatprep.subr.mxu0 %v2486
        %2568 = vmatpush2.msra.mxu0 %v2485
        %2569 = vmatprep.subr.mxu0 %v2482
        %2570 = vmatpush2.msra.mxu0 %v2481
        %2571 = vmatprep.subr.mxu0 %v2478
        %2572 = vmatpush2.msra.mxu0 %v2477
        %2573 = vmatprep.subr.mxu0 %v2474
        %2574 = vmatpush2.msra.mxu0 %v2473
        %2575 = vmatprep.subr.mxu0 %v2470
        %2576 = vmatpush2.msra.mxu0 %v2469
        %2577 = vmatprep.subr.mxu0 %v2466
        %2578 = vmatpush2.msra.mxu0 %v2465
        %2579 = vmatprep.subr.mxu0 %v2462
        %2580 = vmatpush2.msra.mxu0 %v2461
        %2581 = vmatprep.subr.mxu0 %v2458
        %2582 = vmatpush2.msra.mxu0 %v2457
        %2583 = vmatprep.subr.mxu0 %v2454
        %2584 = vmatpush2.msra.mxu0 %v2453
        %2585 = vmatprep.subr.mxu0 %v2450
        %2586 = vmatpush2.msra.mxu0 %v2449
        %2587 = vmatprep.subr.mxu0 %v2446
        %2588 = vmatpush2.msra.mxu0 %v2445
        %2589 = vmatprep.subr.mxu0 %v2442
        %2590 = vmatpush2.msra.mxu0 %v2441
        %2591 = vmatprep.mubr.f32.mxu0 %v2376
        %2592 = vmatmul.mubr.f32.gmra.mxu0 %v2375
        %v2593 = vpop.f32.mrf.mxu0
        %v2594 = vadd.f32 %v2510, %v2593
        %v2595 = vpop.f32.mrf.mxu0
        %v2596 = vadd.f32 %v2514, %v2595
        %2597 = vdwg.mxu0
        %2598 = vmatprep.subr.mxu0 %v2440
        %2599 = vmatpush1.msra.mxu0 %v2439
        %2600 = vmatprep.subr.mxu0 %v2436
        %2601 = vmatpush1.msra.mxu0 %v2435
        %2602 = vmatprep.subr.mxu0 %v2432
        %2603 = vmatpush1.msra.mxu0 %v2431
        %2604 = vmatprep.subr.mxu0 %v2428
        %2605 = vmatpush1.msra.mxu0 %v2427
        %2606 = vmatprep.subr.mxu0 %v2424
        %2607 = vmatpush1.msra.mxu0 %v2423
        %2608 = vmatprep.subr.mxu0 %v2420
        %2609 = vmatpush1.msra.mxu0 %v2419
        %2610 = vmatprep.subr.mxu0 %v2416
        %2611 = vmatpush1.msra.mxu0 %v2415
        %2612 = vmatprep.subr.mxu0 %v2412
        %2613 = vmatpush1.msra.mxu0 %v2411
        %2614 = vmatprep.subr.mxu0 %v2408
        %2615 = vmatpush1.msra.mxu0 %v2407
        %2616 = vmatprep.subr.mxu0 %v2404
        %2617 = vmatpush1.msra.mxu0 %v2403
        %2618 = vmatprep.subr.mxu0 %v2400
        %2619 = vmatpush1.msra.mxu0 %v2399
        %2620 = vmatprep.subr.mxu0 %v2396
        %2621 = vmatpush1.msra.mxu0 %v2395
        %2622 = vmatprep.subr.mxu0 %v2392
        %2623 = vmatpush1.msra.mxu0 %v2391
        %2624 = vmatprep.subr.mxu0 %v2388
        %2625 = vmatpush1.msra.mxu0 %v2387
        %2626 = vmatprep.subr.mxu0 %v2384
        %2627 = vmatpush1.msra.mxu0 %v2383
        %2628 = vmatprep.subr.mxu0 %v2380
        %2629 = vmatpush1.msra.mxu0 %v2379
        %2630 = vmatprep.subr.mxu0 %v2504
        %2631 = vmatpush2.msra.mxu0 %v2503
        %2632 = vmatprep.subr.mxu0 %v2500
        %2633 = vmatpush2.msra.mxu0 %v2499
        %2634 = vmatprep.subr.mxu0 %v2496
        %2635 = vmatpush2.msra.mxu0 %v2495
        %2636 = vmatprep.subr.mxu0 %v2492
        %2637 = vmatpush2.msra.mxu0 %v2491
        %2638 = vmatprep.subr.mxu0 %v2488
        %2639 = vmatpush2.msra.mxu0 %v2487
        %2640 = vmatprep.subr.mxu0 %v2484
        %2641 = vmatpush2.msra.mxu0 %v2483
        %2642 = vmatprep.subr.mxu0 %v2480
        %2643 = vmatpush2.msra.mxu0 %v2479
        %2644 = vmatprep.subr.mxu0 %v2476
        %2645 = vmatpush2.msra.mxu0 %v2475
        %2646 = vmatprep.subr.mxu0 %v2472
        %2647 = vmatpush2.msra.mxu0 %v2471
        %2648 = vmatprep.subr.mxu0 %v2468
        %2649 = vmatpush2.msra.mxu0 %v2467
        %2650 = vmatprep.subr.mxu0 %v2464
        %2651 = vmatpush2.msra.mxu0 %v2463
        %2652 = vmatprep.subr.mxu0 %v2460
        %2653 = vmatpush2.msra.mxu0 %v2459
        %2654 = vmatprep.subr.mxu0 %v2456
        %2655 = vmatpush2.msra.mxu0 %v2455
        %2656 = vmatprep.subr.mxu0 %v2452
        %2657 = vmatpush2.msra.mxu0 %v2451
        %2658 = vmatprep.subr.mxu0 %v2448
        %2659 = vmatpush2.msra.mxu0 %v2447
        %2660 = vmatprep.subr.mxu0 %v2444
        %2661 = vmatpush2.msra.mxu0 %v2443
        %2662 = vmatprep.mubr.f32.mxu0 %v2376
        %2663 = vmatmul.mubr.f32.gmra.mxu0 %v2375
        %v2664 = vpop.f32.mrf.mxu0
        %v2665 = vadd.f32 %v2518, %v2664
        %v2666 = vpop.f32.mrf.mxu0
        %v2667 = vadd.f32 %v2522, %v2666
        %2668 = vdwg.mxu0
        %s2669 = sld [smem:[#allocation5]]
        %vm2670 = vcmp.gt.f32.partialorder %v2594, 0.0
        %vm2671 = vcmp.gt.f32.partialorder %v2596, 0.0
        %vm2672 = vcmp.gt.f32.partialorder %v2665, 0.0
        %vm2673 = vcmp.gt.f32.partialorder %v2667, 0.0
        %v2674 = vstv %s2669
        %v2675 = vmul.f32 %v2674, %v2594
        %v2676 = vmul.f32 %v2674, %v2596
        %v2677 = vmul.f32 %v2674, %v2665
        %v2678 = vmul.f32 %v2674, %v2667
        %v2679 = vsel %vm2670, %v2594, %v2675
        %v2680 = vsel %vm2671, %v2596, %v2676
        %v2681 = vsel %vm2672, %v2665, %v2677
        %v2682 = vsel %vm2673, %v2667, %v2678
        %v2683 = vld [vmem:[#allocation24] sm:$0xff]
        %v2684 = vld [vmem:[#allocation24 + $0x8] sm:$0xff]
        %v2685 = vld [vmem:[#allocation24 + $0x10] sm:$0xff]
        %v2686 = vld [vmem:[#allocation24 + $0x18] sm:$0xff]
        %v2687 = vld [vmem:[#allocation24 + $0x20] sm:$0xff]
        %v2688 = vld [vmem:[#allocation24 + $0x28] sm:$0xff]
        %v2689 = vld [vmem:[#allocation24 + $0x30] sm:$0xff]
        %v2690 = vld [vmem:[#allocation24 + $0x38] sm:$0xff]
        %v2691 = vld [vmem:[#allocation24 + $0x40] sm:$0xff]
        %v2692 = vld [vmem:[#allocation24 + $0x48] sm:$0xff]
        %v2693 = vld [vmem:[#allocation24 + $0x50] sm:$0xff]
        %v2694 = vld [vmem:[#allocation24 + $0x58] sm:$0xff]
        %v2695 = vld [vmem:[#allocation24 + $0x60] sm:$0xff]
        %v2696 = vld [vmem:[#allocation24 + $0x68] sm:$0xff]
        %v2697 = vld [vmem:[#allocation24 + $0x70] sm:$0xff]
        %v2698 = vld [vmem:[#allocation24 + $0x78] sm:$0xff]
        %v2699 = vld [vmem:[#allocation24 + $0x80] sm:$0xff]
        %v2700 = vld [vmem:[#allocation24 + $0x88] sm:$0xff]
        %v2701 = vld [vmem:[#allocation24 + $0x90] sm:$0xff]
        %v2702 = vld [vmem:[#allocation24 + $0x98] sm:$0xff]
        %v2703 = vld [vmem:[#allocation24 + $0xa0] sm:$0xff]
        %v2704 = vld [vmem:[#allocation24 + $0xa8] sm:$0xff]
        %v2705 = vld [vmem:[#allocation24 + $0xb0] sm:$0xff]
        %v2706 = vld [vmem:[#allocation24 + $0xb8] sm:$0xff]
        %v2707 = vld [vmem:[#allocation24 + $0xc0] sm:$0xff]
        %v2708 = vld [vmem:[#allocation24 + $0xc8] sm:$0xff]
        %v2709 = vld [vmem:[#allocation24 + $0xd0] sm:$0xff]
        %v2710 = vld [vmem:[#allocation24 + $0xd8] sm:$0xff]
        %v2711 = vld [vmem:[#allocation24 + $0xe0] sm:$0xff]
        %v2712 = vld [vmem:[#allocation24 + $0xe8] sm:$0xff]
        %v2713 = vld [vmem:[#allocation24 + $0xf0] sm:$0xff]
        %v2714 = vld [vmem:[#allocation24 + $0xf8] sm:$0xff]
        %v2715 = vld [vmem:[#allocation24 + $0x100] sm:$0xff]
        %v2716 = vld [vmem:[#allocation24 + $0x108] sm:$0xff]
        %v2717 = vld [vmem:[#allocation24 + $0x110] sm:$0xff]
        %v2718 = vld [vmem:[#allocation24 + $0x118] sm:$0xff]
        %v2719 = vld [vmem:[#allocation24 + $0x120] sm:$0xff]
        %v2720 = vld [vmem:[#allocation24 + $0x128] sm:$0xff]
        %v2721 = vld [vmem:[#allocation24 + $0x130] sm:$0xff]
        %v2722 = vld [vmem:[#allocation24 + $0x138] sm:$0xff]
        %v2723 = vld [vmem:[#allocation24 + $0x140] sm:$0xff]
        %v2724 = vld [vmem:[#allocation24 + $0x148] sm:$0xff]
        %v2725 = vld [vmem:[#allocation24 + $0x150] sm:$0xff]
        %v2726 = vld [vmem:[#allocation24 + $0x158] sm:$0xff]
        %v2727 = vld [vmem:[#allocation24 + $0x160] sm:$0xff]
        %v2728 = vld [vmem:[#allocation24 + $0x168] sm:$0xff]
        %v2729 = vld [vmem:[#allocation24 + $0x170] sm:$0xff]
        %v2730 = vld [vmem:[#allocation24 + $0x178] sm:$0xff]
        %v2731 = vld [vmem:[#allocation24 + $0x180] sm:$0xff]
        %v2732 = vld [vmem:[#allocation24 + $0x188] sm:$0xff]
        %v2733 = vld [vmem:[#allocation24 + $0x190] sm:$0xff]
        %v2734 = vld [vmem:[#allocation24 + $0x198] sm:$0xff]
        %v2735 = vld [vmem:[#allocation24 + $0x1a0] sm:$0xff]
        %v2736 = vld [vmem:[#allocation24 + $0x1a8] sm:$0xff]
        %v2737 = vld [vmem:[#allocation24 + $0x1b0] sm:$0xff]
        %v2738 = vld [vmem:[#allocation24 + $0x1b8] sm:$0xff]
        %v2739 = vld [vmem:[#allocation24 + $0x1c0] sm:$0xff]
        %v2740 = vld [vmem:[#allocation24 + $0x1c8] sm:$0xff]
        %v2741 = vld [vmem:[#allocation24 + $0x1d0] sm:$0xff]
        %v2742 = vld [vmem:[#allocation24 + $0x1d8] sm:$0xff]
        %v2743 = vld [vmem:[#allocation24 + $0x1e0] sm:$0xff]
        %v2744 = vld [vmem:[#allocation24 + $0x1e8] sm:$0xff]
        %v2745 = vld [vmem:[#allocation24 + $0x1f0] sm:$0xff]
        %v2746 = vld [vmem:[#allocation24 + $0x1f8] sm:$0xff]
        %v2747 = vld [vmem:[#allocation24 + $0x200] sm:$0xff]
        %v2748 = vld [vmem:[#allocation24 + $0x208] sm:$0xff]
        %v2749 = vld [vmem:[#allocation24 + $0x210] sm:$0xff]
        %v2750 = vld [vmem:[#allocation24 + $0x218] sm:$0xff]
        %v2751 = vld [vmem:[#allocation24 + $0x220] sm:$0xff]
        %v2752 = vld [vmem:[#allocation24 + $0x228] sm:$0xff]
        %v2753 = vld [vmem:[#allocation24 + $0x230] sm:$0xff]
        %v2754 = vld [vmem:[#allocation24 + $0x238] sm:$0xff]
        %v2755 = vld [vmem:[#allocation24 + $0x240] sm:$0xff]
        %v2756 = vld [vmem:[#allocation24 + $0x248] sm:$0xff]
        %v2757 = vld [vmem:[#allocation24 + $0x250] sm:$0xff]
        %v2758 = vld [vmem:[#allocation24 + $0x258] sm:$0xff]
        %v2759 = vld [vmem:[#allocation24 + $0x260] sm:$0xff]
        %v2760 = vld [vmem:[#allocation24 + $0x268] sm:$0xff]
        %v2761 = vld [vmem:[#allocation24 + $0x270] sm:$0xff]
        %v2762 = vld [vmem:[#allocation24 + $0x278] sm:$0xff]
        %v2763 = vld [vmem:[#allocation24 + $0x280] sm:$0xff]
        %v2764 = vld [vmem:[#allocation24 + $0x288] sm:$0xff]
        %v2765 = vld [vmem:[#allocation24 + $0x290] sm:$0xff]
        %v2766 = vld [vmem:[#allocation24 + $0x298] sm:$0xff]
        %v2767 = vld [vmem:[#allocation24 + $0x2a0] sm:$0xff]
        %v2768 = vld [vmem:[#allocation24 + $0x2a8] sm:$0xff]
        %v2769 = vld [vmem:[#allocation24 + $0x2b0] sm:$0xff]
        %v2770 = vld [vmem:[#allocation24 + $0x2b8] sm:$0xff]
        %v2771 = vld [vmem:[#allocation24 + $0x2c0] sm:$0xff]
        %v2772 = vld [vmem:[#allocation24 + $0x2c8] sm:$0xff]
        %v2773 = vld [vmem:[#allocation24 + $0x2d0] sm:$0xff]
        %v2774 = vld [vmem:[#allocation24 + $0x2d8] sm:$0xff]
        %v2775 = vld [vmem:[#allocation24 + $0x2e0] sm:$0xff]
        %v2776 = vld [vmem:[#allocation24 + $0x2e8] sm:$0xff]
        %v2777 = vld [vmem:[#allocation24 + $0x2f0] sm:$0xff]
        %v2778 = vld [vmem:[#allocation24 + $0x2f8] sm:$0xff]
        %v2779 = vld [vmem:[#allocation24 + $0x300] sm:$0xff]
        %v2780 = vld [vmem:[#allocation24 + $0x308] sm:$0xff]
        %v2781 = vld [vmem:[#allocation24 + $0x310] sm:$0xff]
        %v2782 = vld [vmem:[#allocation24 + $0x318] sm:$0xff]
        %v2783 = vld [vmem:[#allocation24 + $0x320] sm:$0xff]
        %v2784 = vld [vmem:[#allocation24 + $0x328] sm:$0xff]
        %v2785 = vld [vmem:[#allocation24 + $0x330] sm:$0xff]
        %v2786 = vld [vmem:[#allocation24 + $0x338] sm:$0xff]
        %v2787 = vld [vmem:[#allocation24 + $0x340] sm:$0xff]
        %v2788 = vld [vmem:[#allocation24 + $0x348] sm:$0xff]
        %v2789 = vld [vmem:[#allocation24 + $0x350] sm:$0xff]
        %v2790 = vld [vmem:[#allocation24 + $0x358] sm:$0xff]
        %v2791 = vld [vmem:[#allocation24 + $0x360] sm:$0xff]
        %v2792 = vld [vmem:[#allocation24 + $0x368] sm:$0xff]
        %v2793 = vld [vmem:[#allocation24 + $0x370] sm:$0xff]
        %v2794 = vld [vmem:[#allocation24 + $0x378] sm:$0xff]
        %v2795 = vld [vmem:[#allocation24 + $0x380] sm:$0xff]
        %v2796 = vld [vmem:[#allocation24 + $0x388] sm:$0xff]
        %v2797 = vld [vmem:[#allocation24 + $0x390] sm:$0xff]
        %v2798 = vld [vmem:[#allocation24 + $0x398] sm:$0xff]
        %v2799 = vld [vmem:[#allocation24 + $0x3a0] sm:$0xff]
        %v2800 = vld [vmem:[#allocation24 + $0x3a8] sm:$0xff]
        %v2801 = vld [vmem:[#allocation24 + $0x3b0] sm:$0xff]
        %v2802 = vld [vmem:[#allocation24 + $0x3b8] sm:$0xff]
        %v2803 = vld [vmem:[#allocation24 + $0x3c0] sm:$0xff]
        %v2804 = vld [vmem:[#allocation24 + $0x3c8] sm:$0xff]
        %v2805 = vld [vmem:[#allocation24 + $0x3d0] sm:$0xff]
        %v2806 = vld [vmem:[#allocation24 + $0x3d8] sm:$0xff]
        %v2807 = vld [vmem:[#allocation24 + $0x3e0] sm:$0xff]
        %v2808 = vld [vmem:[#allocation24 + $0x3e8] sm:$0xff]
        %v2809 = vld [vmem:[#allocation24 + $0x3f0] sm:$0xff]
        %v2810 = vld [vmem:[#allocation24 + $0x3f8] sm:$0xff]
        %v2811 = vld [vmem:[#allocation24 + $0x400] sm:$0xff]
        %v2812 = vld [vmem:[#allocation24 + $0x408] sm:$0xff]
        %v2813 = vld [vmem:[#allocation24 + $0x410] sm:$0xff]
        %v2814 = vld [vmem:[#allocation24 + $0x418] sm:$0xff]
        %v2815 = vld [vmem:[#allocation24 + $0x420] sm:$0xff]
        %v2816 = vld [vmem:[#allocation24 + $0x428] sm:$0xff]
        %v2817 = vld [vmem:[#allocation24 + $0x430] sm:$0xff]
        %v2818 = vld [vmem:[#allocation24 + $0x438] sm:$0xff]
        %v2819 = vld [vmem:[#allocation24 + $0x440] sm:$0xff]
        %v2820 = vld [vmem:[#allocation24 + $0x448] sm:$0xff]
        %v2821 = vld [vmem:[#allocation24 + $0x450] sm:$0xff]
        %v2822 = vld [vmem:[#allocation24 + $0x458] sm:$0xff]
        %v2823 = vld [vmem:[#allocation24 + $0x460] sm:$0xff]
        %v2824 = vld [vmem:[#allocation24 + $0x468] sm:$0xff]
        %v2825 = vld [vmem:[#allocation24 + $0x470] sm:$0xff]
        %v2826 = vld [vmem:[#allocation24 + $0x478] sm:$0xff]
        %v2827 = vld [vmem:[#allocation24 + $0x480] sm:$0xff]
        %v2828 = vld [vmem:[#allocation24 + $0x488] sm:$0xff]
        %v2829 = vld [vmem:[#allocation24 + $0x490] sm:$0xff]
        %v2830 = vld [vmem:[#allocation24 + $0x498] sm:$0xff]
        %v2831 = vld [vmem:[#allocation24 + $0x4a0] sm:$0xff]
        %v2832 = vld [vmem:[#allocation24 + $0x4a8] sm:$0xff]
        %v2833 = vld [vmem:[#allocation24 + $0x4b0] sm:$0xff]
        %v2834 = vld [vmem:[#allocation24 + $0x4b8] sm:$0xff]
        %v2835 = vld [vmem:[#allocation24 + $0x4c0] sm:$0xff]
        %v2836 = vld [vmem:[#allocation24 + $0x4c8] sm:$0xff]
        %v2837 = vld [vmem:[#allocation24 + $0x4d0] sm:$0xff]
        %v2838 = vld [vmem:[#allocation24 + $0x4d8] sm:$0xff]
        %v2839 = vld [vmem:[#allocation24 + $0x4e0] sm:$0xff]
        %v2840 = vld [vmem:[#allocation24 + $0x4e8] sm:$0xff]
        %v2841 = vld [vmem:[#allocation24 + $0x4f0] sm:$0xff]
        %v2842 = vld [vmem:[#allocation24 + $0x4f8] sm:$0xff]
        %v2843 = vld [vmem:[#allocation24 + $0x500] sm:$0xff]
        %v2844 = vld [vmem:[#allocation24 + $0x508] sm:$0xff]
        %v2845 = vld [vmem:[#allocation24 + $0x510] sm:$0xff]
        %v2846 = vld [vmem:[#allocation24 + $0x518] sm:$0xff]
        %v2847 = vld [vmem:[#allocation24 + $0x520] sm:$0xff]
        %v2848 = vld [vmem:[#allocation24 + $0x528] sm:$0xff]
        %v2849 = vld [vmem:[#allocation24 + $0x530] sm:$0xff]
        %v2850 = vld [vmem:[#allocation24 + $0x538] sm:$0xff]
        %v2851 = vld [vmem:[#allocation24 + $0x540] sm:$0xff]
        %v2852 = vld [vmem:[#allocation24 + $0x548] sm:$0xff]
        %v2853 = vld [vmem:[#allocation24 + $0x550] sm:$0xff]
        %v2854 = vld [vmem:[#allocation24 + $0x558] sm:$0xff]
        %v2855 = vld [vmem:[#allocation24 + $0x560] sm:$0xff]
        %v2856 = vld [vmem:[#allocation24 + $0x568] sm:$0xff]
        %v2857 = vld [vmem:[#allocation24 + $0x570] sm:$0xff]
        %v2858 = vld [vmem:[#allocation24 + $0x578] sm:$0xff]
        %v2859 = vld [vmem:[#allocation24 + $0x580] sm:$0xff]
        %v2860 = vld [vmem:[#allocation24 + $0x588] sm:$0xff]
        %v2861 = vld [vmem:[#allocation24 + $0x590] sm:$0xff]
        %v2862 = vld [vmem:[#allocation24 + $0x598] sm:$0xff]
        %v2863 = vld [vmem:[#allocation24 + $0x5a0] sm:$0xff]
        %v2864 = vld [vmem:[#allocation24 + $0x5a8] sm:$0xff]
        %v2865 = vld [vmem:[#allocation24 + $0x5b0] sm:$0xff]
        %v2866 = vld [vmem:[#allocation24 + $0x5b8] sm:$0xff]
        %v2867 = vld [vmem:[#allocation24 + $0x5c0] sm:$0xff]
        %v2868 = vld [vmem:[#allocation24 + $0x5c8] sm:$0xff]
        %v2869 = vld [vmem:[#allocation24 + $0x5d0] sm:$0xff]
        %v2870 = vld [vmem:[#allocation24 + $0x5d8] sm:$0xff]
        %v2871 = vld [vmem:[#allocation24 + $0x5e0] sm:$0xff]
        %v2872 = vld [vmem:[#allocation24 + $0x5e8] sm:$0xff]
        %v2873 = vld [vmem:[#allocation24 + $0x5f0] sm:$0xff]
        %v2874 = vld [vmem:[#allocation24 + $0x5f8] sm:$0xff]
        %v2875 = vld [vmem:[#allocation24 + $0x600] sm:$0xff]
        %v2876 = vld [vmem:[#allocation24 + $0x608] sm:$0xff]
        %v2877 = vld [vmem:[#allocation24 + $0x610] sm:$0xff]
        %v2878 = vld [vmem:[#allocation24 + $0x618] sm:$0xff]
        %v2879 = vld [vmem:[#allocation24 + $0x620] sm:$0xff]
        %v2880 = vld [vmem:[#allocation24 + $0x628] sm:$0xff]
        %v2881 = vld [vmem:[#allocation24 + $0x630] sm:$0xff]
        %v2882 = vld [vmem:[#allocation24 + $0x638] sm:$0xff]
        %v2883 = vld [vmem:[#allocation24 + $0x640] sm:$0xff]
        %v2884 = vld [vmem:[#allocation24 + $0x648] sm:$0xff]
        %v2885 = vld [vmem:[#allocation24 + $0x650] sm:$0xff]
        %v2886 = vld [vmem:[#allocation24 + $0x658] sm:$0xff]
        %v2887 = vld [vmem:[#allocation24 + $0x660] sm:$0xff]
        %v2888 = vld [vmem:[#allocation24 + $0x668] sm:$0xff]
        %v2889 = vld [vmem:[#allocation24 + $0x670] sm:$0xff]
        %v2890 = vld [vmem:[#allocation24 + $0x678] sm:$0xff]
        %v2891 = vld [vmem:[#allocation24 + $0x680] sm:$0xff]
        %v2892 = vld [vmem:[#allocation24 + $0x688] sm:$0xff]
        %v2893 = vld [vmem:[#allocation24 + $0x690] sm:$0xff]
        %v2894 = vld [vmem:[#allocation24 + $0x698] sm:$0xff]
        %v2895 = vld [vmem:[#allocation24 + $0x6a0] sm:$0xff]
        %v2896 = vld [vmem:[#allocation24 + $0x6a8] sm:$0xff]
        %v2897 = vld [vmem:[#allocation24 + $0x6b0] sm:$0xff]
        %v2898 = vld [vmem:[#allocation24 + $0x6b8] sm:$0xff]
        %v2899 = vld [vmem:[#allocation24 + $0x6c0] sm:$0xff]
        %v2900 = vld [vmem:[#allocation24 + $0x6c8] sm:$0xff]
        %v2901 = vld [vmem:[#allocation24 + $0x6d0] sm:$0xff]
        %v2902 = vld [vmem:[#allocation24 + $0x6d8] sm:$0xff]
        %v2903 = vld [vmem:[#allocation24 + $0x6e0] sm:$0xff]
        %v2904 = vld [vmem:[#allocation24 + $0x6e8] sm:$0xff]
        %v2905 = vld [vmem:[#allocation24 + $0x6f0] sm:$0xff]
        %v2906 = vld [vmem:[#allocation24 + $0x6f8] sm:$0xff]
        %v2907 = vld [vmem:[#allocation24 + $0x700] sm:$0xff]
        %v2908 = vld [vmem:[#allocation24 + $0x708] sm:$0xff]
        %v2909 = vld [vmem:[#allocation24 + $0x710] sm:$0xff]
        %v2910 = vld [vmem:[#allocation24 + $0x718] sm:$0xff]
        %v2911 = vld [vmem:[#allocation24 + $0x720] sm:$0xff]
        %v2912 = vld [vmem:[#allocation24 + $0x728] sm:$0xff]
        %v2913 = vld [vmem:[#allocation24 + $0x730] sm:$0xff]
        %v2914 = vld [vmem:[#allocation24 + $0x738] sm:$0xff]
        %v2915 = vld [vmem:[#allocation24 + $0x740] sm:$0xff]
        %v2916 = vld [vmem:[#allocation24 + $0x748] sm:$0xff]
        %v2917 = vld [vmem:[#allocation24 + $0x750] sm:$0xff]
        %v2918 = vld [vmem:[#allocation24 + $0x758] sm:$0xff]
        %v2919 = vld [vmem:[#allocation24 + $0x760] sm:$0xff]
        %v2920 = vld [vmem:[#allocation24 + $0x768] sm:$0xff]
        %v2921 = vld [vmem:[#allocation24 + $0x770] sm:$0xff]
        %v2922 = vld [vmem:[#allocation24 + $0x778] sm:$0xff]
        %v2923 = vld [vmem:[#allocation24 + $0x780] sm:$0xff]
        %v2924 = vld [vmem:[#allocation24 + $0x788] sm:$0xff]
        %v2925 = vld [vmem:[#allocation24 + $0x790] sm:$0xff]
        %v2926 = vld [vmem:[#allocation24 + $0x798] sm:$0xff]
        %v2927 = vld [vmem:[#allocation24 + $0x7a0] sm:$0xff]
        %v2928 = vld [vmem:[#allocation24 + $0x7a8] sm:$0xff]
        %v2929 = vld [vmem:[#allocation24 + $0x7b0] sm:$0xff]
        %v2930 = vld [vmem:[#allocation24 + $0x7b8] sm:$0xff]
        %v2931 = vld [vmem:[#allocation24 + $0x7c0] sm:$0xff]
        %v2932 = vld [vmem:[#allocation24 + $0x7c8] sm:$0xff]
        %v2933 = vld [vmem:[#allocation24 + $0x7d0] sm:$0xff]
        %v2934 = vld [vmem:[#allocation24 + $0x7d8] sm:$0xff]
        %v2935 = vld [vmem:[#allocation24 + $0x7e0] sm:$0xff]
        %v2936 = vld [vmem:[#allocation24 + $0x7e8] sm:$0xff]
        %v2937 = vld [vmem:[#allocation24 + $0x7f0] sm:$0xff]
        %v2938 = vld [vmem:[#allocation24 + $0x7f8] sm:$0xff]
        %v2939 = vld [vmem:[#allocation24 + $0x800] sm:$0xff]
        %v2940 = vld [vmem:[#allocation24 + $0x808] sm:$0xff]
        %v2941 = vld [vmem:[#allocation24 + $0x810] sm:$0xff]
        %v2942 = vld [vmem:[#allocation24 + $0x818] sm:$0xff]
        %v2943 = vld [vmem:[#allocation24 + $0x820] sm:$0xff]
        %v2944 = vld [vmem:[#allocation24 + $0x828] sm:$0xff]
        %v2945 = vld [vmem:[#allocation24 + $0x830] sm:$0xff]
        %v2946 = vld [vmem:[#allocation24 + $0x838] sm:$0xff]
        %v2947 = vld [vmem:[#allocation24 + $0x840] sm:$0xff]
        %v2948 = vld [vmem:[#allocation24 + $0x848] sm:$0xff]
        %v2949 = vld [vmem:[#allocation24 + $0x850] sm:$0xff]
        %v2950 = vld [vmem:[#allocation24 + $0x858] sm:$0xff]
        %v2951 = vld [vmem:[#allocation24 + $0x860] sm:$0xff]
        %v2952 = vld [vmem:[#allocation24 + $0x868] sm:$0xff]
        %v2953 = vld [vmem:[#allocation24 + $0x870] sm:$0xff]
        %v2954 = vld [vmem:[#allocation24 + $0x878] sm:$0xff]
        %v2955 = vld [vmem:[#allocation24 + $0x880] sm:$0xff]
        %v2956 = vld [vmem:[#allocation24 + $0x888] sm:$0xff]
        %v2957 = vld [vmem:[#allocation24 + $0x890] sm:$0xff]
        %v2958 = vld [vmem:[#allocation24 + $0x898] sm:$0xff]
        %v2959 = vld [vmem:[#allocation24 + $0x8a0] sm:$0xff]
        %v2960 = vld [vmem:[#allocation24 + $0x8a8] sm:$0xff]
        %v2961 = vld [vmem:[#allocation24 + $0x8b0] sm:$0xff]
        %v2962 = vld [vmem:[#allocation24 + $0x8b8] sm:$0xff]
        %v2963 = vld [vmem:[#allocation24 + $0x8c0] sm:$0xff]
        %v2964 = vld [vmem:[#allocation24 + $0x8c8] sm:$0xff]
        %v2965 = vld [vmem:[#allocation24 + $0x8d0] sm:$0xff]
        %v2966 = vld [vmem:[#allocation24 + $0x8d8] sm:$0xff]
        %v2967 = vld [vmem:[#allocation24 + $0x8e0] sm:$0xff]
        %v2968 = vld [vmem:[#allocation24 + $0x8e8] sm:$0xff]
        %v2969 = vld [vmem:[#allocation24 + $0x8f0] sm:$0xff]
        %v2970 = vld [vmem:[#allocation24 + $0x8f8] sm:$0xff]
        %v2971 = vld [vmem:[#allocation24 + $0x900] sm:$0xff]
        %v2972 = vld [vmem:[#allocation24 + $0x908] sm:$0xff]
        %v2973 = vld [vmem:[#allocation24 + $0x910] sm:$0xff]
        %v2974 = vld [vmem:[#allocation24 + $0x918] sm:$0xff]
        %v2975 = vld [vmem:[#allocation24 + $0x920] sm:$0xff]
        %v2976 = vld [vmem:[#allocation24 + $0x928] sm:$0xff]
        %v2977 = vld [vmem:[#allocation24 + $0x930] sm:$0xff]
        %v2978 = vld [vmem:[#allocation24 + $0x938] sm:$0xff]
        %v2979 = vld [vmem:[#allocation24 + $0x940] sm:$0xff]
        %v2980 = vld [vmem:[#allocation24 + $0x948] sm:$0xff]
        %v2981 = vld [vmem:[#allocation24 + $0x950] sm:$0xff]
        %v2982 = vld [vmem:[#allocation24 + $0x958] sm:$0xff]
        %v2983 = vld [vmem:[#allocation24 + $0x960] sm:$0xff]
        %v2984 = vld [vmem:[#allocation24 + $0x968] sm:$0xff]
        %v2985 = vld [vmem:[#allocation24 + $0x970] sm:$0xff]
        %v2986 = vld [vmem:[#allocation24 + $0x978] sm:$0xff]
        %v2987 = vld [vmem:[#allocation24 + $0x980] sm:$0xff]
        %v2988 = vld [vmem:[#allocation24 + $0x988] sm:$0xff]
        %v2989 = vld [vmem:[#allocation24 + $0x990] sm:$0xff]
        %v2990 = vld [vmem:[#allocation24 + $0x998] sm:$0xff]
        %v2991 = vld [vmem:[#allocation24 + $0x9a0] sm:$0xff]
        %v2992 = vld [vmem:[#allocation24 + $0x9a8] sm:$0xff]
        %v2993 = vld [vmem:[#allocation24 + $0x9b0] sm:$0xff]
        %v2994 = vld [vmem:[#allocation24 + $0x9b8] sm:$0xff]
        %v2995 = vld [vmem:[#allocation24 + $0x9c0] sm:$0xff]
        %v2996 = vld [vmem:[#allocation24 + $0x9c8] sm:$0xff]
        %v2997 = vld [vmem:[#allocation24 + $0x9d0] sm:$0xff]
        %v2998 = vld [vmem:[#allocation24 + $0x9d8] sm:$0xff]
        %v2999 = vld [vmem:[#allocation24 + $0x9e0] sm:$0xff]
        %v3000 = vld [vmem:[#allocation24 + $0x9e8] sm:$0xff]
        %v3001 = vld [vmem:[#allocation24 + $0x9f0] sm:$0xff]
        %v3002 = vld [vmem:[#allocation24 + $0x9f8] sm:$0xff]
        %v3003 = vld [vmem:[#allocation24 + $0xa00] sm:$0xff]
        %v3004 = vld [vmem:[#allocation24 + $0xa08] sm:$0xff]
        %v3005 = vld [vmem:[#allocation24 + $0xa10] sm:$0xff]
        %v3006 = vld [vmem:[#allocation24 + $0xa18] sm:$0xff]
        %v3007 = vld [vmem:[#allocation24 + $0xa20] sm:$0xff]
        %v3008 = vld [vmem:[#allocation24 + $0xa28] sm:$0xff]
        %v3009 = vld [vmem:[#allocation24 + $0xa30] sm:$0xff]
        %v3010 = vld [vmem:[#allocation24 + $0xa38] sm:$0xff]
        %v3011 = vld [vmem:[#allocation24 + $0xa40] sm:$0xff]
        %v3012 = vld [vmem:[#allocation24 + $0xa48] sm:$0xff]
        %v3013 = vld [vmem:[#allocation24 + $0xa50] sm:$0xff]
        %v3014 = vld [vmem:[#allocation24 + $0xa58] sm:$0xff]
        %v3015 = vld [vmem:[#allocation24 + $0xa60] sm:$0xff]
        %v3016 = vld [vmem:[#allocation24 + $0xa68] sm:$0xff]
        %v3017 = vld [vmem:[#allocation24 + $0xa70] sm:$0xff]
        %v3018 = vld [vmem:[#allocation24 + $0xa78] sm:$0xff]
        %v3019 = vld [vmem:[#allocation24 + $0xa80] sm:$0xff]
        %v3020 = vld [vmem:[#allocation24 + $0xa88] sm:$0xff]
        %v3021 = vld [vmem:[#allocation24 + $0xa90] sm:$0xff]
        %v3022 = vld [vmem:[#allocation24 + $0xa98] sm:$0xff]
        %v3023 = vld [vmem:[#allocation24 + $0xaa0] sm:$0xff]
        %v3024 = vld [vmem:[#allocation24 + $0xaa8] sm:$0xff]
        %v3025 = vld [vmem:[#allocation24 + $0xab0] sm:$0xff]
        %v3026 = vld [vmem:[#allocation24 + $0xab8] sm:$0xff]
        %v3027 = vld [vmem:[#allocation24 + $0xac0] sm:$0xff]
        %v3028 = vld [vmem:[#allocation24 + $0xac8] sm:$0xff]
        %v3029 = vld [vmem:[#allocation24 + $0xad0] sm:$0xff]
        %v3030 = vld [vmem:[#allocation24 + $0xad8] sm:$0xff]
        %v3031 = vld [vmem:[#allocation24 + $0xae0] sm:$0xff]
        %v3032 = vld [vmem:[#allocation24 + $0xae8] sm:$0xff]
        %v3033 = vld [vmem:[#allocation24 + $0xaf0] sm:$0xff]
        %v3034 = vld [vmem:[#allocation24 + $0xaf8] sm:$0xff]
        %v3035 = vld [vmem:[#allocation24 + $0xb00] sm:$0xff]
        %v3036 = vld [vmem:[#allocation24 + $0xb08] sm:$0xff]
        %v3037 = vld [vmem:[#allocation24 + $0xb10] sm:$0xff]
        %v3038 = vld [vmem:[#allocation24 + $0xb18] sm:$0xff]
        %v3039 = vld [vmem:[#allocation24 + $0xb20] sm:$0xff]
        %v3040 = vld [vmem:[#allocation24 + $0xb28] sm:$0xff]
        %v3041 = vld [vmem:[#allocation24 + $0xb30] sm:$0xff]
        %v3042 = vld [vmem:[#allocation24 + $0xb38] sm:$0xff]
        %v3043 = vld [vmem:[#allocation24 + $0xb40] sm:$0xff]
        %v3044 = vld [vmem:[#allocation24 + $0xb48] sm:$0xff]
        %v3045 = vld [vmem:[#allocation24 + $0xb50] sm:$0xff]
        %v3046 = vld [vmem:[#allocation24 + $0xb58] sm:$0xff]
        %v3047 = vld [vmem:[#allocation24 + $0xb60] sm:$0xff]
        %v3048 = vld [vmem:[#allocation24 + $0xb68] sm:$0xff]
        %v3049 = vld [vmem:[#allocation24 + $0xb70] sm:$0xff]
        %v3050 = vld [vmem:[#allocation24 + $0xb78] sm:$0xff]
        %v3051 = vld [vmem:[#allocation24 + $0xb80] sm:$0xff]
        %v3052 = vld [vmem:[#allocation24 + $0xb88] sm:$0xff]
        %v3053 = vld [vmem:[#allocation24 + $0xb90] sm:$0xff]
        %v3054 = vld [vmem:[#allocation24 + $0xb98] sm:$0xff]
        %v3055 = vld [vmem:[#allocation24 + $0xba0] sm:$0xff]
        %v3056 = vld [vmem:[#allocation24 + $0xba8] sm:$0xff]
        %v3057 = vld [vmem:[#allocation24 + $0xbb0] sm:$0xff]
        %v3058 = vld [vmem:[#allocation24 + $0xbb8] sm:$0xff]
        %v3059 = vld [vmem:[#allocation24 + $0xbc0] sm:$0xff]
        %v3060 = vld [vmem:[#allocation24 + $0xbc8] sm:$0xff]
        %v3061 = vld [vmem:[#allocation24 + $0xbd0] sm:$0xff]
        %v3062 = vld [vmem:[#allocation24 + $0xbd8] sm:$0xff]
        %v3063 = vld [vmem:[#allocation24 + $0xbe0] sm:$0xff]
        %v3064 = vld [vmem:[#allocation24 + $0xbe8] sm:$0xff]
        %v3065 = vld [vmem:[#allocation24 + $0xbf0] sm:$0xff]
        %v3066 = vld [vmem:[#allocation24 + $0xbf8] sm:$0xff]
        %v3067 = vld [vmem:[#allocation24 + $0xc00] sm:$0xff]
        %v3068 = vld [vmem:[#allocation24 + $0xc08] sm:$0xff]
        %v3069 = vld [vmem:[#allocation24 + $0xc10] sm:$0xff]
        %v3070 = vld [vmem:[#allocation24 + $0xc18] sm:$0xff]
        %v3071 = vld [vmem:[#allocation24 + $0xc20] sm:$0xff]
        %v3072 = vld [vmem:[#allocation24 + $0xc28] sm:$0xff]
        %v3073 = vld [vmem:[#allocation24 + $0xc30] sm:$0xff]
        %v3074 = vld [vmem:[#allocation24 + $0xc38] sm:$0xff]
        %v3075 = vld [vmem:[#allocation24 + $0xc40] sm:$0xff]
        %v3076 = vld [vmem:[#allocation24 + $0xc48] sm:$0xff]
        %v3077 = vld [vmem:[#allocation24 + $0xc50] sm:$0xff]
        %v3078 = vld [vmem:[#allocation24 + $0xc58] sm:$0xff]
        %v3079 = vld [vmem:[#allocation24 + $0xc60] sm:$0xff]
        %v3080 = vld [vmem:[#allocation24 + $0xc68] sm:$0xff]
        %v3081 = vld [vmem:[#allocation24 + $0xc70] sm:$0xff]
        %v3082 = vld [vmem:[#allocation24 + $0xc78] sm:$0xff]
        %v3083 = vld [vmem:[#allocation24 + $0xc80] sm:$0xff]
        %v3084 = vld [vmem:[#allocation24 + $0xc88] sm:$0xff]
        %v3085 = vld [vmem:[#allocation24 + $0xc90] sm:$0xff]
        %v3086 = vld [vmem:[#allocation24 + $0xc98] sm:$0xff]
        %v3087 = vld [vmem:[#allocation24 + $0xca0] sm:$0xff]
        %v3088 = vld [vmem:[#allocation24 + $0xca8] sm:$0xff]
        %v3089 = vld [vmem:[#allocation24 + $0xcb0] sm:$0xff]
        %v3090 = vld [vmem:[#allocation24 + $0xcb8] sm:$0xff]
        %v3091 = vld [vmem:[#allocation24 + $0xcc0] sm:$0xff]
        %v3092 = vld [vmem:[#allocation24 + $0xcc8] sm:$0xff]
        %v3093 = vld [vmem:[#allocation24 + $0xcd0] sm:$0xff]
        %v3094 = vld [vmem:[#allocation24 + $0xcd8] sm:$0xff]
        %v3095 = vld [vmem:[#allocation24 + $0xce0] sm:$0xff]
        %v3096 = vld [vmem:[#allocation24 + $0xce8] sm:$0xff]
        %v3097 = vld [vmem:[#allocation24 + $0xcf0] sm:$0xff]
        %v3098 = vld [vmem:[#allocation24 + $0xcf8] sm:$0xff]
        %v3099 = vld [vmem:[#allocation24 + $0xd00] sm:$0xff]
        %v3100 = vld [vmem:[#allocation24 + $0xd08] sm:$0xff]
        %v3101 = vld [vmem:[#allocation24 + $0xd10] sm:$0xff]
        %v3102 = vld [vmem:[#allocation24 + $0xd18] sm:$0xff]
        %v3103 = vld [vmem:[#allocation24 + $0xd20] sm:$0xff]
        %v3104 = vld [vmem:[#allocation24 + $0xd28] sm:$0xff]
        %v3105 = vld [vmem:[#allocation24 + $0xd30] sm:$0xff]
        %v3106 = vld [vmem:[#allocation24 + $0xd38] sm:$0xff]
        %v3107 = vld [vmem:[#allocation24 + $0xd40] sm:$0xff]
        %v3108 = vld [vmem:[#allocation24 + $0xd48] sm:$0xff]
        %v3109 = vld [vmem:[#allocation24 + $0xd50] sm:$0xff]
        %v3110 = vld [vmem:[#allocation24 + $0xd58] sm:$0xff]
        %v3111 = vld [vmem:[#allocation24 + $0xd60] sm:$0xff]
        %v3112 = vld [vmem:[#allocation24 + $0xd68] sm:$0xff]
        %v3113 = vld [vmem:[#allocation24 + $0xd70] sm:$0xff]
        %v3114 = vld [vmem:[#allocation24 + $0xd78] sm:$0xff]
        %v3115 = vld [vmem:[#allocation24 + $0xd80] sm:$0xff]
        %v3116 = vld [vmem:[#allocation24 + $0xd88] sm:$0xff]
        %v3117 = vld [vmem:[#allocation24 + $0xd90] sm:$0xff]
        %v3118 = vld [vmem:[#allocation24 + $0xd98] sm:$0xff]
        %v3119 = vld [vmem:[#allocation24 + $0xda0] sm:$0xff]
        %v3120 = vld [vmem:[#allocation24 + $0xda8] sm:$0xff]
        %v3121 = vld [vmem:[#allocation24 + $0xdb0] sm:$0xff]
        %v3122 = vld [vmem:[#allocation24 + $0xdb8] sm:$0xff]
        %v3123 = vld [vmem:[#allocation24 + $0xdc0] sm:$0xff]
        %v3124 = vld [vmem:[#allocation24 + $0xdc8] sm:$0xff]
        %v3125 = vld [vmem:[#allocation24 + $0xdd0] sm:$0xff]
        %v3126 = vld [vmem:[#allocation24 + $0xdd8] sm:$0xff]
        %v3127 = vld [vmem:[#allocation24 + $0xde0] sm:$0xff]
        %v3128 = vld [vmem:[#allocation24 + $0xde8] sm:$0xff]
        %v3129 = vld [vmem:[#allocation24 + $0xdf0] sm:$0xff]
        %v3130 = vld [vmem:[#allocation24 + $0xdf8] sm:$0xff]
        %v3131 = vld [vmem:[#allocation24 + $0xe00] sm:$0xff]
        %v3132 = vld [vmem:[#allocation24 + $0xe08] sm:$0xff]
        %v3133 = vld [vmem:[#allocation24 + $0xe10] sm:$0xff]
        %v3134 = vld [vmem:[#allocation24 + $0xe18] sm:$0xff]
        %v3135 = vld [vmem:[#allocation24 + $0xe20] sm:$0xff]
        %v3136 = vld [vmem:[#allocation24 + $0xe28] sm:$0xff]
        %v3137 = vld [vmem:[#allocation24 + $0xe30] sm:$0xff]
        %v3138 = vld [vmem:[#allocation24 + $0xe38] sm:$0xff]
        %v3139 = vld [vmem:[#allocation24 + $0xe40] sm:$0xff]
        %v3140 = vld [vmem:[#allocation24 + $0xe48] sm:$0xff]
        %v3141 = vld [vmem:[#allocation24 + $0xe50] sm:$0xff]
        %v3142 = vld [vmem:[#allocation24 + $0xe58] sm:$0xff]
        %v3143 = vld [vmem:[#allocation24 + $0xe60] sm:$0xff]
        %v3144 = vld [vmem:[#allocation24 + $0xe68] sm:$0xff]
        %v3145 = vld [vmem:[#allocation24 + $0xe70] sm:$0xff]
        %v3146 = vld [vmem:[#allocation24 + $0xe78] sm:$0xff]
        %v3147 = vld [vmem:[#allocation24 + $0xe80] sm:$0xff]
        %v3148 = vld [vmem:[#allocation24 + $0xe88] sm:$0xff]
        %v3149 = vld [vmem:[#allocation24 + $0xe90] sm:$0xff]
        %v3150 = vld [vmem:[#allocation24 + $0xe98] sm:$0xff]
        %v3151 = vld [vmem:[#allocation24 + $0xea0] sm:$0xff]
        %v3152 = vld [vmem:[#allocation24 + $0xea8] sm:$0xff]
        %v3153 = vld [vmem:[#allocation24 + $0xeb0] sm:$0xff]
        %v3154 = vld [vmem:[#allocation24 + $0xeb8] sm:$0xff]
        %v3155 = vld [vmem:[#allocation24 + $0xec0] sm:$0xff]
        %v3156 = vld [vmem:[#allocation24 + $0xec8] sm:$0xff]
        %v3157 = vld [vmem:[#allocation24 + $0xed0] sm:$0xff]
        %v3158 = vld [vmem:[#allocation24 + $0xed8] sm:$0xff]
        %v3159 = vld [vmem:[#allocation24 + $0xee0] sm:$0xff]
        %v3160 = vld [vmem:[#allocation24 + $0xee8] sm:$0xff]
        %v3161 = vld [vmem:[#allocation24 + $0xef0] sm:$0xff]
        %v3162 = vld [vmem:[#allocation24 + $0xef8] sm:$0xff]
        %v3163 = vld [vmem:[#allocation24 + $0xf00] sm:$0xff]
        %v3164 = vld [vmem:[#allocation24 + $0xf08] sm:$0xff]
        %v3165 = vld [vmem:[#allocation24 + $0xf10] sm:$0xff]
        %v3166 = vld [vmem:[#allocation24 + $0xf18] sm:$0xff]
        %v3167 = vld [vmem:[#allocation24 + $0xf20] sm:$0xff]
        %v3168 = vld [vmem:[#allocation24 + $0xf28] sm:$0xff]
        %v3169 = vld [vmem:[#allocation24 + $0xf30] sm:$0xff]
        %v3170 = vld [vmem:[#allocation24 + $0xf38] sm:$0xff]
        %v3171 = vld [vmem:[#allocation24 + $0xf40] sm:$0xff]
        %v3172 = vld [vmem:[#allocation24 + $0xf48] sm:$0xff]
        %v3173 = vld [vmem:[#allocation24 + $0xf50] sm:$0xff]
        %v3174 = vld [vmem:[#allocation24 + $0xf58] sm:$0xff]
        %v3175 = vld [vmem:[#allocation24 + $0xf60] sm:$0xff]
        %v3176 = vld [vmem:[#allocation24 + $0xf68] sm:$0xff]
        %v3177 = vld [vmem:[#allocation24 + $0xf70] sm:$0xff]
        %v3178 = vld [vmem:[#allocation24 + $0xf78] sm:$0xff]
        %v3179 = vld [vmem:[#allocation24 + $0xf80] sm:$0xff]
        %v3180 = vld [vmem:[#allocation24 + $0xf88] sm:$0xff]
        %v3181 = vld [vmem:[#allocation24 + $0xf90] sm:$0xff]
        %v3182 = vld [vmem:[#allocation24 + $0xf98] sm:$0xff]
        %v3183 = vld [vmem:[#allocation24 + $0xfa0] sm:$0xff]
        %v3184 = vld [vmem:[#allocation24 + $0xfa8] sm:$0xff]
        %v3185 = vld [vmem:[#allocation24 + $0xfb0] sm:$0xff]
        %v3186 = vld [vmem:[#allocation24 + $0xfb8] sm:$0xff]
        %v3187 = vld [vmem:[#allocation24 + $0xfc0] sm:$0xff]
        %v3188 = vld [vmem:[#allocation24 + $0xfc8] sm:$0xff]
        %v3189 = vld [vmem:[#allocation24 + $0xfd0] sm:$0xff]
        %v3190 = vld [vmem:[#allocation24 + $0xfd8] sm:$0xff]
        %v3191 = vld [vmem:[#allocation24 + $0xfe0] sm:$0xff]
        %v3192 = vld [vmem:[#allocation24 + $0xfe8] sm:$0xff]
        %v3193 = vld [vmem:[#allocation24 + $0xff0] sm:$0xff]
        %v3194 = vld [vmem:[#allocation24 + $0xff8] sm:$0xff]
        %v3195 = vld [vmem:[#allocation26] sm:$0xff]
        %v3197 = vlaneseq
        %v3198 = vshrl.u32 %v3197, 7
        %v3199 = vsub.s32 0, %v3198
        %v3200 = vrot.slane %v3195, %v3199
        %v3201 = vlaneseq
        %v3202 = vshrl.u32 %v3201, 7
        %v3203 = vsub.s32 1, %v3202
        %v3204 = vrot.slane %v3195, %v3203
        %v3205 = vlaneseq
        %v3206 = vshrl.u32 %v3205, 7
        %v3207 = vsub.s32 2, %v3206
        %v3208 = vrot.slane %v3195, %v3207
        %v3209 = vlaneseq
        %v3210 = vshrl.u32 %v3209, 7
        %v3211 = vsub.s32 3, %v3210
        %v3212 = vrot.slane %v3195, %v3211
        %v3213 = vlaneseq
        %v3214 = vshrl.u32 %v3213, 7
        %v3215 = vsub.s32 4, %v3214
        %v3216 = vrot.slane %v3195, %v3215
        %v3217 = vlaneseq
        %v3218 = vshrl.u32 %v3217, 7
        %v3219 = vsub.s32 5, %v3218
        %v3220 = vrot.slane %v3195, %v3219
        %v3221 = vlaneseq
        %v3222 = vshrl.u32 %v3221, 7
        %v3223 = vsub.s32 6, %v3222
        %v3224 = vrot.slane %v3195, %v3223
        %v3225 = vlaneseq
        %v3226 = vshrl.u32 %v3225, 7
        %v3227 = vsub.s32 7, %v3226
        %v3228 = vrot.slane %v3195, %v3227
        %3237 = vmatprep.subr.mxu0 %v2804
        %3238 = vmatpush1.msra.mxu0 %v2803
        %3239 = vmatprep.subr.mxu0 %v2796
        %3240 = vmatpush1.msra.mxu0 %v2795
        %3241 = vmatprep.subr.mxu0 %v2788
        %3242 = vmatpush1.msra.mxu0 %v2787
        %3243 = vmatprep.subr.mxu0 %v2780
        %3244 = vmatpush1.msra.mxu0 %v2779
        %3245 = vmatprep.subr.mxu0 %v2772
        %3246 = vmatpush1.msra.mxu0 %v2771
        %3247 = vmatprep.subr.mxu0 %v2764
        %3248 = vmatpush1.msra.mxu0 %v2763
        %3249 = vmatprep.subr.mxu0 %v2756
        %3250 = vmatpush1.msra.mxu0 %v2755
        %3251 = vmatprep.subr.mxu0 %v2748
        %3252 = vmatpush1.msra.mxu0 %v2747
        %3253 = vmatprep.subr.mxu0 %v2740
        %3254 = vmatpush1.msra.mxu0 %v2739
        %3255 = vmatprep.subr.mxu0 %v2732
        %3256 = vmatpush1.msra.mxu0 %v2731
        %3257 = vmatprep.subr.mxu0 %v2724
        %3258 = vmatpush1.msra.mxu0 %v2723
        %3259 = vmatprep.subr.mxu0 %v2716
        %3260 = vmatpush1.msra.mxu0 %v2715
        %3261 = vmatprep.subr.mxu0 %v2708
        %3262 = vmatpush1.msra.mxu0 %v2707
        %3263 = vmatprep.subr.mxu0 %v2700
        %3264 = vmatpush1.msra.mxu0 %v2699
        %3265 = vmatprep.subr.mxu0 %v2692
        %3266 = vmatpush1.msra.mxu0 %v2691
        %3267 = vmatprep.subr.mxu0 %v2684
        %3268 = vmatpush1.msra.mxu0 %v2683
        %3269 = vmatprep.subr.mxu0 %v2932
        %3270 = vmatpush2.msra.mxu0 %v2931
        %3271 = vmatprep.subr.mxu0 %v2924
        %3272 = vmatpush2.msra.mxu0 %v2923
        %3273 = vmatprep.subr.mxu0 %v2916
        %3274 = vmatpush2.msra.mxu0 %v2915
        %3275 = vmatprep.subr.mxu0 %v2908
        %3276 = vmatpush2.msra.mxu0 %v2907
        %3277 = vmatprep.subr.mxu0 %v2900
        %3278 = vmatpush2.msra.mxu0 %v2899
        %3279 = vmatprep.subr.mxu0 %v2892
        %3280 = vmatpush2.msra.mxu0 %v2891
        %3281 = vmatprep.subr.mxu0 %v2884
        %3282 = vmatpush2.msra.mxu0 %v2883
        %3283 = vmatprep.subr.mxu0 %v2876
        %3284 = vmatpush2.msra.mxu0 %v2875
        %3285 = vmatprep.subr.mxu0 %v2868
        %3286 = vmatpush2.msra.mxu0 %v2867
        %3287 = vmatprep.subr.mxu0 %v2860
        %3288 = vmatpush2.msra.mxu0 %v2859
        %3289 = vmatprep.subr.mxu0 %v2852
        %3290 = vmatpush2.msra.mxu0 %v2851
        %3291 = vmatprep.subr.mxu0 %v2844
        %3292 = vmatpush2.msra.mxu0 %v2843
        %3293 = vmatprep.subr.mxu0 %v2836
        %3294 = vmatpush2.msra.mxu0 %v2835
        %3295 = vmatprep.subr.mxu0 %v2828
        %3296 = vmatpush2.msra.mxu0 %v2827
        %3297 = vmatprep.subr.mxu0 %v2820
        %3298 = vmatpush2.msra.mxu0 %v2819
        %3299 = vmatprep.subr.mxu0 %v2812
        %3300 = vmatpush2.msra.mxu0 %v2811
        %3301 = vmatprep.mubr.f32.mxu0 %v2680
        %3302 = vmatmul.mubr.f32.gmra.mxu0 %v2679
        %v3303 = vpop.f32.mrf.mxu0
        %v3304 = vadd.f32 %v3200, %v3303
        %v3305 = vpop.f32.mrf.mxu0
        %v3306 = vadd.f32 %v3204, %v3305
        %3307 = vdwg.mxu0
        %3308 = vmatprep.subr.mxu0 %v3060
        %3309 = vmatpush1.msra.mxu0 %v3059
        %3310 = vmatprep.subr.mxu0 %v3052
        %3311 = vmatpush1.msra.mxu0 %v3051
        %3312 = vmatprep.subr.mxu0 %v3044
        %3313 = vmatpush1.msra.mxu0 %v3043
        %3314 = vmatprep.subr.mxu0 %v3036
        %3315 = vmatpush1.msra.mxu0 %v3035
        %3316 = vmatprep.subr.mxu0 %v3028
        %3317 = vmatpush1.msra.mxu0 %v3027
        %3318 = vmatprep.subr.mxu0 %v3020
        %3319 = vmatpush1.msra.mxu0 %v3019
        %3320 = vmatprep.subr.mxu0 %v3012
        %3321 = vmatpush1.msra.mxu0 %v3011
        %3322 = vmatprep.subr.mxu0 %v3004
        %3323 = vmatpush1.msra.mxu0 %v3003
        %3324 = vmatprep.subr.mxu0 %v2996
        %3325 = vmatpush1.msra.mxu0 %v2995
        %3326 = vmatprep.subr.mxu0 %v2988
        %3327 = vmatpush1.msra.mxu0 %v2987
        %3328 = vmatprep.subr.mxu0 %v2980
        %3329 = vmatpush1.msra.mxu0 %v2979
        %3330 = vmatprep.subr.mxu0 %v2972
        %3331 = vmatpush1.msra.mxu0 %v2971
        %3332 = vmatprep.subr.mxu0 %v2964
        %3333 = vmatpush1.msra.mxu0 %v2963
        %3334 = vmatprep.subr.mxu0 %v2956
        %3335 = vmatpush1.msra.mxu0 %v2955
        %3336 = vmatprep.subr.mxu0 %v2948
        %3337 = vmatpush1.msra.mxu0 %v2947
        %3338 = vmatprep.subr.mxu0 %v2940
        %3339 = vmatpush1.msra.mxu0 %v2939
        %3340 = vmatprep.subr.mxu0 %v3188
        %3341 = vmatpush2.msra.mxu0 %v3187
        %3342 = vmatprep.subr.mxu0 %v3180
        %3343 = vmatpush2.msra.mxu0 %v3179
        %3344 = vmatprep.subr.mxu0 %v3172
        %3345 = vmatpush2.msra.mxu0 %v3171
        %3346 = vmatprep.subr.mxu0 %v3164
        %3347 = vmatpush2.msra.mxu0 %v3163
        %3348 = vmatprep.subr.mxu0 %v3156
        %3349 = vmatpush2.msra.mxu0 %v3155
        %3350 = vmatprep.subr.mxu0 %v3148
        %3351 = vmatpush2.msra.mxu0 %v3147
        %3352 = vmatprep.subr.mxu0 %v3140
        %3353 = vmatpush2.msra.mxu0 %v3139
        %3354 = vmatprep.subr.mxu0 %v3132
        %3355 = vmatpush2.msra.mxu0 %v3131
        %3356 = vmatprep.subr.mxu0 %v3124
        %3357 = vmatpush2.msra.mxu0 %v3123
        %3358 = vmatprep.subr.mxu0 %v3116
        %3359 = vmatpush2.msra.mxu0 %v3115
        %3360 = vmatprep.subr.mxu0 %v3108
        %3361 = vmatpush2.msra.mxu0 %v3107
        %3362 = vmatprep.subr.mxu0 %v3100
        %3363 = vmatpush2.msra.mxu0 %v3099
        %3364 = vmatprep.subr.mxu0 %v3092
        %3365 = vmatpush2.msra.mxu0 %v3091
        %3366 = vmatprep.subr.mxu0 %v3084
        %3367 = vmatpush2.msra.mxu0 %v3083
        %3368 = vmatprep.subr.mxu0 %v3076
        %3369 = vmatpush2.msra.mxu0 %v3075
        %3370 = vmatprep.subr.mxu0 %v3068
        %3371 = vmatpush2.msra.mxu0 %v3067
        %3372 = vmatprep.mubr.f32.mxu0 %v2682
        %3373 = vmatmul.mubr.f32.gmra.mxu0 %v2681
        %v3374 = vpop.f32.mrf.mxu0
        %v3375 = vadd.f32 %v3304, %v3374
        %v3376 = vpop.f32.mrf.mxu0
        %v3377 = vadd.f32 %v3306, %v3376
        %3378 = vdwg.mxu0
        %3379 = vmatprep.subr.mxu0 %v2806
        %3380 = vmatpush1.msra.mxu0 %v2805
        %3381 = vmatprep.subr.mxu0 %v2798
        %3382 = vmatpush1.msra.mxu0 %v2797
        %3383 = vmatprep.subr.mxu0 %v2790
        %3384 = vmatpush1.msra.mxu0 %v2789
        %3385 = vmatprep.subr.mxu0 %v2782
        %3386 = vmatpush1.msra.mxu0 %v2781
        %3387 = vmatprep.subr.mxu0 %v2774
        %3388 = vmatpush1.msra.mxu0 %v2773
        %3389 = vmatprep.subr.mxu0 %v2766
        %3390 = vmatpush1.msra.mxu0 %v2765
        %3391 = vmatprep.subr.mxu0 %v2758
        %3392 = vmatpush1.msra.mxu0 %v2757
        %3393 = vmatprep.subr.mxu0 %v2750
        %3394 = vmatpush1.msra.mxu0 %v2749
        %3395 = vmatprep.subr.mxu0 %v2742
        %3396 = vmatpush1.msra.mxu0 %v2741
        %3397 = vmatprep.subr.mxu0 %v2734
        %3398 = vmatpush1.msra.mxu0 %v2733
        %3399 = vmatprep.subr.mxu0 %v2726
        %3400 = vmatpush1.msra.mxu0 %v2725
        %3401 = vmatprep.subr.mxu0 %v2718
        %3402 = vmatpush1.msra.mxu0 %v2717
        %3403 = vmatprep.subr.mxu0 %v2710
        %3404 = vmatpush1.msra.mxu0 %v2709
        %3405 = vmatprep.subr.mxu0 %v2702
        %3406 = vmatpush1.msra.mxu0 %v2701
        %3407 = vmatprep.subr.mxu0 %v2694
        %3408 = vmatpush1.msra.mxu0 %v2693
        %3409 = vmatprep.subr.mxu0 %v2686
        %3410 = vmatpush1.msra.mxu0 %v2685
        %3411 = vmatprep.subr.mxu0 %v2934
        %3412 = vmatpush2.msra.mxu0 %v2933
        %3413 = vmatprep.subr.mxu0 %v2926
        %3414 = vmatpush2.msra.mxu0 %v2925
        %3415 = vmatprep.subr.mxu0 %v2918
        %3416 = vmatpush2.msra.mxu0 %v2917
        %3417 = vmatprep.subr.mxu0 %v2910
        %3418 = vmatpush2.msra.mxu0 %v2909
        %3419 = vmatprep.subr.mxu0 %v2902
        %3420 = vmatpush2.msra.mxu0 %v2901
        %3421 = vmatprep.subr.mxu0 %v2894
        %3422 = vmatpush2.msra.mxu0 %v2893
        %3423 = vmatprep.subr.mxu0 %v2886
        %3424 = vmatpush2.msra.mxu0 %v2885
        %3425 = vmatprep.subr.mxu0 %v2878
        %3426 = vmatpush2.msra.mxu0 %v2877
        %3427 = vmatprep.subr.mxu0 %v2870
        %3428 = vmatpush2.msra.mxu0 %v2869
        %3429 = vmatprep.subr.mxu0 %v2862
        %3430 = vmatpush2.msra.mxu0 %v2861
        %3431 = vmatprep.subr.mxu0 %v2854
        %3432 = vmatpush2.msra.mxu0 %v2853
        %3433 = vmatprep.subr.mxu0 %v2846
        %3434 = vmatpush2.msra.mxu0 %v2845
        %3435 = vmatprep.subr.mxu0 %v2838
        %3436 = vmatpush2.msra.mxu0 %v2837
        %3437 = vmatprep.subr.mxu0 %v2830
        %3438 = vmatpush2.msra.mxu0 %v2829
        %3439 = vmatprep.subr.mxu0 %v2822
        %3440 = vmatpush2.msra.mxu0 %v2821
        %3441 = vmatprep.subr.mxu0 %v2814
        %3442 = vmatpush2.msra.mxu0 %v2813
        %3443 = vmatprep.mubr.f32.mxu0 %v2680
        %3444 = vmatmul.mubr.f32.gmra.mxu0 %v2679
        %v3445 = vpop.f32.mrf.mxu0
        %v3446 = vadd.f32 %v3208, %v3445
        %v3447 = vpop.f32.mrf.mxu0
        %v3448 = vadd.f32 %v3212, %v3447
        %3449 = vdwg.mxu0
        %3450 = vmatprep.subr.mxu0 %v3062
        %3451 = vmatpush1.msra.mxu0 %v3061
        %3452 = vmatprep.subr.mxu0 %v3054
        %3453 = vmatpush1.msra.mxu0 %v3053
        %3454 = vmatprep.subr.mxu0 %v3046
        %3455 = vmatpush1.msra.mxu0 %v3045
        %3456 = vmatprep.subr.mxu0 %v3038
        %3457 = vmatpush1.msra.mxu0 %v3037
        %3458 = vmatprep.subr.mxu0 %v3030
        %3459 = vmatpush1.msra.mxu0 %v3029
        %3460 = vmatprep.subr.mxu0 %v3022
        %3461 = vmatpush1.msra.mxu0 %v3021
        %3462 = vmatprep.subr.mxu0 %v3014
        %3463 = vmatpush1.msra.mxu0 %v3013
        %3464 = vmatprep.subr.mxu0 %v3006
        %3465 = vmatpush1.msra.mxu0 %v3005
        %3466 = vmatprep.subr.mxu0 %v2998
        %3467 = vmatpush1.msra.mxu0 %v2997
        %3468 = vmatprep.subr.mxu0 %v2990
        %3469 = vmatpush1.msra.mxu0 %v2989
        %3470 = vmatprep.subr.mxu0 %v2982
        %3471 = vmatpush1.msra.mxu0 %v2981
        %3472 = vmatprep.subr.mxu0 %v2974
        %3473 = vmatpush1.msra.mxu0 %v2973
        %3474 = vmatprep.subr.mxu0 %v2966
        %3475 = vmatpush1.msra.mxu0 %v2965
        %3476 = vmatprep.subr.mxu0 %v2958
        %3477 = vmatpush1.msra.mxu0 %v2957
        %3478 = vmatprep.subr.mxu0 %v2950
        %3479 = vmatpush1.msra.mxu0 %v2949
        %3480 = vmatprep.subr.mxu0 %v2942
        %3481 = vmatpush1.msra.mxu0 %v2941
        %3482 = vmatprep.subr.mxu0 %v3190
        %3483 = vmatpush2.msra.mxu0 %v3189
        %3484 = vmatprep.subr.mxu0 %v3182
        %3485 = vmatpush2.msra.mxu0 %v3181
        %3486 = vmatprep.subr.mxu0 %v3174
        %3487 = vmatpush2.msra.mxu0 %v3173
        %3488 = vmatprep.subr.mxu0 %v3166
        %3489 = vmatpush2.msra.mxu0 %v3165
        %3490 = vmatprep.subr.mxu0 %v3158
        %3491 = vmatpush2.msra.mxu0 %v3157
        %3492 = vmatprep.subr.mxu0 %v3150
        %3493 = vmatpush2.msra.mxu0 %v3149
        %3494 = vmatprep.subr.mxu0 %v3142
        %3495 = vmatpush2.msra.mxu0 %v3141
        %3496 = vmatprep.subr.mxu0 %v3134
        %3497 = vmatpush2.msra.mxu0 %v3133
        %3498 = vmatprep.subr.mxu0 %v3126
        %3499 = vmatpush2.msra.mxu0 %v3125
        %3500 = vmatprep.subr.mxu0 %v3118
        %3501 = vmatpush2.msra.mxu0 %v3117
        %3502 = vmatprep.subr.mxu0 %v3110
        %3503 = vmatpush2.msra.mxu0 %v3109
        %3504 = vmatprep.subr.mxu0 %v3102
        %3505 = vmatpush2.msra.mxu0 %v3101
        %3506 = vmatprep.subr.mxu0 %v3094
        %3507 = vmatpush2.msra.mxu0 %v3093
        %3508 = vmatprep.subr.mxu0 %v3086
        %3509 = vmatpush2.msra.mxu0 %v3085
        %3510 = vmatprep.subr.mxu0 %v3078
        %3511 = vmatpush2.msra.mxu0 %v3077
        %3512 = vmatprep.subr.mxu0 %v3070
        %3513 = vmatpush2.msra.mxu0 %v3069
        %3514 = vmatprep.mubr.f32.mxu0 %v2682
        %3515 = vmatmul.mubr.f32.gmra.mxu0 %v2681
        %v3516 = vpop.f32.mrf.mxu0
        %v3517 = vadd.f32 %v3446, %v3516
        %v3518 = vpop.f32.mrf.mxu0
        %v3519 = vadd.f32 %v3448, %v3518
        %3520 = vdwg.mxu0
        %3521 = vmatprep.subr.mxu0 %v2808
        %3522 = vmatpush1.msra.mxu0 %v2807
        %3523 = vmatprep.subr.mxu0 %v2800
        %3524 = vmatpush1.msra.mxu0 %v2799
        %3525 = vmatprep.subr.mxu0 %v2792
        %3526 = vmatpush1.msra.mxu0 %v2791
        %3527 = vmatprep.subr.mxu0 %v2784
        %3528 = vmatpush1.msra.mxu0 %v2783
        %3529 = vmatprep.subr.mxu0 %v2776
        %3530 = vmatpush1.msra.mxu0 %v2775
        %3531 = vmatprep.subr.mxu0 %v2768
        %3532 = vmatpush1.msra.mxu0 %v2767
        %3533 = vmatprep.subr.mxu0 %v2760
        %3534 = vmatpush1.msra.mxu0 %v2759
        %3535 = vmatprep.subr.mxu0 %v2752
        %3536 = vmatpush1.msra.mxu0 %v2751
        %3537 = vmatprep.subr.mxu0 %v2744
        %3538 = vmatpush1.msra.mxu0 %v2743
        %3539 = vmatprep.subr.mxu0 %v2736
        %3540 = vmatpush1.msra.mxu0 %v2735
        %3541 = vmatprep.subr.mxu0 %v2728
        %3542 = vmatpush1.msra.mxu0 %v2727
        %3543 = vmatprep.subr.mxu0 %v2720
        %3544 = vmatpush1.msra.mxu0 %v2719
        %3545 = vmatprep.subr.mxu0 %v2712
        %3546 = vmatpush1.msra.mxu0 %v2711
        %3547 = vmatprep.subr.mxu0 %v2704
        %3548 = vmatpush1.msra.mxu0 %v2703
        %3549 = vmatprep.subr.mxu0 %v2696
        %3550 = vmatpush1.msra.mxu0 %v2695
        %3551 = vmatprep.subr.mxu0 %v2688
        %3552 = vmatpush1.msra.mxu0 %v2687
        %3553 = vmatprep.subr.mxu0 %v2936
        %3554 = vmatpush2.msra.mxu0 %v2935
        %3555 = vmatprep.subr.mxu0 %v2928
        %3556 = vmatpush2.msra.mxu0 %v2927
        %3557 = vmatprep.subr.mxu0 %v2920
        %3558 = vmatpush2.msra.mxu0 %v2919
        %3559 = vmatprep.subr.mxu0 %v2912
        %3560 = vmatpush2.msra.mxu0 %v2911
        %3561 = vmatprep.subr.mxu0 %v2904
        %3562 = vmatpush2.msra.mxu0 %v2903
        %3563 = vmatprep.subr.mxu0 %v2896
        %3564 = vmatpush2.msra.mxu0 %v2895
        %3565 = vmatprep.subr.mxu0 %v2888
        %3566 = vmatpush2.msra.mxu0 %v2887
        %3567 = vmatprep.subr.mxu0 %v2880
        %3568 = vmatpush2.msra.mxu0 %v2879
        %3569 = vmatprep.subr.mxu0 %v2872
        %3570 = vmatpush2.msra.mxu0 %v2871
        %3571 = vmatprep.subr.mxu0 %v2864
        %3572 = vmatpush2.msra.mxu0 %v2863
        %3573 = vmatprep.subr.mxu0 %v2856
        %3574 = vmatpush2.msra.mxu0 %v2855
        %3575 = vmatprep.subr.mxu0 %v2848
        %3576 = vmatpush2.msra.mxu0 %v2847
        %3577 = vmatprep.subr.mxu0 %v2840
        %3578 = vmatpush2.msra.mxu0 %v2839
        %3579 = vmatprep.subr.mxu0 %v2832
        %3580 = vmatpush2.msra.mxu0 %v2831
        %3581 = vmatprep.subr.mxu0 %v2824
        %3582 = vmatpush2.msra.mxu0 %v2823
        %3583 = vmatprep.subr.mxu0 %v2816
        %3584 = vmatpush2.msra.mxu0 %v2815
        %3585 = vmatprep.mubr.f32.mxu0 %v2680
        %3586 = vmatmul.mubr.f32.gmra.mxu0 %v2679
        %v3587 = vpop.f32.mrf.mxu0
        %v3588 = vadd.f32 %v3216, %v3587
        %v3589 = vpop.f32.mrf.mxu0
        %v3590 = vadd.f32 %v3220, %v3589
        %3591 = vdwg.mxu0
        %3592 = vmatprep.subr.mxu0 %v3064
        %3593 = vmatpush1.msra.mxu0 %v3063
        %3594 = vmatprep.subr.mxu0 %v3056
        %3595 = vmatpush1.msra.mxu0 %v3055
        %3596 = vmatprep.subr.mxu0 %v3048
        %3597 = vmatpush1.msra.mxu0 %v3047
        %3598 = vmatprep.subr.mxu0 %v3040
        %3599 = vmatpush1.msra.mxu0 %v3039
        %3600 = vmatprep.subr.mxu0 %v3032
        %3601 = vmatpush1.msra.mxu0 %v3031
        %3602 = vmatprep.subr.mxu0 %v3024
        %3603 = vmatpush1.msra.mxu0 %v3023
        %3604 = vmatprep.subr.mxu0 %v3016
        %3605 = vmatpush1.msra.mxu0 %v3015
        %3606 = vmatprep.subr.mxu0 %v3008
        %3607 = vmatpush1.msra.mxu0 %v3007
        %3608 = vmatprep.subr.mxu0 %v3000
        %3609 = vmatpush1.msra.mxu0 %v2999
        %3610 = vmatprep.subr.mxu0 %v2992
        %3611 = vmatpush1.msra.mxu0 %v2991
        %3612 = vmatprep.subr.mxu0 %v2984
        %3613 = vmatpush1.msra.mxu0 %v2983
        %3614 = vmatprep.subr.mxu0 %v2976
        %3615 = vmatpush1.msra.mxu0 %v2975
        %3616 = vmatprep.subr.mxu0 %v2968
        %3617 = vmatpush1.msra.mxu0 %v2967
        %3618 = vmatprep.subr.mxu0 %v2960
        %3619 = vmatpush1.msra.mxu0 %v2959
        %3620 = vmatprep.subr.mxu0 %v2952
        %3621 = vmatpush1.msra.mxu0 %v2951
        %3622 = vmatprep.subr.mxu0 %v2944
        %3623 = vmatpush1.msra.mxu0 %v2943
        %3624 = vmatprep.subr.mxu0 %v3192
        %3625 = vmatpush2.msra.mxu0 %v3191
        %3626 = vmatprep.subr.mxu0 %v3184
        %3627 = vmatpush2.msra.mxu0 %v3183
        %3628 = vmatprep.subr.mxu0 %v3176
        %3629 = vmatpush2.msra.mxu0 %v3175
        %3630 = vmatprep.subr.mxu0 %v3168
        %3631 = vmatpush2.msra.mxu0 %v3167
        %3632 = vmatprep.subr.mxu0 %v3160
        %3633 = vmatpush2.msra.mxu0 %v3159
        %3634 = vmatprep.subr.mxu0 %v3152
        %3635 = vmatpush2.msra.mxu0 %v3151
        %3636 = vmatprep.subr.mxu0 %v3144
        %3637 = vmatpush2.msra.mxu0 %v3143
        %3638 = vmatprep.subr.mxu0 %v3136
        %3639 = vmatpush2.msra.mxu0 %v3135
        %3640 = vmatprep.subr.mxu0 %v3128
        %3641 = vmatpush2.msra.mxu0 %v3127
        %3642 = vmatprep.subr.mxu0 %v3120
        %3643 = vmatpush2.msra.mxu0 %v3119
        %3644 = vmatprep.subr.mxu0 %v3112
        %3645 = vmatpush2.msra.mxu0 %v3111
        %3646 = vmatprep.subr.mxu0 %v3104
        %3647 = vmatpush2.msra.mxu0 %v3103
        %3648 = vmatprep.subr.mxu0 %v3096
        %3649 = vmatpush2.msra.mxu0 %v3095
        %3650 = vmatprep.subr.mxu0 %v3088
        %3651 = vmatpush2.msra.mxu0 %v3087
        %3652 = vmatprep.subr.mxu0 %v3080
        %3653 = vmatpush2.msra.mxu0 %v3079
        %3654 = vmatprep.subr.mxu0 %v3072
        %3655 = vmatpush2.msra.mxu0 %v3071
        %3656 = vmatprep.mubr.f32.mxu0 %v2682
        %3657 = vmatmul.mubr.f32.gmra.mxu0 %v2681
        %v3658 = vpop.f32.mrf.mxu0
        %v3659 = vadd.f32 %v3588, %v3658
        %v3660 = vpop.f32.mrf.mxu0
        %v3661 = vadd.f32 %v3590, %v3660
        %3662 = vdwg.mxu0
        %3663 = vmatprep.subr.mxu0 %v2810
        %3664 = vmatpush1.msra.mxu0 %v2809
        %3665 = vmatprep.subr.mxu0 %v2802
        %3666 = vmatpush1.msra.mxu0 %v2801
        %3667 = vmatprep.subr.mxu0 %v2794
        %3668 = vmatpush1.msra.mxu0 %v2793
        %3669 = vmatprep.subr.mxu0 %v2786
        %3670 = vmatpush1.msra.mxu0 %v2785
        %3671 = vmatprep.subr.mxu0 %v2778
        %3672 = vmatpush1.msra.mxu0 %v2777
        %3673 = vmatprep.subr.mxu0 %v2770
        %3674 = vmatpush1.msra.mxu0 %v2769
        %3675 = vmatprep.subr.mxu0 %v2762
        %3676 = vmatpush1.msra.mxu0 %v2761
        %3677 = vmatprep.subr.mxu0 %v2754
        %3678 = vmatpush1.msra.mxu0 %v2753
        %3679 = vmatprep.subr.mxu0 %v2746
        %3680 = vmatpush1.msra.mxu0 %v2745
        %3681 = vmatprep.subr.mxu0 %v2738
        %3682 = vmatpush1.msra.mxu0 %v2737
        %3683 = vmatprep.subr.mxu0 %v2730
        %3684 = vmatpush1.msra.mxu0 %v2729
        %3685 = vmatprep.subr.mxu0 %v2722
        %3686 = vmatpush1.msra.mxu0 %v2721
        %3687 = vmatprep.subr.mxu0 %v2714
        %3688 = vmatpush1.msra.mxu0 %v2713
        %3689 = vmatprep.subr.mxu0 %v2706
        %3690 = vmatpush1.msra.mxu0 %v2705
        %3691 = vmatprep.subr.mxu0 %v2698
        %3692 = vmatpush1.msra.mxu0 %v2697
        %3693 = vmatprep.subr.mxu0 %v2690
        %3694 = vmatpush1.msra.mxu0 %v2689
        %3695 = vmatprep.subr.mxu0 %v2938
        %3696 = vmatpush2.msra.mxu0 %v2937
        %3697 = vmatprep.subr.mxu0 %v2930
        %3698 = vmatpush2.msra.mxu0 %v2929
        %3699 = vmatprep.subr.mxu0 %v2922
        %3700 = vmatpush2.msra.mxu0 %v2921
        %3701 = vmatprep.subr.mxu0 %v2914
        %3702 = vmatpush2.msra.mxu0 %v2913
        %3703 = vmatprep.subr.mxu0 %v2906
        %3704 = vmatpush2.msra.mxu0 %v2905
        %3705 = vmatprep.subr.mxu0 %v2898
        %3706 = vmatpush2.msra.mxu0 %v2897
        %3707 = vmatprep.subr.mxu0 %v2890
        %3708 = vmatpush2.msra.mxu0 %v2889
        %3709 = vmatprep.subr.mxu0 %v2882
        %3710 = vmatpush2.msra.mxu0 %v2881
        %3711 = vmatprep.subr.mxu0 %v2874
        %3712 = vmatpush2.msra.mxu0 %v2873
        %3713 = vmatprep.subr.mxu0 %v2866
        %3714 = vmatpush2.msra.mxu0 %v2865
        %3715 = vmatprep.subr.mxu0 %v2858
        %3716 = vmatpush2.msra.mxu0 %v2857
        %3717 = vmatprep.subr.mxu0 %v2850
        %3718 = vmatpush2.msra.mxu0 %v2849
        %3719 = vmatprep.subr.mxu0 %v2842
        %3720 = vmatpush2.msra.mxu0 %v2841
        %3721 = vmatprep.subr.mxu0 %v2834
        %3722 = vmatpush2.msra.mxu0 %v2833
        %3723 = vmatprep.subr.mxu0 %v2826
        %3724 = vmatpush2.msra.mxu0 %v2825
        %3725 = vmatprep.subr.mxu0 %v2818
        %3726 = vmatpush2.msra.mxu0 %v2817
        %3727 = vmatprep.mubr.f32.mxu0 %v2680
        %3728 = vmatmul.mubr.f32.gmra.mxu0 %v2679
        %v3729 = vpop.f32.mrf.mxu0
        %v3730 = vadd.f32 %v3224, %v3729
        %v3731 = vpop.f32.mrf.mxu0
        %v3732 = vadd.f32 %v3228, %v3731
        %3733 = vdwg.mxu0
        %3734 = vmatprep.subr.mxu0 %v3066
        %3735 = vmatpush1.msra.mxu0 %v3065
        %3736 = vmatprep.subr.mxu0 %v3058
        %3737 = vmatpush1.msra.mxu0 %v3057
        %3738 = vmatprep.subr.mxu0 %v3050
        %3739 = vmatpush1.msra.mxu0 %v3049
        %3740 = vmatprep.subr.mxu0 %v3042
        %3741 = vmatpush1.msra.mxu0 %v3041
        %3742 = vmatprep.subr.mxu0 %v3034
        %3743 = vmatpush1.msra.mxu0 %v3033
        %3744 = vmatprep.subr.mxu0 %v3026
        %3745 = vmatpush1.msra.mxu0 %v3025
        %3746 = vmatprep.subr.mxu0 %v3018
        %3747 = vmatpush1.msra.mxu0 %v3017
        %3748 = vmatprep.subr.mxu0 %v3010
        %3749 = vmatpush1.msra.mxu0 %v3009
        %3750 = vmatprep.subr.mxu0 %v3002
        %3751 = vmatpush1.msra.mxu0 %v3001
        %3752 = vmatprep.subr.mxu0 %v2994
        %3753 = vmatpush1.msra.mxu0 %v2993
        %3754 = vmatprep.subr.mxu0 %v2986
        %3755 = vmatpush1.msra.mxu0 %v2985
        %3756 = vmatprep.subr.mxu0 %v2978
        %3757 = vmatpush1.msra.mxu0 %v2977
        %3758 = vmatprep.subr.mxu0 %v2970
        %3759 = vmatpush1.msra.mxu0 %v2969
        %3760 = vmatprep.subr.mxu0 %v2962
        %3761 = vmatpush1.msra.mxu0 %v2961
        %3762 = vmatprep.subr.mxu0 %v2954
        %3763 = vmatpush1.msra.mxu0 %v2953
        %3764 = vmatprep.subr.mxu0 %v2946
        %3765 = vmatpush1.msra.mxu0 %v2945
        %3766 = vmatprep.subr.mxu0 %v3194
        %3767 = vmatpush2.msra.mxu0 %v3193
        %3768 = vmatprep.subr.mxu0 %v3186
        %3769 = vmatpush2.msra.mxu0 %v3185
        %3770 = vmatprep.subr.mxu0 %v3178
        %3771 = vmatpush2.msra.mxu0 %v3177
        %3772 = vmatprep.subr.mxu0 %v3170
        %3773 = vmatpush2.msra.mxu0 %v3169
        %3774 = vmatprep.subr.mxu0 %v3162
        %3775 = vmatpush2.msra.mxu0 %v3161
        %3776 = vmatprep.subr.mxu0 %v3154
        %3777 = vmatpush2.msra.mxu0 %v3153
        %3778 = vmatprep.subr.mxu0 %v3146
        %3779 = vmatpush2.msra.mxu0 %v3145
        %3780 = vmatprep.subr.mxu0 %v3138
        %3781 = vmatpush2.msra.mxu0 %v3137
        %3782 = vmatprep.subr.mxu0 %v3130
        %3783 = vmatpush2.msra.mxu0 %v3129
        %3784 = vmatprep.subr.mxu0 %v3122
        %3785 = vmatpush2.msra.mxu0 %v3121
        %3786 = vmatprep.subr.mxu0 %v3114
        %3787 = vmatpush2.msra.mxu0 %v3113
        %3788 = vmatprep.subr.mxu0 %v3106
        %3789 = vmatpush2.msra.mxu0 %v3105
        %3790 = vmatprep.subr.mxu0 %v3098
        %3791 = vmatpush2.msra.mxu0 %v3097
        %3792 = vmatprep.subr.mxu0 %v3090
        %3793 = vmatpush2.msra.mxu0 %v3089
        %3794 = vmatprep.subr.mxu0 %v3082
        %3795 = vmatpush2.msra.mxu0 %v3081
        %3796 = vmatprep.subr.mxu0 %v3074
        %3797 = vmatpush2.msra.mxu0 %v3073
        %3798 = vmatprep.mubr.f32.mxu0 %v2682
        %3799 = vmatmul.mubr.f32.gmra.mxu0 %v2681
        %v3800 = vpop.f32.mrf.mxu0
        %v3801 = vadd.f32 %v3730, %v3800
        %v3802 = vpop.f32.mrf.mxu0
        %v3803 = vadd.f32 %v3732, %v3802
        %3804 = vdwg.mxu0
        %3805 = vst [vmem:[%s730] sm:$0xff] %v3375
        %3806 = vst [vmem:[%s730 + $0x8] sm:$0xff] %v3377
        %3807 = vst [vmem:[%s730 + $0x10] sm:$0xff] %v3517
        %3808 = vst [vmem:[%s730 + $0x18] sm:$0xff] %v3519
        %3809 = vst [vmem:[%s730 + $0x20] sm:$0xff] %v3659
        %3810 = vst [vmem:[%s730 + $0x28] sm:$0xff] %v3661
        %3811 = vst [vmem:[%s730 + $0x30] sm:$0xff] %v3801
        %3812 = vst [vmem:[%s730 + $0x38] sm:$0xff] %v3803
        %s3813 = sand.u32 %s414, 1
        %s3814 = scalar_lea.sflag [#allocation8], %s3813
        %s3815 = sand.u32 %s414, 1
        %s3816 = smul.addr %s3815, 64
        %s3817 = scalar_lea.vmem [#allocation27], %s3816
        // Predicated region
        $region141: #{tpu_custom_call.1} parent=87 // pred_check
          %p3818 = pneg %p424
        $region142: #{tpu_custom_call.1} parent=87 // pred_check_branch
          %3820 = sbr.rel (%p3818) target = $region144
        $region143: #{tpu_custom_call.1} parent=87 // pred_region
          %s3822 = ssub.s32 1024, 1024
          %3823 = vsyncadd %s3814, %s3822
          %s3824 = smul.addr %s44, 8
          %s3825 = smul.addr %s3824, 128
          %s3826 = scalar_lea.hbm %s17, %s3825
          %s3828 = sshll.u32 %s3817, 4
          %s3829 = int_to_ptr.vmem [resolvable:$true] %s3828
          %3831 = dma.vmem_to_hbm [thread:$0]  %s3829, 1024, %s3826, %s3814
        $region144: #{tpu_custom_call.1} parent=87 // pred_fallthru
          _
      $region88: #{tpu_custom_call.1} parent=5 // pred_fallthru
        _
      %p3832 = scmp.le.s32.totalorder 2, %s39
      // Predicated region
      $region145: #{tpu_custom_call.1} parent=5 // pred_check
        %p3833 = pneg %p3832
      $region146: #{tpu_custom_call.1} parent=5 // pred_check_branch
        %3835 = sbr.rel (%p3833) target = $region148
      $region147: #{tpu_custom_call.1} parent=5 // pred_region
        %s3836 = ssub.s32 %s39, 2
        // Predicated region
        $region149: #{tpu_custom_call.1} parent=147 // pred_check
          %p3837 = pneg %p430
        $region150: #{tpu_custom_call.1} parent=147 // pred_check_branch
          %3839 = sbr.rel (%p3837) target = $region152
        $region151: #{tpu_custom_call.1} parent=147 // pred_region
          %s3840 = sand.u32 %s415, 1
          %s3841 = scalar_lea.sflag [#allocation8], %s3840
          %s3842 = sand.u32 %s415, 1
          %s3843 = smul.addr %s3842, 64
          %s3844 = scalar_lea.vmem [#allocation27], %s3843
          %3845 = dma.done %s3841, 1024
        $region152: #{tpu_custom_call.1} parent=147 // pred_fallthru
          _
      $region148: #{tpu_custom_call.1} parent=5 // pred_fallthru
        _
    $region6: #{tpu_custom_call.1} parent=1 // loop_footer
      %s43 = sadd.s32 1, %s39
    $region7: #{tpu_custom_call.1} parent=1 // loop_footer_branch
      %38 = sbr.rel target = $region3
    $region8: #{tpu_custom_call.1} parent=1 // loop_exit
      _
    %3846 = vsyncpa [#allocation7], 1
    %s3847 = scalar_lea.sflag [#allocation7], 1
    %3848 = vsyncpa %s3847, 1
    %3849 = vsyncpa [#allocation10], 1
    %3850 = vsyncpa [#allocation13], 1
    %3851 = vsyncpa [#allocation16], 1
    %3852 = vsyncpa [#allocation19], 1
    %3853 = vsyncpa [#allocation22], 1
    %3854 = vsyncpa [#allocation25], 1
    %3855 = vsyncpa [#allocation8], 1
    %s3856 = scalar_lea.sflag [#allocation8], 1
    %3857 = vsyncpa %s3856, 1

</llo_original>
